<compile_context>
chip_gen: v6e
topology: v6e:2x2x1
jax: 0.10.0
libtpu: 0.0.40
codegen_flags: <defaults>
</compile_context>

<pallas_src>
import functools

import jax
import jax.numpy as jnp
from jax import lax
from jax.experimental import pallas as pl
from jax.experimental.pallas import tpu as pltpu


# Column offset of the interior inside the padded scratches.  Zero halo lives
# at columns _PAD_L-1 and _PAD_L+W; columns < _PAD_L-1 are never read/written.
_PAD_L = 8


def _conv3x3_rows(pad, n_rows_out, w_ref, W, C):
    """3x3 'same' conv over a zero-halo padded bf16 slab.

    pad   : (n_rows_out + 2, cols, C) bf16 value, zero halo at cols
            _PAD_L-1 / _PAD_L+W (and whatever rows the caller arranged).
    w_ref : (3, 3*C, C) bf16 ref; row ky holds (kx, ci)-major weights.
    returns (n_rows_out * W, C) f32.

    3 accumulating matmuls (one per ky) -> only an (M, 3C) im2col operand is
    ever materialized (3x smaller than the single K=9C form); f32 accumulation.
    """
    acc = jnp.zeros((n_rows_out * W, C), jnp.float32)
    base = _PAD_L - 1
    for ky in range(3):
        rows = pad[ky:ky + n_rows_out]                       # (M_rows, cols, C)
        col = jnp.concatenate(
            [rows[:, base + kx:base + kx + W, :] for kx in range(3)],
            axis=-1).reshape(n_rows_out * W, 3 * C)          # bf16
        acc = acc + jnp.dot(col, w_ref[ky],
                            preferred_element_type=jnp.float32)
    return acc


def _bias_prelu(y, b_ref, a_ref):
    y = y + b_ref[...]                                       # (M, C) + (1, C), f32
    return jnp.where(y > 0.0, y, a_ref[...] * y)


def sphere_res_block_kernel(x_ref, w1_ref, b1_ref, a1_ref,
                            w2_ref, b2_ref, a2_ref,
                            out_ref, xpad_s, hpad_s):
    """Fused: out = x + PReLU(conv2(PReLU(conv1(x)))), one H-tile per step.

    x_ref   : (1, H, W, C)      f32 NHWC input (block resident across H-tiles)
    w*_ref  : (3, 3*C, C)       bf16 conv weights, per-ky (kx, ci)-major
    b*_ref, a*_ref : (1, C)     f32 bias / PReLU slope
    out_ref : (1, TH, W*C) or (1, TH, W, C)  f32 output tile
    xpad_s  : (H+4, W+_PAD_L+2, C)    bf16 zero-halo padded image (persistent)
    hpad_s  : (TH+2, W+_PAD_L+2, C)   bf16 zero-halo padded intermediate tile
    """
    _, H, W, C = x_ref.shape
    tile_h = hpad_s.shape[0] - 2
    cols = xpad_s.shape[1]
    th = pl.program_id(1)
    n_th = pl.num_programs(1)
    r0 = pl.multiple_of(th * tile_h, tile_h)

    @pl.when(th == 0)
    def _stage_image():
        # Zero ONLY the halo (4 rows + 2 columns), once per image — the
        # interior is fully overwritten.  Per-image (not program_id==0 only)
        # so it stays correct when the batch axis is megacore-sharded.
        zrows = jnp.zeros((2, cols, C), xpad_s.dtype)
        xpad_s[pl.ds(0, 2), :, :] = zrows
        xpad_s[pl.ds(H + 2, 2), :, :] = zrows
        zcol = jnp.zeros((H + 4, 1, C), xpad_s.dtype)
        xpad_s[:, pl.ds(_PAD_L - 1, 1), :] = zcol
        xpad_s[:, pl.ds(_PAD_L + W, 1), :] = zcol
        hzcol = jnp.zeros((tile_h + 2, 1, C), hpad_s.dtype)
        hpad_s[:, pl.ds(_PAD_L - 1, 1), :] = hzcol
        hpad_s[:, pl.ds(_PAD_L + W, 1), :] = hzcol
        # Stage the whole image once, cast to bf16 (halves scratch + tap traffic).
        xpad_s[pl.ds(2, H), pl.ds(_PAD_L, W), :] = x_ref[0].astype(xpad_s.dtype)

    # ---- conv1 + PReLU over the tile rows plus a 1-row halo of h -----------
    xt = xpad_s[pl.ds(r0, tile_h + 4), :, :]        # (TH+4, cols, C) bf16
    h = _conv3x3_rows(xt, tile_h + 2, w1_ref, W, C)
    h = _bias_prelu(h, b1_ref, a1_ref)
    hpad_s[:, pl.ds(_PAD_L, W), :] = (
        h.reshape(tile_h + 2, W, C).astype(hpad_s.dtype))

    # conv2 "same" padding along H: the h rows just outside the image must be
    # zero (not conv1 of extra zero padding) — overwrite at the image borders.
    zrow = jnp.zeros((cols, C), hpad_s.dtype)

    @pl.when(th == 0)
    def _zero_top():
        hpad_s[0] = zrow

    @pl.when(th == n_th - 1)
    def _zero_bottom():
        hpad_s[tile_h + 1] = zrow

    # ---- conv2 + PReLU + residual ------------------------------------------
    hp = hpad_s[...]                                # (TH+2, cols, C) bf16
    y = _conv3x3_rows(hp, tile_h, w2_ref, W, C)
    y = _bias_prelu(y, b2_ref, a2_ref)

    res = x_ref[0, pl.ds(r0, tile_h), :, :] + y.reshape(tile_h, W, C)  # f32
    if len(out_ref.shape) == 4:          # (1, TH, W, C): C >= 128, already lane-dense
        out_ref[0] = res.astype(out_ref.dtype)
    else:                                # (1, TH, W*C): lane-dense flatten for C < 128
        out_ref[0] = res.reshape(tile_h, W * C).astype(out_ref.dtype)


def _default_tile_h(H):
    if H <= 8 or H % 8 != 0:
        return H                         # no H tiling for tiny / odd heights
    for t in (64, 32, 16, 8):
        if H % t == 0:
            return t
    return H


def _vmem_limit_bytes(H, W, C, tile_h):
    """Derive the VMEM limit from actual buffer sizes + physical capacity."""
    bf16, f32 = 2, 4
    cols = W + _PAD_L + 2
    x_blk = 2 * H * W * C * f32                      # double-buffered input block
    out_blk = 2 * tile_h * W * C * f32               # double-buffered output block
    wts = 2 * 9 * C * C * bf16 + 4 * C * f32
    xpad = (H + 4) * cols * C * bf16
    hpad = (tile_h + 2) * cols * C * bf16
    col = (tile_h + 2) * W * 3 * C * bf16            # largest materialized im2col
    acc = (tile_h + 2) * W * C * f32                 # f32 accum / activation temps
    est = x_blk + out_blk + wts + xpad + hpad + 4 * (col + acc)
    try:
        phys = int(pltpu.get_tpu_info().vmem_capacity_bytes)
    except Exception:
        phys = 64 * 1024 * 1024                      # conservative (v7x) fallback
    cap = phys - 16 * 1024 * 1024                    # headroom for Mosaic scratch
    return int(min(max(est, 32 * 1024 * 1024), cap))


@functools.partial(jax.jit, static_argnames=("tile_h",))
def sphere_res_block(x_nchw, params, *, tile_h=None):
    """x_nchw: (N, C, H, W) float32 -> (N, C, H, W) float32 (matches PyTorch)."""
    x = jnp.transpose(x_nchw, (0, 2, 3, 1))          # NCHW -> NHWC
    N, H, W, C = x.shape
    if tile_h is None:
        tile_h = _default_tile_h(H)
    assert H % tile_h == 0 and (tile_h % 8 == 0 or tile_h == H), (H, tile_h)
    n_th = H // tile_h
    cols = W + _PAD_L + 2

    # (kH,kW,Cin,Cout) -> (3, 3*Cin, Cout): per-ky (kx, ci)-major — matches the
    # kx-concatenated im2col operand.  bf16 weights for the MXU.
    # (Note for v6e/v7x: at large C prefer K groupings that land on 256.)
    w1 = params["w1"].reshape(3, 3 * C, C).astype(jnp.bfloat16)
    w2 = params["w2"].reshape(3, 3 * C, C).astype(jnp.bfloat16)
    b1 = params["b1"].reshape(1, C).astype(jnp.float32)
    b2 = params["b2"].reshape(1, C).astype(jnp.float32)
    a1 = params["a1"].reshape(1, C).astype(jnp.float32)
    a2 = params["a2"].reshape(1, C).astype(jnp.float32)

    vec_spec = pl.BlockSpec((1, C), lambda n, t: (0, 0))
    w_spec = pl.BlockSpec((3, 3 * C, C), lambda n, t: (0, 0, 0))

    lane_flatten = C < 128
    if lane_flatten:
        out_shape = jax.ShapeDtypeStruct((N, H, W * C), jnp.float32)
        out_spec = pl.BlockSpec((1, tile_h, W * C), lambda n, t: (n, t, 0))
    else:
        out_shape = jax.ShapeDtypeStruct((N, H, W, C), jnp.float32)
        out_spec = pl.BlockSpec((1, tile_h, W, C), lambda n, t: (n, t, 0, 0))

    flops = 4 * 9 * N * H * W * C * C                # two convs, 2*M*K*N each
    bytes_accessed = (2 * N * H * W * C * 4          # x read + out write (f32)
                      + 2 * 9 * C * C * 2            # two bf16 weight sets
                      + 4 * C * 4)                   # biases + alphas

    out = pl.pallas_call(
        sphere_res_block_kernel,
        out_shape=out_shape,
        grid_spec=pltpu.PrefetchScalarGridSpec(
            num_scalar_prefetch=0,
            grid=(N, n_th),
            in_specs=[
                pl.BlockSpec((1, H, W, C), lambda n, t: (n, 0, 0, 0)),  # x, resident over t
                w_spec, vec_spec, vec_spec,                              # w1, b1, a1
                w_spec, vec_spec, vec_spec,                              # w2, b2, a2
            ],
            out_specs=out_spec,
            scratch_shapes=[
                pltpu.VMEM((H + 4, cols, C), jnp.bfloat16),        # padded input image
                pltpu.VMEM((tile_h + 2, cols, C), jnp.bfloat16),   # padded h tile (+halo)
            ],
        ),
        compiler_params=pltpu.CompilerParams(
            dimension_semantics=("parallel", "arbitrary"),
            vmem_limit_bytes=_vmem_limit_bytes(H, W, C, tile_h),
        ),
        cost_estimate=pl.CostEstimate(
            flops=flops, transcendentals=0, bytes_accessed=bytes_accessed),
    )(x, w1, b1, a1, w2, b2, a2)

    if lane_flatten:
        out = out.reshape(N, H, W, C)                # contiguous, free
    return jnp.transpose(out, (0, 3, 1, 2))          # NHWC -> NCHW


def sphere_res_block_ref(x_nchw, params):
    """Pure-JAX reference (lax.conv, f32) for correctness checking."""
    x = jnp.transpose(x_nchw, (0, 2, 3, 1))
    dn = ("NHWC", "HWIO", "NHWC")

    def conv_prelu(h, w, b, a):
        y = lax.conv_general_dilated(h, w, (1, 1), "SAME", dimension_numbers=dn)
        y = y + b[None, None, None, :]
        return jnp.where(y > 0, y, a[None, None, None, :] * y)

    h = conv_prelu(x, params["w1"], params["b1"], params["a1"])
    h = conv_prelu(h, params["w2"], params["b2"], params["a2"])
    return jnp.transpose(x + h, (0, 3, 1, 2))


def init_params(key, channels):
    k1, k2, k3, k4 = jax.random.split(key, 4)
    fan_in = channels * 9
    scale = 1.0 / jnp.sqrt(fan_in)
    return {
        # weights stored as (kH, kW, Cin, Cout)
        "w1": jax.random.uniform(k1, (3, 3, channels, channels),
                                 jnp.float32, -scale, scale),
        "b1": jax.random.uniform(k2, (channels,), jnp.float32, -scale, scale),
        "w2": jax.random.uniform(k3, (3, 3, channels, channels),
                                 jnp.float32, -scale, scale),
        "b2": jax.random.uniform(k4, (channels,), jnp.float32, -scale, scale),
        # PReLU default init in PyTorch: 0.25 per channel
        "a1": jnp.full((channels,), 0.25, jnp.float32),
        "a2": jnp.full((channels,), 0.25, jnp.float32),
    }


if __name__ == "__main__":
    key = jax.random.PRNGKey(0)
    k_x, k_p = jax.random.split(key)

    N, C, H, W = 2, 4, 16, 16
    x = jax.random.normal(k_x, (N, C, H, W), jnp.float32)
    params = init_params(k_p, C)

    # tile_h=8 -> two H-tiles per image, exercising the halo'd-tile path.
    out = sphere_res_block(x, params, tile_h=8)
    out = jax.block_until_ready(out)

    ref = sphere_res_block_ref(x, params)
    assert out.shape == (N, C, H, W)
    # bf16 MXU inputs / bf16 on-chip activations -> loosened tolerance vs f32.
    assert jnp.allclose(out, ref, atol=5e-2, rtol=5e-2), (
        f"max abs err {jnp.max(jnp.abs(out - ref))}")

    print("KERNEL_OK")
</pallas_src>

<mosaic_0001>
module attributes {stable_mosaic.version = 11 : i64} {
  func.func @sphere_res_block_kernel(%arg0: i32, %arg1: i32, %arg2: memref<1x16x16x4xf32, #tpu.memory_space<vmem>>, %arg3: memref<3x12x4xbf16, #tpu.memory_space<vmem>>, %arg4: memref<1x4xf32, #tpu.memory_space<vmem>>, %arg5: memref<1x4xf32, #tpu.memory_space<vmem>>, %arg6: memref<3x12x4xbf16, #tpu.memory_space<vmem>>, %arg7: memref<1x4xf32, #tpu.memory_space<vmem>>, %arg8: memref<1x4xf32, #tpu.memory_space<vmem>>, %arg9: memref<1x8x64xf32, #tpu.memory_space<vmem>>, %arg10: memref<20x26x4xbf16, #tpu.memory_space<vmem>>, %arg11: memref<10x26x4xbf16, #tpu.memory_space<vmem>>) attributes {dimension_semantics = [#tpu.dimension_semantics<parallel>, #tpu.dimension_semantics<arbitrary>], iteration_bounds = array<i64: 2, 2>, scalar_prefetch = 0 : i64, scratch_operands = 2 : i64, tpu.core_type = #tpu.core_type<tc>, window_params = [{transform_indices = @transform_0, window_bounds = array<i64: 1, 16, 16, 4>}, {pipeline_mode = #tpu.pipeline_mode<synchronous>, transform_indices = @transform_1, window_bounds = array<i64: 3, 12, 4>}, {pipeline_mode = #tpu.pipeline_mode<synchronous>, transform_indices = @transform_2, window_bounds = array<i64: 1, 4>}, {pipeline_mode = #tpu.pipeline_mode<synchronous>, transform_indices = @transform_3, window_bounds = array<i64: 1, 4>}, {pipeline_mode = #tpu.pipeline_mode<synchronous>, transform_indices = @transform_4, window_bounds = array<i64: 3, 12, 4>}, {pipeline_mode = #tpu.pipeline_mode<synchronous>, transform_indices = @transform_5, window_bounds = array<i64: 1, 4>}, {pipeline_mode = #tpu.pipeline_mode<synchronous>, transform_indices = @transform_6, window_bounds = array<i64: 1, 4>}, {transform_indices = @transform_7, window_bounds = array<i64: 1, 8, 64>}]} {
    %c8_i32 = arith.constant 8 : i32
    %0 = arith.muli %arg1, %c8_i32 : i32
    %1 = tpu.assume_multiple %0, 8 : i32
    %c0_i32 = arith.constant 0 : i32
    %2 = arith.cmpi eq, %arg1, %c0_i32 : i32
    %3 = arith.extui %2 : i1 to i32
    %c0_i32_0 = arith.constant 0 : i32
    %4 = arith.cmpi ne, %3, %c0_i32_0 : i32
    scf.if %4 {
      %cst_50 = arith.constant 0.000000e+00 : bf16
      %107 = vector.broadcast %cst_50 : bf16 to vector<2x26x4xbf16>
      %c0_51 = arith.constant 0 : index
      %c0_52 = arith.constant 0 : index
      %c0_53 = arith.constant 0 : index
      %108 = vector.load %arg10[%c0_51, %c0_52, %c0_53] : memref<20x26x4xbf16, #tpu.memory_space<vmem>>, vector<2x26x4xbf16>
      tpu.vector_store %arg10[%c0_51, %c0_52, %c0_53], %107 {strides = array<i32>} : memref<20x26x4xbf16, #tpu.memory_space<vmem>>, vector<2x26x4xbf16>,
      %c18 = arith.constant 18 : index
      %c0_54 = arith.constant 0 : index
      %c0_55 = arith.constant 0 : index
      %109 = vector.load %arg10[%c18, %c0_54, %c0_55] : memref<20x26x4xbf16, #tpu.memory_space<vmem>>, vector<2x26x4xbf16>
      tpu.vector_store %arg10[%c18, %c0_54, %c0_55], %107 {strides = array<i32>} : memref<20x26x4xbf16, #tpu.memory_space<vmem>>, vector<2x26x4xbf16>,
      %cst_56 = arith.constant 0.000000e+00 : bf16
      %110 = vector.broadcast %cst_56 : bf16 to vector<20x1x4xbf16>
      %c0_57 = arith.constant 0 : index
      %c7 = arith.constant 7 : index
      %c0_58 = arith.constant 0 : index
      %111 = vector.load %arg10[%c0_57, %c7, %c0_58] : memref<20x26x4xbf16, #tpu.memory_space<vmem>>, vector<20x1x4xbf16>
      tpu.vector_store %arg10[%c0_57, %c7, %c0_58], %110 {strides = array<i32>} : memref<20x26x4xbf16, #tpu.memory_space<vmem>>, vector<20x1x4xbf16>,
      %c0_59 = arith.constant 0 : index
      %c24 = arith.constant 24 : index
      %c0_60 = arith.constant 0 : index
      %112 = vector.load %arg10[%c0_59, %c24, %c0_60] : memref<20x26x4xbf16, #tpu.memory_space<vmem>>, vector<20x1x4xbf16>
      tpu.vector_store %arg10[%c0_59, %c24, %c0_60], %110 {strides = array<i32>} : memref<20x26x4xbf16, #tpu.memory_space<vmem>>, vector<20x1x4xbf16>,
      %cst_61 = arith.constant 0.000000e+00 : bf16
      %113 = vector.broadcast %cst_61 : bf16 to vector<10x1x4xbf16>
      %c0_62 = arith.constant 0 : index
      %c7_63 = arith.constant 7 : index
      %c0_64 = arith.constant 0 : index
      %114 = vector.load %arg11[%c0_62, %c7_63, %c0_64] : memref<10x26x4xbf16, #tpu.memory_space<vmem>>, vector<10x1x4xbf16>
      tpu.vector_store %arg11[%c0_62, %c7_63, %c0_64], %113 {strides = array<i32>} : memref<10x26x4xbf16, #tpu.memory_space<vmem>>, vector<10x1x4xbf16>,
      %c0_65 = arith.constant 0 : index
      %c24_66 = arith.constant 24 : index
      %c0_67 = arith.constant 0 : index
      %115 = vector.load %arg11[%c0_65, %c24_66, %c0_67] : memref<10x26x4xbf16, #tpu.memory_space<vmem>>, vector<10x1x4xbf16>
      tpu.vector_store %arg11[%c0_65, %c24_66, %c0_67], %113 {strides = array<i32>} : memref<10x26x4xbf16, #tpu.memory_space<vmem>>, vector<10x1x4xbf16>,
      %c0_68 = arith.constant 0 : index
      %c0_69 = arith.constant 0 : index
      %c0_70 = arith.constant 0 : index
      %c0_71 = arith.constant 0 : index
      %116 = vector.load %arg2[%c0_68, %c0_69, %c0_70, %c0_71] : memref<1x16x16x4xf32, #tpu.memory_space<vmem>>, vector<1x16x16x4xf32>
      %117 = vector.shape_cast %116 : vector<1x16x16x4xf32> to vector<16x16x4xf32>
      %118 = arith.truncf %117 : vector<16x16x4xf32> to vector<16x16x4xbf16>
      %c2_72 = arith.constant 2 : index
      %c8_73 = arith.constant 8 : index
      %c0_74 = arith.constant 0 : index
      %119 = vector.load %arg10[%c2_72, %c8_73, %c0_74] : memref<20x26x4xbf16, #tpu.memory_space<vmem>>, vector<16x16x4xbf16>
      tpu.vector_store %arg10[%c2_72, %c8_73, %c0_74], %118 {strides = array<i32>} : memref<20x26x4xbf16, #tpu.memory_space<vmem>>, vector<16x16x4xbf16>,
    } else {
    }
    %5 = arith.index_cast %1 : i32 to index
    %c0 = arith.constant 0 : index
    %c0_1 = arith.constant 0 : index
    %6 = vector.load %arg10[%5, %c0, %c0_1] : memref<20x26x4xbf16, #tpu.memory_space<vmem>>, vector<12x26x4xbf16>
    %cst = arith.constant 0.000000e+00 : f32
    %7 = vector.broadcast %cst : f32 to vector<160x4xf32>
    %8 = vector.extract_strided_slice %6 {offsets = [0, 0, 0], sizes = [10, 26, 4], strides = [1, 1, 1]} : vector<12x26x4xbf16> to vector<10x26x4xbf16>
    %9 = vector.extract_strided_slice %8 {offsets = [0, 7, 0], sizes = [10, 16, 4], strides = [1, 1, 1]} : vector<10x26x4xbf16> to vector<10x16x4xbf16>
    %10 = vector.extract_strided_slice %8 {offsets = [0, 8, 0], sizes = [10, 16, 4], strides = [1, 1, 1]} : vector<10x26x4xbf16> to vector<10x16x4xbf16>
    %11 = vector.extract_strided_slice %8 {offsets = [0, 9, 0], sizes = [10, 16, 4], strides = [1, 1, 1]} : vector<10x26x4xbf16> to vector<10x16x4xbf16>
    %12 = tpu.concatenate %9, %10, %11 in 2 : vector<10x16x4xbf16>, vector<10x16x4xbf16>, vector<10x16x4xbf16> -> vector<10x16x12xbf16>
    %13 = vector.shape_cast %12 : vector<10x16x12xbf16> to vector<160x12xbf16>
    %c0_2 = arith.constant 0 : index
    %c0_3 = arith.constant 0 : index
    %c0_4 = arith.constant 0 : index
    %14 = vector.load %arg3[%c0_2, %c0_3, %c0_4] : memref<3x12x4xbf16, #tpu.memory_space<vmem>>, vector<1x12x4xbf16>
    %15 = vector.shape_cast %14 : vector<1x12x4xbf16> to vector<12x4xbf16>
    %cst_5 = arith.constant dense<0.000000e+00> : vector<160x4xf32>
    %16 = tpu.matmul %13, %15, %cst_5 {dimension_numbers = #tpu.dot_dimension_numbers<[1], [0], [0], [1], [0, 0, 1, 1], [], []>} : vector<160x12xbf16>, vector<12x4xbf16>, vector<160x4xf32> -> vector<160x4xf32>
    %17 = arith.addf %7, %16 : vector<160x4xf32>
    %18 = vector.extract_strided_slice %6 {offsets = [1, 0, 0], sizes = [10, 26, 4], strides = [1, 1, 1]} : vector<12x26x4xbf16> to vector<10x26x4xbf16>
    %19 = vector.extract_strided_slice %18 {offsets = [0, 7, 0], sizes = [10, 16, 4], strides = [1, 1, 1]} : vector<10x26x4xbf16> to vector<10x16x4xbf16>
    %20 = vector.extract_strided_slice %18 {offsets = [0, 8, 0], sizes = [10, 16, 4], strides = [1, 1, 1]} : vector<10x26x4xbf16> to vector<10x16x4xbf16>
    %21 = vector.extract_strided_slice %18 {offsets = [0, 9, 0], sizes = [10, 16, 4], strides = [1, 1, 1]} : vector<10x26x4xbf16> to vector<10x16x4xbf16>
    %22 = tpu.concatenate %19, %20, %21 in 2 : vector<10x16x4xbf16>, vector<10x16x4xbf16>, vector<10x16x4xbf16> -> vector<10x16x12xbf16>
    %23 = vector.shape_cast %22 : vector<10x16x12xbf16> to vector<160x12xbf16>
    %c1 = arith.constant 1 : index
    %c0_6 = arith.constant 0 : index
    %c0_7 = arith.constant 0 : index
    %24 = vector.load %arg3[%c1, %c0_6, %c0_7] : memref<3x12x4xbf16, #tpu.memory_space<vmem>>, vector<1x12x4xbf16>
    %25 = vector.shape_cast %24 : vector<1x12x4xbf16> to vector<12x4xbf16>
    %cst_8 = arith.constant dense<0.000000e+00> : vector<160x4xf32>
    %26 = tpu.matmul %23, %25, %cst_8 {dimension_numbers = #tpu.dot_dimension_numbers<[1], [0], [0], [1], [0, 0, 1, 1], [], []>} : vector<160x12xbf16>, vector<12x4xbf16>, vector<160x4xf32> -> vector<160x4xf32>
    %27 = arith.addf %17, %26 : vector<160x4xf32>
    %28 = vector.extract_strided_slice %6 {offsets = [2, 0, 0], sizes = [10, 26, 4], strides = [1, 1, 1]} : vector<12x26x4xbf16> to vector<10x26x4xbf16>
    %29 = vector.extract_strided_slice %28 {offsets = [0, 7, 0], sizes = [10, 16, 4], strides = [1, 1, 1]} : vector<10x26x4xbf16> to vector<10x16x4xbf16>
    %30 = vector.extract_strided_slice %28 {offsets = [0, 8, 0], sizes = [10, 16, 4], strides = [1, 1, 1]} : vector<10x26x4xbf16> to vector<10x16x4xbf16>
    %31 = vector.extract_strided_slice %28 {offsets = [0, 9, 0], sizes = [10, 16, 4], strides = [1, 1, 1]} : vector<10x26x4xbf16> to vector<10x16x4xbf16>
    %32 = tpu.concatenate %29, %30, %31 in 2 : vector<10x16x4xbf16>, vector<10x16x4xbf16>, vector<10x16x4xbf16> -> vector<10x16x12xbf16>
    %33 = vector.shape_cast %32 : vector<10x16x12xbf16> to vector<160x12xbf16>
    %c2 = arith.constant 2 : index
    %c0_9 = arith.constant 0 : index
    %c0_10 = arith.constant 0 : index
    %34 = vector.load %arg3[%c2, %c0_9, %c0_10] : memref<3x12x4xbf16, #tpu.memory_space<vmem>>, vector<1x12x4xbf16>
    %35 = vector.shape_cast %34 : vector<1x12x4xbf16> to vector<12x4xbf16>
    %cst_11 = arith.constant dense<0.000000e+00> : vector<160x4xf32>
    %36 = tpu.matmul %33, %35, %cst_11 {dimension_numbers = #tpu.dot_dimension_numbers<[1], [0], [0], [1], [0, 0, 1, 1], [], []>} : vector<160x12xbf16>, vector<12x4xbf16>, vector<160x4xf32> -> vector<160x4xf32>
    %37 = arith.addf %27, %36 : vector<160x4xf32>
    %c0_12 = arith.constant 0 : index
    %c0_13 = arith.constant 0 : index
    %38 = vector.load %arg4[%c0_12, %c0_13] : memref<1x4xf32, #tpu.memory_space<vmem>>, vector<1x4xf32>
    %39 = vector.broadcast %38 : vector<1x4xf32> to vector<160x4xf32>
    %40 = arith.addf %37, %39 : vector<160x4xf32>
    %cst_14 = arith.constant 0.000000e+00 : f32
    %41 = vector.broadcast %cst_14 : f32 to vector<160x4xf32>
    %42 = arith.cmpf ogt, %40, %41 : vector<160x4xf32>
    %c0_15 = arith.constant 0 : index
    %c0_16 = arith.constant 0 : index
    %43 = vector.load %arg5[%c0_15, %c0_16] : memref<1x4xf32, #tpu.memory_space<vmem>>, vector<1x4xf32>
    %44 = vector.broadcast %43 : vector<1x4xf32> to vector<160x4xf32>
    %45 = arith.mulf %44, %40 : vector<160x4xf32>
    %46 = arith.select %42, %40, %45 : vector<160x4xi1>, vector<160x4xf32>
    %47 = vector.shape_cast %46 : vector<160x4xf32> to vector<10x16x4xf32>
    %48 = arith.truncf %47 : vector<10x16x4xf32> to vector<10x16x4xbf16>
    %c0_17 = arith.constant 0 : index
    %c8 = arith.constant 8 : index
    %c0_18 = arith.constant 0 : index
    %49 = vector.load %arg11[%c0_17, %c8, %c0_18] : memref<10x26x4xbf16, #tpu.memory_space<vmem>>, vector<10x16x4xbf16>
    tpu.vector_store %arg11[%c0_17, %c8, %c0_18], %48 {strides = array<i32>} : memref<10x26x4xbf16, #tpu.memory_space<vmem>>, vector<10x16x4xbf16>,
    %cst_19 = arith.constant 0.000000e+00 : bf16
    %50 = vector.broadcast %cst_19 : bf16 to vector<26x4xbf16>
    %c0_i32_20 = arith.constant 0 : i32
    %51 = arith.cmpi eq, %arg1, %c0_i32_20 : i32
    %52 = arith.extui %51 : i1 to i32
    %c0_i32_21 = arith.constant 0 : i32
    %53 = arith.cmpi ne, %52, %c0_i32_21 : i32
    scf.if %53 {
      %c0_50 = arith.constant 0 : index
      %c0_51 = arith.constant 0 : index
      %c0_52 = arith.constant 0 : index
      %107 = vector.load %arg11[%c0_50, %c0_51, %c0_52] : memref<10x26x4xbf16, #tpu.memory_space<vmem>>, vector<1x26x4xbf16>
      %108 = vector.shape_cast %107 : vector<1x26x4xbf16> to vector<26x4xbf16>
      %109 = vector.shape_cast %50 : vector<26x4xbf16> to vector<1x26x4xbf16>
      tpu.vector_store %arg11[%c0_50, %c0_51, %c0_52], %109 {strides = array<i32>} : memref<10x26x4xbf16, #tpu.memory_space<vmem>>, vector<1x26x4xbf16>,
    } else {
    }
    %c1_i32 = arith.constant 1 : i32
    %54 = arith.cmpi eq, %arg1, %c1_i32 : i32
    %55 = arith.extui %54 : i1 to i32
    %c0_i32_22 = arith.constant 0 : i32
    %56 = arith.cmpi ne, %55, %c0_i32_22 : i32
    scf.if %56 {
      %c9 = arith.constant 9 : index
      %c0_50 = arith.constant 0 : index
      %c0_51 = arith.constant 0 : index
      %107 = vector.load %arg11[%c9, %c0_50, %c0_51] : memref<10x26x4xbf16, #tpu.memory_space<vmem>>, vector<1x26x4xbf16>
      %108 = vector.shape_cast %107 : vector<1x26x4xbf16> to vector<26x4xbf16>
      %109 = vector.shape_cast %50 : vector<26x4xbf16> to vector<1x26x4xbf16>
      tpu.vector_store %arg11[%c9, %c0_50, %c0_51], %109 {strides = array<i32>} : memref<10x26x4xbf16, #tpu.memory_space<vmem>>, vector<1x26x4xbf16>,
    } else {
    }
    %c0_23 = arith.constant 0 : index
    %c0_24 = arith.constant 0 : index
    %c0_25 = arith.constant 0 : index
    %57 = vector.load %arg11[%c0_23, %c0_24, %c0_25] : memref<10x26x4xbf16, #tpu.memory_space<vmem>>, vector<10x26x4xbf16>
    %cst_26 = arith.constant 0.000000e+00 : f32
    %58 = vector.broadcast %cst_26 : f32 to vector<128x4xf32>
    %59 = vector.extract_strided_slice %57 {offsets = [0, 0, 0], sizes = [8, 26, 4], strides = [1, 1, 1]} : vector<10x26x4xbf16> to vector<8x26x4xbf16>
    %60 = vector.extract_strided_slice %59 {offsets = [0, 7, 0], sizes = [8, 16, 4], strides = [1, 1, 1]} : vector<8x26x4xbf16> to vector<8x16x4xbf16>
    %61 = vector.extract_strided_slice %59 {offsets = [0, 8, 0], sizes = [8, 16, 4], strides = [1, 1, 1]} : vector<8x26x4xbf16> to vector<8x16x4xbf16>
    %62 = vector.extract_strided_slice %59 {offsets = [0, 9, 0], sizes = [8, 16, 4], strides = [1, 1, 1]} : vector<8x26x4xbf16> to vector<8x16x4xbf16>
    %63 = tpu.concatenate %60, %61, %62 in 2 : vector<8x16x4xbf16>, vector<8x16x4xbf16>, vector<8x16x4xbf16> -> vector<8x16x12xbf16>
    %64 = vector.shape_cast %63 : vector<8x16x12xbf16> to vector<128x12xbf16>
    %c0_27 = arith.constant 0 : index
    %c0_28 = arith.constant 0 : index
    %c0_29 = arith.constant 0 : index
    %65 = vector.load %arg6[%c0_27, %c0_28, %c0_29] : memref<3x12x4xbf16, #tpu.memory_space<vmem>>, vector<1x12x4xbf16>
    %66 = vector.shape_cast %65 : vector<1x12x4xbf16> to vector<12x4xbf16>
    %cst_30 = arith.constant dense<0.000000e+00> : vector<128x4xf32>
    %67 = tpu.matmul %64, %66, %cst_30 {dimension_numbers = #tpu.dot_dimension_numbers<[1], [0], [0], [1], [0, 0, 1, 1], [], []>} : vector<128x12xbf16>, vector<12x4xbf16>, vector<128x4xf32> -> vector<128x4xf32>
    %68 = arith.addf %58, %67 : vector<128x4xf32>
    %69 = vector.extract_strided_slice %57 {offsets = [1, 0, 0], sizes = [8, 26, 4], strides = [1, 1, 1]} : vector<10x26x4xbf16> to vector<8x26x4xbf16>
    %70 = vector.extract_strided_slice %69 {offsets = [0, 7, 0], sizes = [8, 16, 4], strides = [1, 1, 1]} : vector<8x26x4xbf16> to vector<8x16x4xbf16>
    %71 = vector.extract_strided_slice %69 {offsets = [0, 8, 0], sizes = [8, 16, 4], strides = [1, 1, 1]} : vector<8x26x4xbf16> to vector<8x16x4xbf16>
    %72 = vector.extract_strided_slice %69 {offsets = [0, 9, 0], sizes = [8, 16, 4], strides = [1, 1, 1]} : vector<8x26x4xbf16> to vector<8x16x4xbf16>
    %73 = tpu.concatenate %70, %71, %72 in 2 : vector<8x16x4xbf16>, vector<8x16x4xbf16>, vector<8x16x4xbf16> -> vector<8x16x12xbf16>
    %74 = vector.shape_cast %73 : vector<8x16x12xbf16> to vector<128x12xbf16>
    %c1_31 = arith.constant 1 : index
    %c0_32 = arith.constant 0 : index
    %c0_33 = arith.constant 0 : index
    %75 = vector.load %arg6[%c1_31, %c0_32, %c0_33] : memref<3x12x4xbf16, #tpu.memory_space<vmem>>, vector<1x12x4xbf16>
    %76 = vector.shape_cast %75 : vector<1x12x4xbf16> to vector<12x4xbf16>
    %cst_34 = arith.constant dense<0.000000e+00> : vector<128x4xf32>
    %77 = tpu.matmul %74, %76, %cst_34 {dimension_numbers = #tpu.dot_dimension_numbers<[1], [0], [0], [1], [0, 0, 1, 1], [], []>} : vector<128x12xbf16>, vector<12x4xbf16>, vector<128x4xf32> -> vector<128x4xf32>
    %78 = arith.addf %68, %77 : vector<128x4xf32>
    %79 = vector.extract_strided_slice %57 {offsets = [2, 0, 0], sizes = [8, 26, 4], strides = [1, 1, 1]} : vector<10x26x4xbf16> to vector<8x26x4xbf16>
    %80 = vector.extract_strided_slice %79 {offsets = [0, 7, 0], sizes = [8, 16, 4], strides = [1, 1, 1]} : vector<8x26x4xbf16> to vector<8x16x4xbf16>
    %81 = vector.extract_strided_slice %79 {offsets = [0, 8, 0], sizes = [8, 16, 4], strides = [1, 1, 1]} : vector<8x26x4xbf16> to vector<8x16x4xbf16>
    %82 = vector.extract_strided_slice %79 {offsets = [0, 9, 0], sizes = [8, 16, 4], strides = [1, 1, 1]} : vector<8x26x4xbf16> to vector<8x16x4xbf16>
    %83 = tpu.concatenate %80, %81, %82 in 2 : vector<8x16x4xbf16>, vector<8x16x4xbf16>, vector<8x16x4xbf16> -> vector<8x16x12xbf16>
    %84 = vector.shape_cast %83 : vector<8x16x12xbf16> to vector<128x12xbf16>
    %c2_35 = arith.constant 2 : index
    %c0_36 = arith.constant 0 : index
    %c0_37 = arith.constant 0 : index
    %85 = vector.load %arg6[%c2_35, %c0_36, %c0_37] : memref<3x12x4xbf16, #tpu.memory_space<vmem>>, vector<1x12x4xbf16>
    %86 = vector.shape_cast %85 : vector<1x12x4xbf16> to vector<12x4xbf16>
    %cst_38 = arith.constant dense<0.000000e+00> : vector<128x4xf32>
    %87 = tpu.matmul %84, %86, %cst_38 {dimension_numbers = #tpu.dot_dimension_numbers<[1], [0], [0], [1], [0, 0, 1, 1], [], []>} : vector<128x12xbf16>, vector<12x4xbf16>, vector<128x4xf32> -> vector<128x4xf32>
    %88 = arith.addf %78, %87 : vector<128x4xf32>
    %c0_39 = arith.constant 0 : index
    %c0_40 = arith.constant 0 : index
    %89 = vector.load %arg7[%c0_39, %c0_40] : memref<1x4xf32, #tpu.memory_space<vmem>>, vector<1x4xf32>
    %90 = vector.broadcast %89 : vector<1x4xf32> to vector<128x4xf32>
    %91 = arith.addf %88, %90 : vector<128x4xf32>
    %cst_41 = arith.constant 0.000000e+00 : f32
    %92 = vector.broadcast %cst_41 : f32 to vector<128x4xf32>
    %93 = arith.cmpf ogt, %91, %92 : vector<128x4xf32>
    %c0_42 = arith.constant 0 : index
    %c0_43 = arith.constant 0 : index
    %94 = vector.load %arg8[%c0_42, %c0_43] : memref<1x4xf32, #tpu.memory_space<vmem>>, vector<1x4xf32>
    %95 = vector.broadcast %94 : vector<1x4xf32> to vector<128x4xf32>
    %96 = arith.mulf %95, %91 : vector<128x4xf32>
    %97 = arith.select %93, %91, %96 : vector<128x4xi1>, vector<128x4xf32>
    %c0_44 = arith.constant 0 : index
    %98 = arith.index_cast %1 : i32 to index
    %c0_45 = arith.constant 0 : index
    %c0_46 = arith.constant 0 : index
    %99 = vector.load %arg2[%c0_44, %98, %c0_45, %c0_46] : memref<1x16x16x4xf32, #tpu.memory_space<vmem>>, vector<1x8x16x4xf32>
    %100 = vector.shape_cast %99 : vector<1x8x16x4xf32> to vector<8x16x4xf32>
    %101 = vector.shape_cast %97 : vector<128x4xf32> to vector<8x16x4xf32>
    %102 = arith.addf %100, %101 : vector<8x16x4xf32>
    %103 = vector.shape_cast %102 : vector<8x16x4xf32> to vector<8x64xf32>
    %c0_47 = arith.constant 0 : index
    %c0_48 = arith.constant 0 : index
    %c0_49 = arith.constant 0 : index
    %104 = vector.load %arg9[%c0_47, %c0_48, %c0_49] : memref<1x8x64xf32, #tpu.memory_space<vmem>>, vector<1x8x64xf32>
    %105 = vector.shape_cast %104 : vector<1x8x64xf32> to vector<8x64xf32>
    %106 = vector.shape_cast %103 : vector<8x64xf32> to vector<1x8x64xf32>
    tpu.vector_store %arg9[%c0_47, %c0_48, %c0_49], %106 {strides = array<i32>} : memref<1x8x64xf32, #tpu.memory_space<vmem>>, vector<1x8x64xf32>,
    return
  }
  func.func @transform_0(%arg0: i32, %arg1: i32) -> (i32, i32, i32, i32) {
    %c0_i32 = arith.constant 0 : i32
    %c0_i32_0 = arith.constant 0 : i32
    %c0_i32_1 = arith.constant 0 : i32
    %c0_i32_2 = arith.constant 0 : i32
    return %arg0, %c0_i32, %c0_i32_0, %c0_i32_1 : i32, i32, i32, i32
  }
  func.func @transform_1(%arg0: i32, %arg1: i32) -> (i32, i32, i32) {
    %c0_i32 = arith.constant 0 : i32
    %c0_i32_0 = arith.constant 0 : i32
    %c0_i32_1 = arith.constant 0 : i32
    %c0_i32_2 = arith.constant 0 : i32
    return %c0_i32, %c0_i32_0, %c0_i32_1 : i32, i32, i32
  }
  func.func @transform_2(%arg0: i32, %arg1: i32) -> (i32, i32) {
    %c0_i32 = arith.constant 0 : i32
    %c0_i32_0 = arith.constant 0 : i32
    %c0_i32_1 = arith.constant 0 : i32
    return %c0_i32, %c0_i32_0 : i32, i32
  }
  func.func @transform_3(%arg0: i32, %arg1: i32) -> (i32, i32) {
    %c0_i32 = arith.constant 0 : i32
    %c0_i32_0 = arith.constant 0 : i32
    %c0_i32_1 = arith.constant 0 : i32
    return %c0_i32, %c0_i32_0 : i32, i32
  }
  func.func @transform_4(%arg0: i32, %arg1: i32) -> (i32, i32, i32) {
    %c0_i32 = arith.constant 0 : i32
    %c0_i32_0 = arith.constant 0 : i32
    %c0_i32_1 = arith.constant 0 : i32
    %c0_i32_2 = arith.constant 0 : i32
    return %c0_i32, %c0_i32_0, %c0_i32_1 : i32, i32, i32
  }
  func.func @transform_5(%arg0: i32, %arg1: i32) -> (i32, i32) {
    %c0_i32 = arith.constant 0 : i32
    %c0_i32_0 = arith.constant 0 : i32
    %c0_i32_1 = arith.constant 0 : i32
    return %c0_i32, %c0_i32_0 : i32, i32
  }
  func.func @transform_6(%arg0: i32, %arg1: i32) -> (i32, i32) {
    %c0_i32 = arith.constant 0 : i32
    %c0_i32_0 = arith.constant 0 : i32
    %c0_i32_1 = arith.constant 0 : i32
    return %c0_i32, %c0_i32_0 : i32, i32
  }
  func.func @transform_7(%arg0: i32, %arg1: i32) -> (i32, i32, i32) {
    %c0_i32 = arith.constant 0 : i32
    %c0_i32_0 = arith.constant 0 : i32
    return %arg0, %arg1, %c0_i32 : i32, i32, i32
  }
}

</mosaic_0001>

<llo_original>
// kernel: sphere_res_block.1
$region0: #{sphere_res_block.1}
  #allocation0 [shape = 'u32[]', space=smem, size = 0x4, offset = 0x4, fixed_abs, tag = 'smem constant byte address 0x4 - core index']
  #allocation1 [shape = 'u32[144,128]{1,0:T(1,128)}', space=vmem, size = 0x12000, scoped, tag = 'internal scratch']
  #allocation2 [shape = 'bf16[20,26,4]{2,1,0:T(8,128)(2,1)}', space=vmem, size = 0x28000, scoped, tag = 'scratch operand']
  #allocation3 [shape = 'bf16[10,26,4]{2,1,0:T(8,128)(2,1)}', space=vmem, size = 0x14000, scoped, tag = 'scratch operand']
  %s0 = inlined_call_operand.vmem [shape: f32[2,16,16,4], index: 0, kind: input, shape index: {}]
  %s1 = inlined_call_operand.vmem [shape: bf16[3,12,4], index: 1, kind: input, shape index: {}]
  %s2 = inlined_call_operand.vmem [shape: f32[1,4], index: 2, kind: input, shape index: {}]
  %s3 = inlined_call_operand.vmem [shape: f32[1,4], index: 3, kind: input, shape index: {}]
  %s4 = inlined_call_operand.vmem [shape: bf16[3,12,4], index: 4, kind: input, shape index: {}]
  %s5 = inlined_call_operand.vmem [shape: f32[1,4], index: 5, kind: input, shape index: {}]
  %s6 = inlined_call_operand.vmem [shape: f32[1,4], index: 6, kind: input, shape index: {}]
  %s7 = inlined_call_operand.vmem [shape: f32[2,16,64], index: 7, kind: output, shape index: {}]
  %s8 = sld [smem:[#allocation0]]
  $region73: #{sphere_res_block.1} parent=0
    _
  %s10 = ssub.s32 1, %s8
  %s11 = scalar_select 0, %s10, %s8
  loop: start=0, step=1, limit=6
  $region2: #{sphere_res_block.1} parent=0 // loop_pre_header
    _
  $region3: #{sphere_res_block.1} parent=0 // loop_header
    %s13 = sphi 0, %s17
    %p14 = scmp.ge.s32.totalorder %s13, 6
    %s20 = sphi 0, %s32
    %s21 = sphi 0, %s28
    %s22 = sphi 0, %s20
    %s23 = sphi 0, %s21
    %s24 = sphi 0, %s22
    %s25 = sphi 0, %s23
    %s35 = sphi 0, %s37
    %s38 = sphi 0, %s35
    %s39 = sphi 0, %s38
    %s55 = sphi 0, %s39
    %s59 = sphi 0, %s59
    %s61 = sphi 0, %s59
    %s62 = sphi 0, %s61
    %s76 = sphi 0, %s62
    %s80 = sphi 0, %s80
    %s82 = sphi 0, %s80
    %s83 = sphi 0, %s82
    %s97 = sphi 0, %s83
    %s101 = sphi 0, %s101
    %s103 = sphi 0, %s101
    %s104 = sphi 0, %s103
    %s118 = sphi 0, %s104
    %s122 = sphi 0, %s122
    %s124 = sphi 0, %s122
    %s125 = sphi 0, %s124
    %s139 = sphi 0, %s125
    %s143 = sphi 0, %s143
    %s145 = sphi 0, %s143
    %s146 = sphi 0, %s145
    %s160 = sphi 0, %s146
    %s164 = sphi 0, %s164
    %s166 = sphi 0, %s164
    %s167 = sphi 0, %s166
    %s181 = sphi 0, %s167
    %s189 = sphi 0, %s191
    %s192 = sphi 0, %s189
    %s193 = sphi 0, %s192
    %s209 = sphi 0, %s193
  $region4: #{sphere_res_block.1} parent=0 // loop_header_branch
    %16 = sbr.rel (%p14) target = $region8
  $region5: #{sphere_res_block.1} parent=0 // loop_body
    %s18 = ssub.s32 %s13, 1
    %s19 = ssub.s32 %s13, 2
    %s26 = sadd.s32 1, %s21
    %p27 = scmp.ge.s32.totalorder %s26, 2
    %s28 = scalar_select %p27, 0, %s26
    %s29 = sadd.s32 1, %s20
    %s30 = scalar_select %p27, %s29, %s20
    %p31 = scmp.ge.s32.totalorder %s30, 2
    %s32 = scalar_select %p31, 0, %s30
    %s33 = ssub.s32 %s20, %s32
    %p34 = scmp.eq.s32.totalorder %s33, 0
    %s36 = sadd.s32 %s35, 1
    %s37 = scalar_select %p34, %s35, %s36
    %p40 = pneg %p34
    %p41 = scmp.eq.s32.totalorder %s13, 3
    %p42 = por %p40, %p41
    %p43 = scmp.ne.s32.totalorder %s35, %s38
    %p44 = scmp.eq.s32.totalorder %s13, 0
    %p45 = por %p43, %p44
    %p46 = scmp.ne.s32.totalorder %s35, %s38
    %p47 = scmp.eq.s32.totalorder %s18, 3
    %p48 = por %p46, %p47
    %p49 = scmp.ne.s32.totalorder %s38, %s39
    %p50 = scmp.eq.s32.totalorder %s18, 0
    %p51 = por %p49, %p50
    %p52 = scmp.ne.s32.totalorder %s38, %s39
    %p53 = scmp.eq.s32.totalorder %s19, 3
    %p54 = por %p52, %p53
    %p56 = scmp.ne.s32.totalorder %s39, %s55
    %p57 = scmp.eq.s32.totalorder %s19, 0
    %p58 = por %p56, %p57
    %s60 = sadd.s32 %s59, 1
    %p63 = scmp.eq.s32.totalorder %s13, 3
    %p64 = scmp.ne.s32.totalorder %s59, %s61
    %p65 = scmp.eq.s32.totalorder %s13, 0
    %p66 = por %p64, %p65
    %p67 = scmp.ne.s32.totalorder %s59, %s61
    %p68 = scmp.eq.s32.totalorder %s18, 3
    %p69 = por %p67, %p68
    %p70 = scmp.ne.s32.totalorder %s61, %s62
    %p71 = scmp.eq.s32.totalorder %s18, 0
    %p72 = por %p70, %p71
    %p73 = scmp.ne.s32.totalorder %s61, %s62
    %p74 = scmp.eq.s32.totalorder %s19, 3
    %p75 = por %p73, %p74
    %p77 = scmp.ne.s32.totalorder %s62, %s76
    %p78 = scmp.eq.s32.totalorder %s19, 0
    %p79 = por %p77, %p78
    %s81 = sadd.s32 %s80, 1
    %p84 = scmp.eq.s32.totalorder %s13, 3
    %p85 = scmp.ne.s32.totalorder %s80, %s82
    %p86 = scmp.eq.s32.totalorder %s13, 0
    %p87 = por %p85, %p86
    %p88 = scmp.ne.s32.totalorder %s80, %s82
    %p89 = scmp.eq.s32.totalorder %s18, 3
    %p90 = por %p88, %p89
    %p91 = scmp.ne.s32.totalorder %s82, %s83
    %p92 = scmp.eq.s32.totalorder %s18, 0
    %p93 = por %p91, %p92
    %p94 = scmp.ne.s32.totalorder %s82, %s83
    %p95 = scmp.eq.s32.totalorder %s19, 3
    %p96 = por %p94, %p95
    %p98 = scmp.ne.s32.totalorder %s83, %s97
    %p99 = scmp.eq.s32.totalorder %s19, 0
    %p100 = por %p98, %p99
    %s102 = sadd.s32 %s101, 1
    %p105 = scmp.eq.s32.totalorder %s13, 3
    %p106 = scmp.ne.s32.totalorder %s101, %s103
    %p107 = scmp.eq.s32.totalorder %s13, 0
    %p108 = por %p106, %p107
    %p109 = scmp.ne.s32.totalorder %s101, %s103
    %p110 = scmp.eq.s32.totalorder %s18, 3
    %p111 = por %p109, %p110
    %p112 = scmp.ne.s32.totalorder %s103, %s104
    %p113 = scmp.eq.s32.totalorder %s18, 0
    %p114 = por %p112, %p113
    %p115 = scmp.ne.s32.totalorder %s103, %s104
    %p116 = scmp.eq.s32.totalorder %s19, 3
    %p117 = por %p115, %p116
    %p119 = scmp.ne.s32.totalorder %s104, %s118
    %p120 = scmp.eq.s32.totalorder %s19, 0
    %p121 = por %p119, %p120
    %s123 = sadd.s32 %s122, 1
    %p126 = scmp.eq.s32.totalorder %s13, 3
    %p127 = scmp.ne.s32.totalorder %s122, %s124
    %p128 = scmp.eq.s32.totalorder %s13, 0
    %p129 = por %p127, %p128
    %p130 = scmp.ne.s32.totalorder %s122, %s124
    %p131 = scmp.eq.s32.totalorder %s18, 3
    %p132 = por %p130, %p131
    %p133 = scmp.ne.s32.totalorder %s124, %s125
    %p134 = scmp.eq.s32.totalorder %s18, 0
    %p135 = por %p133, %p134
    %p136 = scmp.ne.s32.totalorder %s124, %s125
    %p137 = scmp.eq.s32.totalorder %s19, 3
    %p138 = por %p136, %p137
    %p140 = scmp.ne.s32.totalorder %s125, %s139
    %p141 = scmp.eq.s32.totalorder %s19, 0
    %p142 = por %p140, %p141
    %s144 = sadd.s32 %s143, 1
    %p147 = scmp.eq.s32.totalorder %s13, 3
    %p148 = scmp.ne.s32.totalorder %s143, %s145
    %p149 = scmp.eq.s32.totalorder %s13, 0
    %p150 = por %p148, %p149
    %p151 = scmp.ne.s32.totalorder %s143, %s145
    %p152 = scmp.eq.s32.totalorder %s18, 3
    %p153 = por %p151, %p152
    %p154 = scmp.ne.s32.totalorder %s145, %s146
    %p155 = scmp.eq.s32.totalorder %s18, 0
    %p156 = por %p154, %p155
    %p157 = scmp.ne.s32.totalorder %s145, %s146
    %p158 = scmp.eq.s32.totalorder %s19, 3
    %p159 = por %p157, %p158
    %p161 = scmp.ne.s32.totalorder %s146, %s160
    %p162 = scmp.eq.s32.totalorder %s19, 0
    %p163 = por %p161, %p162
    %s165 = sadd.s32 %s164, 1
    %p168 = scmp.eq.s32.totalorder %s13, 3
    %p169 = scmp.ne.s32.totalorder %s164, %s166
    %p170 = scmp.eq.s32.totalorder %s13, 0
    %p171 = por %p169, %p170
    %p172 = scmp.ne.s32.totalorder %s164, %s166
    %p173 = scmp.eq.s32.totalorder %s18, 3
    %p174 = por %p172, %p173
    %p175 = scmp.ne.s32.totalorder %s166, %s167
    %p176 = scmp.eq.s32.totalorder %s18, 0
    %p177 = por %p175, %p176
    %p178 = scmp.ne.s32.totalorder %s166, %s167
    %p179 = scmp.eq.s32.totalorder %s19, 3
    %p180 = por %p178, %p179
    %p182 = scmp.ne.s32.totalorder %s167, %s181
    %p183 = scmp.eq.s32.totalorder %s19, 0
    %p184 = por %p182, %p183
    %s185 = ssub.s32 %s20, %s32
    %s186 = ssub.s32 %s21, %s28
    %s187 = sor.u32 %s185, %s186
    %p188 = scmp.eq.s32.totalorder %s187, 0
    %s190 = sadd.s32 %s189, 1
    %s191 = scalar_select %p188, %s189, %s190
    %p194 = pneg %p188
    %p195 = scmp.eq.s32.totalorder %s13, 3
    %p196 = por %p194, %p195
    %p197 = scmp.ne.s32.totalorder %s189, %s192
    %p198 = scmp.eq.s32.totalorder %s13, 0
    %p199 = por %p197, %p198
    %p200 = scmp.ne.s32.totalorder %s189, %s192
    %p201 = scmp.eq.s32.totalorder %s18, 3
    %p202 = por %p200, %p201
    %p203 = scmp.ne.s32.totalorder %s192, %s193
    %p204 = scmp.eq.s32.totalorder %s18, 0
    %p205 = por %p203, %p204
    %p206 = scmp.ne.s32.totalorder %s192, %s193
    %p207 = scmp.eq.s32.totalorder %s19, 3
    %p208 = por %p206, %p207
    %p210 = scmp.ne.s32.totalorder %s193, %s209
    %p211 = scmp.eq.s32.totalorder %s19, 0
    %p212 = por %p210, %p211
    %p213 = scmp.le.s32.totalorder 1, %s13
    %p214 = scmp.lt.s32.totalorder %s13, 5
    %p215 = pnand %p213, %p214
    %p216 = pneg %p215
    // Predicated region
    $region9: #{sphere_res_block.1} parent=5 // pred_check
      _
    $region10: #{sphere_res_block.1} parent=5 // pred_check_branch
      %218 = sbr.rel (%p215) target = $region12
    $region11: #{sphere_res_block.1} parent=5 // pred_region
      %s219 = ssub.s32 %s13, 1
      // Predicated region
      $region13: #{sphere_res_block.1} parent=11 // pred_check
        %p220 = pneg %p72
      $region14: #{sphere_res_block.1} parent=11 // pred_check_branch
        %222 = sbr.rel (%p220) target = $region16
      $region15: #{sphere_res_block.1} parent=11 // pred_region
        _
      $region16: #{sphere_res_block.1} parent=11 // pred_fallthru
        _
      // Predicated region
      $region17: #{sphere_res_block.1} parent=11 // pred_check
        %p223 = pneg %p93
      $region18: #{sphere_res_block.1} parent=11 // pred_check_branch
        %225 = sbr.rel (%p223) target = $region20
      $region19: #{sphere_res_block.1} parent=11 // pred_region
        _
      $region20: #{sphere_res_block.1} parent=11 // pred_fallthru
        _
      // Predicated region
      $region21: #{sphere_res_block.1} parent=11 // pred_check
        %p226 = pneg %p114
      $region22: #{sphere_res_block.1} parent=11 // pred_check_branch
        %228 = sbr.rel (%p226) target = $region24
      $region23: #{sphere_res_block.1} parent=11 // pred_region
        _
      $region24: #{sphere_res_block.1} parent=11 // pred_fallthru
        _
      // Predicated region
      $region25: #{sphere_res_block.1} parent=11 // pred_check
        %p229 = pneg %p135
      $region26: #{sphere_res_block.1} parent=11 // pred_check_branch
        %231 = sbr.rel (%p229) target = $region28
      $region27: #{sphere_res_block.1} parent=11 // pred_region
        _
      $region28: #{sphere_res_block.1} parent=11 // pred_fallthru
        _
      // Predicated region
      $region29: #{sphere_res_block.1} parent=11 // pred_check
        %p232 = pneg %p156
      $region30: #{sphere_res_block.1} parent=11 // pred_check_branch
        %234 = sbr.rel (%p232) target = $region32
      $region31: #{sphere_res_block.1} parent=11 // pred_region
        _
      $region32: #{sphere_res_block.1} parent=11 // pred_fallthru
        _
      // Predicated region
      $region33: #{sphere_res_block.1} parent=11 // pred_check
        %p235 = pneg %p177
      $region34: #{sphere_res_block.1} parent=11 // pred_check_branch
        %237 = sbr.rel (%p235) target = $region36
      $region35: #{sphere_res_block.1} parent=11 // pred_region
        _
      $region36: #{sphere_res_block.1} parent=11 // pred_fallthru
        _
    $region12: #{sphere_res_block.1} parent=5 // pred_fallthru
      _
    %p238 = scmp.lt.s32.totalorder %s13, 4
    // Predicated region
    $region37: #{sphere_res_block.1} parent=5 // pred_check
      %p239 = pneg %p238
    $region38: #{sphere_res_block.1} parent=5 // pred_check_branch
      %241 = sbr.rel (%p239) target = $region40
    $region39: #{sphere_res_block.1} parent=5 // pred_region
      // Predicated region
      $region41: #{sphere_res_block.1} parent=39 // pred_check
        %p242 = pneg %p45
      $region42: #{sphere_res_block.1} parent=39 // pred_check_branch
        %244 = sbr.rel (%p242) target = $region44
      $region43: #{sphere_res_block.1} parent=39 // pred_region
        %p245 = scmp.lt.s32.totalorder %s20, 1
        %s246 = scalar_select %p245, %s20, 1
        %s247 = smul.addr %s246, 32
        %s248 = smul.addr %s247, 8
        %s249 = scalar_lea.vmem %s0, %s248
      $region44: #{sphere_res_block.1} parent=39 // pred_fallthru
        _
    $region40: #{sphere_res_block.1} parent=5 // pred_fallthru
      _
    %p250 = scmp.le.s32.totalorder 1, %s13
    %p251 = scmp.lt.s32.totalorder %s13, 5
    %p252 = pnand %p250, %p251
    %p253 = pneg %p252
    // Predicated region
    $region45: #{sphere_res_block.1} parent=5 // pred_check
      _
    $region46: #{sphere_res_block.1} parent=5 // pred_check_branch
      %255 = sbr.rel (%p252) target = $region48
    $region47: #{sphere_res_block.1} parent=5 // pred_region
      %s256 = ssub.s32 %s13, 1
      %p257 = scmp.lt.s32.totalorder %s22, 1
      %s258 = scalar_select %p257, %s22, 1
      %s259 = smul.addr %s258, 32
      %s260 = smul.addr %s259, 8
      %s261 = scalar_lea.vmem %s0, %s260
      %p262 = pneg %p51
      %p263 = pneg %p48
      %p264 = pneg %p72
      %p265 = pneg %p69
      %p266 = pneg %p93
      %p267 = pneg %p90
      %p268 = pneg %p114
      %p269 = pneg %p111
      %p270 = pneg %p135
      %p271 = pneg %p132
      %p272 = pneg %p156
      %p273 = pneg %p153
      %p274 = pneg %p177
      %p275 = pneg %p174
      %p276 = pneg %p205
      %p277 = pneg %p202
      %p278 = scmp.lt.s32.totalorder %s22, 1
      %s279 = scalar_select %p278, %s22, 1
      %p280 = scmp.lt.s32.totalorder %s23, 1
      %s281 = scalar_select %p280, %s23, 1
      %s282 = smul.addr %s279, 2
      %s283 = sadd.s32 %s281, %s282
      %s284 = smul.addr %s283, 8
      %s285 = scalar_lea.vmem %s7, %s284
      %p286 = scmp.lt.s32.totalorder %s22, 1
      %s287 = scalar_select %p286, %s22, 1
      %s288 = smul.addr %s287, 32
      %s289 = smul.addr %s288, 8
      %s290 = scalar_lea.vmem %s0, %s289
      %p291 = scmp.lt.s32.totalorder %s22, 1
      %s292 = scalar_select %p291, %s22, 1
      %p293 = scmp.lt.s32.totalorder %s23, 1
      %s294 = scalar_select %p293, %s23, 1
      %s295 = smul.addr %s292, 2
      %s296 = sadd.s32 %s294, %s295
      %s297 = smul.addr %s296, 8
      %s298 = scalar_lea.vmem %s7, %s297
      %s300 = smul.u32 %s23, 8
      %p301 = scmp.eq.s32.totalorder %s23, 0
      // Predicated region
      $region49: #{sphere_res_block.1} parent=47 // pred_check
        %p302 = pneg %p301
      $region50: #{sphere_res_block.1} parent=47 // pred_check_branch
        %304 = sbr.rel (%p302) target = $region52
      $region51: #{sphere_res_block.1} parent=47 // pred_region
        %vm305 = vcmask 27648
        %306 = vst.msk [vmem:[#allocation2] sm:$0xf] %vm305, 0
        %307 = vst.msk [vmem:[#allocation2 + $0x4] sm:$0xf] %vm305, 0
        %308 = vst.msk [vmem:[#allocation2 + $0x8] sm:$0xf] %vm305, 0
        %vm309 = vcmask 24576
        %310 = vst.msk [vmem:[#allocation2 + $0xc] sm:$0x1] %vm309, 0
        %311 = vst.msk [vmem:[#allocation2 + $0x10] sm:$0xf] %vm305, 0
        %312 = vst.msk [vmem:[#allocation2 + $0x14] sm:$0xf] %vm305, 0
        %313 = vst.msk [vmem:[#allocation2 + $0x18] sm:$0xf] %vm305, 0
        %314 = vst.msk [vmem:[#allocation2 + $0x1c] sm:$0x1] %vm309, 0
        %s315 = scalar_lea.vmem [#allocation2], 288
        %316 = vst.msk [vmem:[%s315] sm:$0xf] %vm305, 0
        %317 = vst.msk [vmem:[%s315 + $0x4] sm:$0xf] %vm305, 0
        %318 = vst.msk [vmem:[%s315 + $0x8] sm:$0xf] %vm305, 0
        %319 = vst.msk [vmem:[%s315 + $0xc] sm:$0x1] %vm309, 0
        %320 = vst.msk [vmem:[%s315 + $0x10] sm:$0xf] %vm305, 0
        %321 = vst.msk [vmem:[%s315 + $0x14] sm:$0xf] %vm305, 0
        %322 = vst.msk [vmem:[%s315 + $0x18] sm:$0xf] %vm305, 0
        %323 = vst.msk [vmem:[%s315 + $0x1c] sm:$0x1] %vm309, 0
        %vm324 = vcmask 27651
        %vm325 = vsmask.f32 7950
        %vm326 = vmand %vm324, %vm325
        %v327 = vld [vmem:[#allocation2] sm:$0x8]
        %v328 = vsel %vm326, 0, %v327
        %329 = vst [vmem:[#allocation2] sm:$0x8] %v328
        %v330 = vld [vmem:[#allocation2 + $0x10] sm:$0x8]
        %v331 = vsel %vm326, 0, %v330
        %332 = vst [vmem:[#allocation2 + $0x10] sm:$0x8] %v331
        %v333 = vld [vmem:[#allocation2 + $0x20] sm:$0x8]
        %v334 = vsel %vm326, 0, %v333
        %335 = vst [vmem:[#allocation2 + $0x20] sm:$0x8] %v334
        %v336 = vld [vmem:[#allocation2 + $0x30] sm:$0x8]
        %v337 = vsel %vm326, 0, %v336
        %338 = vst [vmem:[#allocation2 + $0x30] sm:$0x8] %v337
        %v339 = vld [vmem:[#allocation2 + $0x40] sm:$0x8]
        %v340 = vsel %vm326, 0, %v339
        %341 = vst [vmem:[#allocation2 + $0x40] sm:$0x8] %v340
        %v342 = vld [vmem:[#allocation2 + $0x50] sm:$0x8]
        %v343 = vsel %vm326, 0, %v342
        %344 = vst [vmem:[#allocation2 + $0x50] sm:$0x8] %v343
        %v345 = vld [vmem:[#allocation2 + $0x60] sm:$0x8]
        %v346 = vsel %vm326, 0, %v345
        %347 = vst [vmem:[#allocation2 + $0x60] sm:$0x8] %v346
        %v348 = vld [vmem:[#allocation2 + $0x70] sm:$0x8]
        %v349 = vsel %vm326, 0, %v348
        %350 = vst [vmem:[#allocation2 + $0x70] sm:$0x8] %v349
        %v351 = vld [vmem:[#allocation2 + $0x80] sm:$0x8]
        %v352 = vsel %vm326, 0, %v351
        %353 = vst [vmem:[#allocation2 + $0x80] sm:$0x8] %v352
        %v354 = vld [vmem:[#allocation2 + $0x90] sm:$0x8]
        %v355 = vsel %vm326, 0, %v354
        %356 = vst [vmem:[#allocation2 + $0x90] sm:$0x8] %v355
        %v357 = vld [vmem:[#allocation2 + $0xa0] sm:$0x8]
        %v358 = vsel %vm326, 0, %v357
        %359 = vst [vmem:[#allocation2 + $0xa0] sm:$0x8] %v358
        %v360 = vld [vmem:[#allocation2 + $0xb0] sm:$0x8]
        %v361 = vsel %vm326, 0, %v360
        %362 = vst [vmem:[#allocation2 + $0xb0] sm:$0x8] %v361
        %v363 = vld [vmem:[#allocation2 + $0xc0] sm:$0x8]
        %v364 = vsel %vm326, 0, %v363
        %365 = vst [vmem:[#allocation2 + $0xc0] sm:$0x8] %v364
        %v366 = vld [vmem:[#allocation2 + $0xd0] sm:$0x8]
        %v367 = vsel %vm326, 0, %v366
        %368 = vst [vmem:[#allocation2 + $0xd0] sm:$0x8] %v367
        %v369 = vld [vmem:[#allocation2 + $0xe0] sm:$0x8]
        %v370 = vsel %vm326, 0, %v369
        %371 = vst [vmem:[#allocation2 + $0xe0] sm:$0x8] %v370
        %v372 = vld [vmem:[#allocation2 + $0xf0] sm:$0x8]
        %v373 = vsel %vm326, 0, %v372
        %374 = vst [vmem:[#allocation2 + $0xf0] sm:$0x8] %v373
        %v375 = vld [vmem:[#allocation2 + $0x100] sm:$0x8]
        %v376 = vsel %vm326, 0, %v375
        %377 = vst [vmem:[#allocation2 + $0x100] sm:$0x8] %v376
        %v378 = vld [vmem:[#allocation2 + $0x110] sm:$0x8]
        %v379 = vsel %vm326, 0, %v378
        %380 = vst [vmem:[#allocation2 + $0x110] sm:$0x8] %v379
        %v381 = vld [vmem:[#allocation2 + $0x120] sm:$0x8]
        %v382 = vsel %vm326, 0, %v381
        %383 = vst [vmem:[#allocation2 + $0x120] sm:$0x8] %v382
        %v384 = vld [vmem:[#allocation2 + $0x130] sm:$0x8]
        %v385 = vsel %vm326, 0, %v384
        %386 = vst [vmem:[#allocation2 + $0x130] sm:$0x8] %v385
        %vm387 = vcmask 24576
        %vm388 = vsmask.f32 256
        %vm389 = vmand %vm387, %vm388
        %v390 = vld [vmem:[#allocation2 + $0xc] sm:$0x1]
        %v391 = vsel %vm389, 0, %v390
        %392 = vst [vmem:[#allocation2 + $0xc] sm:$0x1] %v391
        %v393 = vld [vmem:[#allocation2 + $0x1c] sm:$0x1]
        %v394 = vsel %vm389, 0, %v393
        %395 = vst [vmem:[#allocation2 + $0x1c] sm:$0x1] %v394
        %v396 = vld [vmem:[#allocation2 + $0x2c] sm:$0x1]
        %v397 = vsel %vm389, 0, %v396
        %398 = vst [vmem:[#allocation2 + $0x2c] sm:$0x1] %v397
        %v399 = vld [vmem:[#allocation2 + $0x3c] sm:$0x1]
        %v400 = vsel %vm389, 0, %v399
        %401 = vst [vmem:[#allocation2 + $0x3c] sm:$0x1] %v400
        %v402 = vld [vmem:[#allocation2 + $0x4c] sm:$0x1]
        %v403 = vsel %vm389, 0, %v402
        %404 = vst [vmem:[#allocation2 + $0x4c] sm:$0x1] %v403
        %v405 = vld [vmem:[#allocation2 + $0x5c] sm:$0x1]
        %v406 = vsel %vm389, 0, %v405
        %407 = vst [vmem:[#allocation2 + $0x5c] sm:$0x1] %v406
        %v408 = vld [vmem:[#allocation2 + $0x6c] sm:$0x1]
        %v409 = vsel %vm389, 0, %v408
        %410 = vst [vmem:[#allocation2 + $0x6c] sm:$0x1] %v409
        %v411 = vld [vmem:[#allocation2 + $0x7c] sm:$0x1]
        %v412 = vsel %vm389, 0, %v411
        %413 = vst [vmem:[#allocation2 + $0x7c] sm:$0x1] %v412
        %v414 = vld [vmem:[#allocation2 + $0x8c] sm:$0x1]
        %v415 = vsel %vm389, 0, %v414
        %416 = vst [vmem:[#allocation2 + $0x8c] sm:$0x1] %v415
        %v417 = vld [vmem:[#allocation2 + $0x9c] sm:$0x1]
        %v418 = vsel %vm389, 0, %v417
        %419 = vst [vmem:[#allocation2 + $0x9c] sm:$0x1] %v418
        %v420 = vld [vmem:[#allocation2 + $0xac] sm:$0x1]
        %v421 = vsel %vm389, 0, %v420
        %422 = vst [vmem:[#allocation2 + $0xac] sm:$0x1] %v421
        %v423 = vld [vmem:[#allocation2 + $0xbc] sm:$0x1]
        %v424 = vsel %vm389, 0, %v423
        %425 = vst [vmem:[#allocation2 + $0xbc] sm:$0x1] %v424
        %v426 = vld [vmem:[#allocation2 + $0xcc] sm:$0x1]
        %v427 = vsel %vm389, 0, %v426
        %428 = vst [vmem:[#allocation2 + $0xcc] sm:$0x1] %v427
        %v429 = vld [vmem:[#allocation2 + $0xdc] sm:$0x1]
        %v430 = vsel %vm389, 0, %v429
        %431 = vst [vmem:[#allocation2 + $0xdc] sm:$0x1] %v430
        %v432 = vld [vmem:[#allocation2 + $0xec] sm:$0x1]
        %v433 = vsel %vm389, 0, %v432
        %434 = vst [vmem:[#allocation2 + $0xec] sm:$0x1] %v433
        %v435 = vld [vmem:[#allocation2 + $0xfc] sm:$0x1]
        %v436 = vsel %vm389, 0, %v435
        %437 = vst [vmem:[#allocation2 + $0xfc] sm:$0x1] %v436
        %v438 = vld [vmem:[#allocation2 + $0x10c] sm:$0x1]
        %v439 = vsel %vm389, 0, %v438
        %440 = vst [vmem:[#allocation2 + $0x10c] sm:$0x1] %v439
        %v441 = vld [vmem:[#allocation2 + $0x11c] sm:$0x1]
        %v442 = vsel %vm389, 0, %v441
        %443 = vst [vmem:[#allocation2 + $0x11c] sm:$0x1] %v442
        %v444 = vld [vmem:[#allocation2 + $0x12c] sm:$0x1]
        %v445 = vsel %vm389, 0, %v444
        %446 = vst [vmem:[#allocation2 + $0x12c] sm:$0x1] %v445
        %v447 = vld [vmem:[#allocation2 + $0x13c] sm:$0x1]
        %v448 = vsel %vm389, 0, %v447
        %449 = vst [vmem:[#allocation2 + $0x13c] sm:$0x1] %v448
        %v450 = vld [vmem:[#allocation3] sm:$0x8]
        %v451 = vsel %vm326, 0, %v450
        %452 = vst [vmem:[#allocation3] sm:$0x8] %v451
        %v453 = vld [vmem:[#allocation3 + $0x10] sm:$0x8]
        %v454 = vsel %vm326, 0, %v453
        %455 = vst [vmem:[#allocation3 + $0x10] sm:$0x8] %v454
        %v456 = vld [vmem:[#allocation3 + $0x20] sm:$0x8]
        %v457 = vsel %vm326, 0, %v456
        %458 = vst [vmem:[#allocation3 + $0x20] sm:$0x8] %v457
        %v459 = vld [vmem:[#allocation3 + $0x30] sm:$0x8]
        %v460 = vsel %vm326, 0, %v459
        %461 = vst [vmem:[#allocation3 + $0x30] sm:$0x8] %v460
        %v462 = vld [vmem:[#allocation3 + $0x40] sm:$0x8]
        %v463 = vsel %vm326, 0, %v462
        %464 = vst [vmem:[#allocation3 + $0x40] sm:$0x8] %v463
        %v465 = vld [vmem:[#allocation3 + $0x50] sm:$0x8]
        %v466 = vsel %vm326, 0, %v465
        %467 = vst [vmem:[#allocation3 + $0x50] sm:$0x8] %v466
        %v468 = vld [vmem:[#allocation3 + $0x60] sm:$0x8]
        %v469 = vsel %vm326, 0, %v468
        %470 = vst [vmem:[#allocation3 + $0x60] sm:$0x8] %v469
        %v471 = vld [vmem:[#allocation3 + $0x70] sm:$0x8]
        %v472 = vsel %vm326, 0, %v471
        %473 = vst [vmem:[#allocation3 + $0x70] sm:$0x8] %v472
        %v474 = vld [vmem:[#allocation3 + $0x80] sm:$0x8]
        %v475 = vsel %vm326, 0, %v474
        %476 = vst [vmem:[#allocation3 + $0x80] sm:$0x8] %v475
        %v477 = vld [vmem:[#allocation3 + $0x90] sm:$0x8]
        %v478 = vsel %vm326, 0, %v477
        %479 = vst [vmem:[#allocation3 + $0x90] sm:$0x8] %v478
        %v480 = vld [vmem:[#allocation3 + $0xc] sm:$0x1]
        %v481 = vsel %vm389, 0, %v480
        %482 = vst [vmem:[#allocation3 + $0xc] sm:$0x1] %v481
        %v483 = vld [vmem:[#allocation3 + $0x1c] sm:$0x1]
        %v484 = vsel %vm389, 0, %v483
        %485 = vst [vmem:[#allocation3 + $0x1c] sm:$0x1] %v484
        %v486 = vld [vmem:[#allocation3 + $0x2c] sm:$0x1]
        %v487 = vsel %vm389, 0, %v486
        %488 = vst [vmem:[#allocation3 + $0x2c] sm:$0x1] %v487
        %v489 = vld [vmem:[#allocation3 + $0x3c] sm:$0x1]
        %v490 = vsel %vm389, 0, %v489
        %491 = vst [vmem:[#allocation3 + $0x3c] sm:$0x1] %v490
        %v492 = vld [vmem:[#allocation3 + $0x4c] sm:$0x1]
        %v493 = vsel %vm389, 0, %v492
        %494 = vst [vmem:[#allocation3 + $0x4c] sm:$0x1] %v493
        %v495 = vld [vmem:[#allocation3 + $0x5c] sm:$0x1]
        %v496 = vsel %vm389, 0, %v495
        %497 = vst [vmem:[#allocation3 + $0x5c] sm:$0x1] %v496
        %v498 = vld [vmem:[#allocation3 + $0x6c] sm:$0x1]
        %v499 = vsel %vm389, 0, %v498
        %500 = vst [vmem:[#allocation3 + $0x6c] sm:$0x1] %v499
        %v501 = vld [vmem:[#allocation3 + $0x7c] sm:$0x1]
        %v502 = vsel %vm389, 0, %v501
        %503 = vst [vmem:[#allocation3 + $0x7c] sm:$0x1] %v502
        %v504 = vld [vmem:[#allocation3 + $0x8c] sm:$0x1]
        %v505 = vsel %vm389, 0, %v504
        %506 = vst [vmem:[#allocation3 + $0x8c] sm:$0x1] %v505
        %v507 = vld [vmem:[#allocation3 + $0x9c] sm:$0x1]
        %v508 = vsel %vm389, 0, %v507
        %509 = vst [vmem:[#allocation3 + $0x9c] sm:$0x1] %v508
        %v510 = vld [vmem:[%s290] sm:$0xff]
        %v511 = vld [vmem:[%s290 + $0x8] sm:$0xff]
        %v512 = vld [vmem:[%s290 + $0x10] sm:$0xff]
        %v513 = vld [vmem:[%s290 + $0x18] sm:$0xff]
        %v514 = vld [vmem:[%s290 + $0x20] sm:$0xff]
        %v515 = vld [vmem:[%s290 + $0x28] sm:$0xff]
        %v516 = vld [vmem:[%s290 + $0x30] sm:$0xff]
        %v517 = vld [vmem:[%s290 + $0x38] sm:$0xff]
        %v518 = vld [vmem:[%s290 + $0x40] sm:$0xff]
        %v519 = vld [vmem:[%s290 + $0x48] sm:$0xff]
        %v520 = vld [vmem:[%s290 + $0x50] sm:$0xff]
        %v521 = vld [vmem:[%s290 + $0x58] sm:$0xff]
        %v522 = vld [vmem:[%s290 + $0x60] sm:$0xff]
        %v523 = vld [vmem:[%s290 + $0x68] sm:$0xff]
        %v524 = vld [vmem:[%s290 + $0x70] sm:$0xff]
        %v525 = vld [vmem:[%s290 + $0x78] sm:$0xff]
        %v526 = vld [vmem:[%s290 + $0x80] sm:$0xff]
        %v527 = vld [vmem:[%s290 + $0x88] sm:$0xff]
        %v528 = vld [vmem:[%s290 + $0x90] sm:$0xff]
        %v529 = vld [vmem:[%s290 + $0x98] sm:$0xff]
        %v530 = vld [vmem:[%s290 + $0xa0] sm:$0xff]
        %v531 = vld [vmem:[%s290 + $0xa8] sm:$0xff]
        %v532 = vld [vmem:[%s290 + $0xb0] sm:$0xff]
        %v533 = vld [vmem:[%s290 + $0xb8] sm:$0xff]
        %v534 = vld [vmem:[%s290 + $0xc0] sm:$0xff]
        %v535 = vld [vmem:[%s290 + $0xc8] sm:$0xff]
        %v536 = vld [vmem:[%s290 + $0xd0] sm:$0xff]
        %v537 = vld [vmem:[%s290 + $0xd8] sm:$0xff]
        %v538 = vld [vmem:[%s290 + $0xe0] sm:$0xff]
        %v539 = vld [vmem:[%s290 + $0xe8] sm:$0xff]
        %v540 = vld [vmem:[%s290 + $0xf0] sm:$0xff]
        %v541 = vld [vmem:[%s290 + $0xf8] sm:$0xff]
        %v542 = vpack.c.bf16 %v511, %v510
        %v543 = vpack.c.bf16 %v513, %v512
        %v544 = vpack.c.bf16 %v515, %v514
        %v545 = vpack.c.bf16 %v517, %v516
        %v546 = vpack.c.bf16 %v519, %v518
        %v547 = vpack.c.bf16 %v521, %v520
        %v548 = vpack.c.bf16 %v523, %v522
        %v549 = vpack.c.bf16 %v525, %v524
        %v550 = vpack.c.bf16 %v527, %v526
        %v551 = vpack.c.bf16 %v529, %v528
        %v552 = vpack.c.bf16 %v531, %v530
        %v553 = vpack.c.bf16 %v533, %v532
        %v554 = vpack.c.bf16 %v535, %v534
        %v555 = vpack.c.bf16 %v537, %v536
        %v556 = vpack.c.bf16 %v539, %v538
        %v557 = vpack.c.bf16 %v541, %v540
        %v574 = vunpack.c.l.b16 %v542
        %v575 = vunpack.c.h.b16 %v542
        %v576 = vunpack.c.l.b16 %v543
        %v577 = vunpack.c.h.b16 %v543
        %v578 = vunpack.c.l.b16 %v544
        %v579 = vunpack.c.h.b16 %v544
        %v580 = vunpack.c.l.b16 %v545
        %v581 = vunpack.c.h.b16 %v545
        %v582 = vunpack.c.l.b16 %v546
        %v583 = vunpack.c.h.b16 %v546
        %v584 = vunpack.c.l.b16 %v547
        %v585 = vunpack.c.h.b16 %v547
        %v586 = vunpack.c.l.b16 %v548
        %v587 = vunpack.c.h.b16 %v548
        %v588 = vunpack.c.l.b16 %v549
        %v589 = vunpack.c.h.b16 %v549
        %v590 = vunpack.c.l.b16 %v550
        %v591 = vunpack.c.h.b16 %v550
        %v592 = vunpack.c.l.b16 %v551
        %v593 = vunpack.c.h.b16 %v551
        %v594 = vunpack.c.l.b16 %v552
        %v595 = vunpack.c.h.b16 %v552
        %v596 = vunpack.c.l.b16 %v553
        %v597 = vunpack.c.h.b16 %v553
        %v598 = vunpack.c.l.b16 %v554
        %v599 = vunpack.c.h.b16 %v554
        %v600 = vunpack.c.l.b16 %v555
        %v601 = vunpack.c.h.b16 %v555
        %v602 = vunpack.c.l.b16 %v556
        %v603 = vunpack.c.h.b16 %v556
        %v604 = vunpack.c.l.b16 %v557
        %v605 = vunpack.c.h.b16 %v557
        %v606 = vpack.c.b16 %v574, %v574
        %v607 = vpack.c.b16 %v575, %v575
        %v608 = vpack.c.b16 %v576, %v576
        %v609 = vpack.c.b16 %v577, %v577
        %v610 = vpack.c.b16 %v578, %v578
        %v611 = vpack.c.b16 %v579, %v579
        %v612 = vpack.c.b16 %v580, %v580
        %v613 = vpack.c.b16 %v581, %v581
        %v614 = vpack.c.b16 %v582, %v582
        %v615 = vpack.c.b16 %v583, %v583
        %v616 = vpack.c.b16 %v584, %v584
        %v617 = vpack.c.b16 %v585, %v585
        %v618 = vpack.c.b16 %v586, %v586
        %v619 = vpack.c.b16 %v587, %v587
        %v620 = vpack.c.b16 %v588, %v588
        %v621 = vpack.c.b16 %v589, %v589
        %v622 = vpack.c.b16 %v590, %v590
        %v623 = vpack.c.b16 %v591, %v591
        %v624 = vpack.c.b16 %v592, %v592
        %v625 = vpack.c.b16 %v593, %v593
        %v626 = vpack.c.b16 %v594, %v594
        %v627 = vpack.c.b16 %v595, %v595
        %v628 = vpack.c.b16 %v596, %v596
        %v629 = vpack.c.b16 %v597, %v597
        %v630 = vpack.c.b16 %v598, %v598
        %v631 = vpack.c.b16 %v599, %v599
        %v632 = vpack.c.b16 %v600, %v600
        %v633 = vpack.c.b16 %v601, %v601
        %v634 = vpack.c.b16 %v602, %v602
        %v635 = vpack.c.b16 %v603, %v603
        %v636 = vpack.c.b16 %v604, %v604
        %v637 = vpack.c.b16 %v605, %v605
        %s670 = scalar_lea.vmem [#allocation2], 32
        %671 = vst.msk [vmem:[%s670 + $0x4] sm:$0xf] %vm305, %v606
        %672 = vst.msk [vmem:[%s670 + $0x8] sm:$0xf] %vm305, %v607
        %673 = vst.msk [vmem:[%s670 + $0x14] sm:$0xf] %vm305, %v608
        %674 = vst.msk [vmem:[%s670 + $0x18] sm:$0xf] %vm305, %v609
        %675 = vst.msk [vmem:[%s670 + $0x24] sm:$0xf] %vm305, %v610
        %676 = vst.msk [vmem:[%s670 + $0x28] sm:$0xf] %vm305, %v611
        %677 = vst.msk [vmem:[%s670 + $0x34] sm:$0xf] %vm305, %v612
        %678 = vst.msk [vmem:[%s670 + $0x38] sm:$0xf] %vm305, %v613
        %679 = vst.msk [vmem:[%s670 + $0x44] sm:$0xf] %vm305, %v614
        %680 = vst.msk [vmem:[%s670 + $0x48] sm:$0xf] %vm305, %v615
        %681 = vst.msk [vmem:[%s670 + $0x54] sm:$0xf] %vm305, %v616
        %682 = vst.msk [vmem:[%s670 + $0x58] sm:$0xf] %vm305, %v617
        %683 = vst.msk [vmem:[%s670 + $0x64] sm:$0xf] %vm305, %v618
        %684 = vst.msk [vmem:[%s670 + $0x68] sm:$0xf] %vm305, %v619
        %685 = vst.msk [vmem:[%s670 + $0x74] sm:$0xf] %vm305, %v620
        %686 = vst.msk [vmem:[%s670 + $0x78] sm:$0xf] %vm305, %v621
        %687 = vst.msk [vmem:[%s670 + $0x84] sm:$0xf] %vm305, %v622
        %688 = vst.msk [vmem:[%s670 + $0x88] sm:$0xf] %vm305, %v623
        %689 = vst.msk [vmem:[%s670 + $0x94] sm:$0xf] %vm305, %v624
        %690 = vst.msk [vmem:[%s670 + $0x98] sm:$0xf] %vm305, %v625
        %691 = vst.msk [vmem:[%s670 + $0xa4] sm:$0xf] %vm305, %v626
        %692 = vst.msk [vmem:[%s670 + $0xa8] sm:$0xf] %vm305, %v627
        %693 = vst.msk [vmem:[%s670 + $0xb4] sm:$0xf] %vm305, %v628
        %694 = vst.msk [vmem:[%s670 + $0xb8] sm:$0xf] %vm305, %v629
        %695 = vst.msk [vmem:[%s670 + $0xc4] sm:$0xf] %vm305, %v630
        %696 = vst.msk [vmem:[%s670 + $0xc8] sm:$0xf] %vm305, %v631
        %697 = vst.msk [vmem:[%s670 + $0xd4] sm:$0xf] %vm305, %v632
        %698 = vst.msk [vmem:[%s670 + $0xd8] sm:$0xf] %vm305, %v633
        %699 = vst.msk [vmem:[%s670 + $0xe4] sm:$0xf] %vm305, %v634
        %700 = vst.msk [vmem:[%s670 + $0xe8] sm:$0xf] %vm305, %v635
        %701 = vst.msk [vmem:[%s670 + $0xf4] sm:$0xf] %vm305, %v636
        %702 = vst.msk [vmem:[%s670 + $0xf8] sm:$0xf] %vm305, %v637
      $region52: #{sphere_res_block.1} parent=47 // pred_fallthru
        _
      %s703 = smul.u32 %s300, 4
      %s704 = smul.addr %s703, 4
      %s705 = scalar_lea.vmem [#allocation2], %s704
      %v706 = vld [vmem:[%s705] sm:$0xf]
      %v707 = vld [vmem:[%s705 + $0x4] sm:$0xf]
      %v708 = vld [vmem:[%s705 + $0x8] sm:$0xf]
      %v709 = vld [vmem:[%s705 + $0xc] sm:$0x1]
      %v710 = vld [vmem:[%s705 + $0x10] sm:$0xf]
      %v711 = vld [vmem:[%s705 + $0x14] sm:$0xf]
      %v712 = vld [vmem:[%s705 + $0x18] sm:$0xf]
      %v713 = vld [vmem:[%s705 + $0x1c] sm:$0x1]
      %v714 = vld [vmem:[%s705 + $0x20] sm:$0xf]
      %v715 = vld [vmem:[%s705 + $0x24] sm:$0xf]
      %v716 = vld [vmem:[%s705 + $0x28] sm:$0xf]
      %v717 = vld [vmem:[%s705 + $0x2c] sm:$0x1]
      %v718 = vld [vmem:[%s705 + $0x30] sm:$0xf]
      %v719 = vld [vmem:[%s705 + $0x34] sm:$0xf]
      %v720 = vld [vmem:[%s705 + $0x38] sm:$0xf]
      %v721 = vld [vmem:[%s705 + $0x3c] sm:$0x1]
      %v722 = vld [vmem:[%s705 + $0x40] sm:$0xf]
      %v723 = vld [vmem:[%s705 + $0x44] sm:$0xf]
      %v724 = vld [vmem:[%s705 + $0x48] sm:$0xf]
      %v725 = vld [vmem:[%s705 + $0x4c] sm:$0x1]
      %v726 = vld [vmem:[%s705 + $0x50] sm:$0xf]
      %v727 = vld [vmem:[%s705 + $0x54] sm:$0xf]
      %v728 = vld [vmem:[%s705 + $0x58] sm:$0xf]
      %v729 = vld [vmem:[%s705 + $0x5c] sm:$0x1]
      %v730 = vld [vmem:[%s705 + $0x60] sm:$0xf]
      %v731 = vld [vmem:[%s705 + $0x64] sm:$0xf]
      %v732 = vld [vmem:[%s705 + $0x68] sm:$0xf]
      %v733 = vld [vmem:[%s705 + $0x6c] sm:$0x1]
      %v734 = vld [vmem:[%s705 + $0x70] sm:$0xf]
      %v735 = vld [vmem:[%s705 + $0x74] sm:$0xf]
      %v736 = vld [vmem:[%s705 + $0x78] sm:$0xf]
      %v737 = vld [vmem:[%s705 + $0x7c] sm:$0x1]
      %v738 = vld [vmem:[%s705 + $0x80] sm:$0xf]
      %v739 = vld [vmem:[%s705 + $0x84] sm:$0xf]
      %v740 = vld [vmem:[%s705 + $0x88] sm:$0xf]
      %v741 = vld [vmem:[%s705 + $0x8c] sm:$0x1]
      %v742 = vld [vmem:[%s705 + $0x90] sm:$0xf]
      %v743 = vld [vmem:[%s705 + $0x94] sm:$0xf]
      %v744 = vld [vmem:[%s705 + $0x98] sm:$0xf]
      %v745 = vld [vmem:[%s705 + $0x9c] sm:$0x1]
      %v746 = vld [vmem:[%s705 + $0xa0] sm:$0xf]
      %v747 = vld [vmem:[%s705 + $0xa4] sm:$0xf]
      %v748 = vld [vmem:[%s705 + $0xa8] sm:$0xf]
      %v749 = vld [vmem:[%s705 + $0xac] sm:$0x1]
      %v750 = vld [vmem:[%s705 + $0xb0] sm:$0xf]
      %v751 = vld [vmem:[%s705 + $0xb4] sm:$0xf]
      %v752 = vld [vmem:[%s705 + $0xb8] sm:$0xf]
      %v753 = vld [vmem:[%s705 + $0xbc] sm:$0x1]
      %v784 = vunpack.c.l.b16 %v706
      %v785 = vunpack.c.l.b16 %v707
      %v786 = vunpack.c.l.b16 %v708
      %v787 = vunpack.c.l.b16 %v710
      %v788 = vunpack.c.l.b16 %v711
      %v789 = vunpack.c.l.b16 %v712
      %v790 = vunpack.c.l.b16 %v714
      %v791 = vunpack.c.l.b16 %v715
      %v792 = vunpack.c.l.b16 %v716
      %v793 = vunpack.c.l.b16 %v718
      %v794 = vunpack.c.l.b16 %v719
      %v795 = vunpack.c.l.b16 %v720
      %v796 = vunpack.c.l.b16 %v722
      %v797 = vunpack.c.l.b16 %v723
      %v798 = vunpack.c.l.b16 %v724
      %v799 = vunpack.c.l.b16 %v726
      %v800 = vunpack.c.l.b16 %v727
      %v801 = vunpack.c.l.b16 %v728
      %v802 = vunpack.c.l.b16 %v730
      %v803 = vunpack.c.l.b16 %v731
      %v804 = vunpack.c.l.b16 %v732
      %v805 = vunpack.c.l.b16 %v734
      %v806 = vunpack.c.l.b16 %v735
      %v807 = vunpack.c.l.b16 %v736
      %v808 = vunpack.c.l.b16 %v738
      %v809 = vunpack.c.l.b16 %v739
      %v810 = vunpack.c.l.b16 %v740
      %v811 = vunpack.c.l.b16 %v742
      %v812 = vunpack.c.l.b16 %v743
      %v813 = vunpack.c.l.b16 %v744
      %v814 = vpack.c.b16 %v785, %v784
      %v815 = vpack.c.b16 %v786, %v786
      %v816 = vpack.c.b16 %v788, %v787
      %v817 = vpack.c.b16 %v789, %v789
      %v818 = vpack.c.b16 %v791, %v790
      %v819 = vpack.c.b16 %v792, %v792
      %v820 = vpack.c.b16 %v794, %v793
      %v821 = vpack.c.b16 %v795, %v795
      %v822 = vpack.c.b16 %v797, %v796
      %v823 = vpack.c.b16 %v798, %v798
      %v824 = vpack.c.b16 %v800, %v799
      %v825 = vpack.c.b16 %v801, %v801
      %v826 = vpack.c.b16 %v803, %v802
      %v827 = vpack.c.b16 %v804, %v804
      %v828 = vpack.c.b16 %v806, %v805
      %v829 = vpack.c.b16 %v807, %v807
      %v830 = vpack.c.b16 %v809, %v808
      %v831 = vpack.c.b16 %v810, %v810
      %v832 = vpack.c.b16 %v812, %v811
      %v833 = vpack.c.b16 %v813, %v813
      %v834 = vpack.c.b16 %v786, %v785
      %v835 = vpack.c.b16 %v789, %v788
      %v836 = vpack.c.b16 %v792, %v791
      %v837 = vpack.c.b16 %v795, %v794
      %v838 = vpack.c.b16 %v798, %v797
      %v839 = vpack.c.b16 %v801, %v800
      %v840 = vpack.c.b16 %v804, %v803
      %v841 = vpack.c.b16 %v807, %v806
      %v842 = vpack.c.b16 %v810, %v809
      %v843 = vpack.c.b16 %v813, %v812
      %v845 = vshrl.u32 %v834, 16
      %v847 = vrot.slane %v845, 4
      %v848 = vshll.u32 %v834, 16
      %v850 = vrot.slane %v848, 5
      %v851 = vor.u32 %v847, %v850
      %v853 = vshrl.u32 %v835, 16
      %v855 = vrot.slane %v853, 4
      %v856 = vshll.u32 %v835, 16
      %v858 = vrot.slane %v856, 5
      %v859 = vor.u32 %v855, %v858
      %v861 = vshrl.u32 %v836, 16
      %v863 = vrot.slane %v861, 4
      %v864 = vshll.u32 %v836, 16
      %v866 = vrot.slane %v864, 5
      %v867 = vor.u32 %v863, %v866
      %v869 = vshrl.u32 %v837, 16
      %v871 = vrot.slane %v869, 4
      %v872 = vshll.u32 %v837, 16
      %v874 = vrot.slane %v872, 5
      %v875 = vor.u32 %v871, %v874
      %v877 = vshrl.u32 %v838, 16
      %v879 = vrot.slane %v877, 4
      %v880 = vshll.u32 %v838, 16
      %v882 = vrot.slane %v880, 5
      %v883 = vor.u32 %v879, %v882
      %v885 = vshrl.u32 %v839, 16
      %v887 = vrot.slane %v885, 4
      %v888 = vshll.u32 %v839, 16
      %v890 = vrot.slane %v888, 5
      %v891 = vor.u32 %v887, %v890
      %v893 = vshrl.u32 %v840, 16
      %v895 = vrot.slane %v893, 4
      %v896 = vshll.u32 %v840, 16
      %v898 = vrot.slane %v896, 5
      %v899 = vor.u32 %v895, %v898
      %v901 = vshrl.u32 %v841, 16
      %v903 = vrot.slane %v901, 4
      %v904 = vshll.u32 %v841, 16
      %v906 = vrot.slane %v904, 5
      %v907 = vor.u32 %v903, %v906
      %v909 = vshrl.u32 %v842, 16
      %v911 = vrot.slane %v909, 4
      %v912 = vshll.u32 %v842, 16
      %v914 = vrot.slane %v912, 5
      %v915 = vor.u32 %v911, %v914
      %v917 = vshrl.u32 %v843, 16
      %v919 = vrot.slane %v917, 4
      %v920 = vshll.u32 %v843, 16
      %v922 = vrot.slane %v920, 5
      %v923 = vor.u32 %v919, %v922
      %924 = vrot.lane.b32.xlu0 %v851, 4
      %v925 = vpop.permute.xlu0 %924
      %926 = vrot.lane.b32.xlu0 %v859, 4
      %v927 = vpop.permute.xlu0 %926
      %928 = vrot.lane.b32.xlu0 %v867, 4
      %v929 = vpop.permute.xlu0 %928
      %930 = vrot.lane.b32.xlu0 %v875, 4
      %v931 = vpop.permute.xlu0 %930
      %932 = vrot.lane.b32.xlu0 %v883, 4
      %v933 = vpop.permute.xlu0 %932
      %934 = vrot.lane.b32.xlu0 %v891, 4
      %v935 = vpop.permute.xlu0 %934
      %936 = vrot.lane.b32.xlu0 %v899, 4
      %v937 = vpop.permute.xlu0 %936
      %938 = vrot.lane.b32.xlu0 %v907, 4
      %v939 = vpop.permute.xlu0 %938
      %940 = vrot.lane.b32.xlu0 %v915, 4
      %v941 = vpop.permute.xlu0 %940
      %942 = vrot.lane.b32.xlu0 %v923, 4
      %v943 = vpop.permute.xlu0 %942
      %v954 = vunpack.c.l.b16 %v709
      %v955 = vunpack.c.l.b16 %v713
      %v956 = vunpack.c.l.b16 %v717
      %v957 = vunpack.c.l.b16 %v721
      %v958 = vunpack.c.l.b16 %v725
      %v959 = vunpack.c.l.b16 %v729
      %v960 = vunpack.c.l.b16 %v733
      %v961 = vunpack.c.l.b16 %v737
      %v962 = vunpack.c.l.b16 %v741
      %v963 = vunpack.c.l.b16 %v745
      %v964 = vpack.c.b16 %v954, %v954
      %v965 = vpack.c.b16 %v955, %v955
      %v966 = vpack.c.b16 %v956, %v956
      %v967 = vpack.c.b16 %v957, %v957
      %v968 = vpack.c.b16 %v958, %v958
      %v969 = vpack.c.b16 %v959, %v959
      %v970 = vpack.c.b16 %v960, %v960
      %v971 = vpack.c.b16 %v961, %v961
      %v972 = vpack.c.b16 %v962, %v962
      %v973 = vpack.c.b16 %v963, %v963
      %vm974 = vcmask 1042432
      %v975 = vrot.slane %v834, 5
      %v976 = vrot.slane %v964, 5
      %v977 = vsel %vm974, %v975, %v976
      %v978 = vrot.slane %v835, 5
      %v979 = vrot.slane %v965, 5
      %v980 = vsel %vm974, %v978, %v979
      %v981 = vrot.slane %v836, 5
      %v982 = vrot.slane %v966, 5
      %v983 = vsel %vm974, %v981, %v982
      %v984 = vrot.slane %v837, 5
      %v985 = vrot.slane %v967, 5
      %v986 = vsel %vm974, %v984, %v985
      %v987 = vrot.slane %v838, 5
      %v988 = vrot.slane %v968, 5
      %v989 = vsel %vm974, %v987, %v988
      %v990 = vrot.slane %v839, 5
      %v991 = vrot.slane %v969, 5
      %v992 = vsel %vm974, %v990, %v991
      %v993 = vrot.slane %v840, 5
      %v994 = vrot.slane %v970, 5
      %v995 = vsel %vm974, %v993, %v994
      %v996 = vrot.slane %v841, 5
      %v997 = vrot.slane %v971, 5
      %v998 = vsel %vm974, %v996, %v997
      %v999 = vrot.slane %v842, 5
      %v1000 = vrot.slane %v972, 5
      %v1001 = vsel %vm974, %v999, %v1000
      %v1002 = vrot.slane %v843, 5
      %v1003 = vrot.slane %v973, 5
      %v1004 = vsel %vm974, %v1002, %v1003
      %1005 = vrot.lane.b32.xlu0 %v975, 8
      %v1006 = vpop.permute.xlu0 %1005
      %1007 = vrot.lane.b32.xlu0 %v977, 8
      %v1008 = vpop.permute.xlu0 %1007
      %1009 = vrot.lane.b32.xlu0 %v978, 8
      %v1010 = vpop.permute.xlu0 %1009
      %1011 = vrot.lane.b32.xlu0 %v980, 8
      %v1012 = vpop.permute.xlu0 %1011
      %1013 = vrot.lane.b32.xlu0 %v981, 8
      %v1014 = vpop.permute.xlu0 %1013
      %1015 = vrot.lane.b32.xlu0 %v983, 8
      %v1016 = vpop.permute.xlu0 %1015
      %1017 = vrot.lane.b32.xlu0 %v984, 8
      %v1018 = vpop.permute.xlu0 %1017
      %1019 = vrot.lane.b32.xlu0 %v986, 8
      %v1020 = vpop.permute.xlu0 %1019
      %1021 = vrot.lane.b32.xlu0 %v987, 8
      %v1022 = vpop.permute.xlu0 %1021
      %1023 = vrot.lane.b32.xlu0 %v989, 8
      %v1024 = vpop.permute.xlu0 %1023
      %1025 = vrot.lane.b32.xlu0 %v990, 8
      %v1026 = vpop.permute.xlu0 %1025
      %1027 = vrot.lane.b32.xlu0 %v992, 8
      %v1028 = vpop.permute.xlu0 %1027
      %1029 = vrot.lane.b32.xlu0 %v993, 8
      %v1030 = vpop.permute.xlu0 %1029
      %1031 = vrot.lane.b32.xlu0 %v995, 8
      %v1032 = vpop.permute.xlu0 %1031
      %1033 = vrot.lane.b32.xlu0 %v996, 8
      %v1034 = vpop.permute.xlu0 %1033
      %1035 = vrot.lane.b32.xlu0 %v998, 8
      %v1036 = vpop.permute.xlu0 %1035
      %1037 = vrot.lane.b32.xlu0 %v999, 8
      %v1038 = vpop.permute.xlu0 %1037
      %1039 = vrot.lane.b32.xlu0 %v1001, 8
      %v1040 = vpop.permute.xlu0 %1039
      %1041 = vrot.lane.b32.xlu0 %v1002, 8
      %v1042 = vpop.permute.xlu0 %1041
      %1043 = vrot.lane.b32.xlu0 %v1004, 8
      %v1044 = vpop.permute.xlu0 %1043
      %vm1045 = vcmask 31744
      %v1048 = vsel %vm1045, %v814, %v925
      %v1050 = vsel %vm1045, %v815, %v925
      %v1053 = vsel %vm1045, %v816, %v927
      %v1055 = vsel %vm1045, %v817, %v927
      %v1058 = vsel %vm1045, %v818, %v929
      %v1060 = vsel %vm1045, %v819, %v929
      %v1063 = vsel %vm1045, %v820, %v931
      %v1065 = vsel %vm1045, %v821, %v931
      %v1068 = vsel %vm1045, %v822, %v933
      %v1070 = vsel %vm1045, %v823, %v933
      %v1073 = vsel %vm1045, %v824, %v935
      %v1075 = vsel %vm1045, %v825, %v935
      %v1078 = vsel %vm1045, %v826, %v937
      %v1080 = vsel %vm1045, %v827, %v937
      %v1083 = vsel %vm1045, %v828, %v939
      %v1085 = vsel %vm1045, %v829, %v939
      %v1088 = vsel %vm1045, %v830, %v941
      %v1090 = vsel %vm1045, %v831, %v941
      %v1093 = vsel %vm1045, %v832, %v943
      %v1095 = vsel %vm1045, %v833, %v943
      %vm1096 = vcmask 64512
      %v1098 = vsel %vm1096, %v1048, %v1006
      %v1100 = vsel %vm1096, %v1050, %v1008
      %v1102 = vsel %vm1096, %v1053, %v1010
      %v1104 = vsel %vm1096, %v1055, %v1012
      %v1106 = vsel %vm1096, %v1058, %v1014
      %v1108 = vsel %vm1096, %v1060, %v1016
      %v1110 = vsel %vm1096, %v1063, %v1018
      %v1112 = vsel %vm1096, %v1065, %v1020
      %v1114 = vsel %vm1096, %v1068, %v1022
      %v1116 = vsel %vm1096, %v1070, %v1024
      %v1118 = vsel %vm1096, %v1073, %v1026
      %v1120 = vsel %vm1096, %v1075, %v1028
      %v1122 = vsel %vm1096, %v1078, %v1030
      %v1124 = vsel %vm1096, %v1080, %v1032
      %v1126 = vsel %vm1096, %v1083, %v1034
      %v1128 = vsel %vm1096, %v1085, %v1036
      %v1130 = vsel %vm1096, %v1088, %v1038
      %v1132 = vsel %vm1096, %v1090, %v1040
      %v1134 = vsel %vm1096, %v1093, %v1042
      %v1136 = vsel %vm1096, %v1095, %v1044
      %vm1137 = vsmask.f32 4352
      %v1138 = vshrl.u32 %v1098, 16
      %v1140 = vrot.slane %v1138, 3
      %v1141 = vshll.u32 %v1098, 16
      %v1143 = vrot.slane %v1141, 4
      %v1144 = vor.u32 %v1140, %v1143
      %v1145 = vshrl.u32 %v1100, 16
      %v1147 = vrot.slane %v1145, 3
      %v1148 = vshll.u32 %v1100, 16
      %v1150 = vrot.slane %v1148, 4
      %v1151 = vor.u32 %v1147, %v1150
      %v1152 = vsel %vm1137, %v1144, %v1151
      %v1153 = vshrl.u32 %v1102, 16
      %v1155 = vrot.slane %v1153, 3
      %v1156 = vshll.u32 %v1102, 16
      %v1158 = vrot.slane %v1156, 4
      %v1159 = vor.u32 %v1155, %v1158
      %v1160 = vshrl.u32 %v1104, 16
      %v1162 = vrot.slane %v1160, 3
      %v1163 = vshll.u32 %v1104, 16
      %v1165 = vrot.slane %v1163, 4
      %v1166 = vor.u32 %v1162, %v1165
      %v1167 = vsel %vm1137, %v1159, %v1166
      %v1168 = vshrl.u32 %v1106, 16
      %v1170 = vrot.slane %v1168, 3
      %v1171 = vshll.u32 %v1106, 16
      %v1173 = vrot.slane %v1171, 4
      %v1174 = vor.u32 %v1170, %v1173
      %v1175 = vshrl.u32 %v1108, 16
      %v1177 = vrot.slane %v1175, 3
      %v1178 = vshll.u32 %v1108, 16
      %v1180 = vrot.slane %v1178, 4
      %v1181 = vor.u32 %v1177, %v1180
      %v1182 = vsel %vm1137, %v1174, %v1181
      %v1183 = vshrl.u32 %v1110, 16
      %v1185 = vrot.slane %v1183, 3
      %v1186 = vshll.u32 %v1110, 16
      %v1188 = vrot.slane %v1186, 4
      %v1189 = vor.u32 %v1185, %v1188
      %v1190 = vshrl.u32 %v1112, 16
      %v1192 = vrot.slane %v1190, 3
      %v1193 = vshll.u32 %v1112, 16
      %v1195 = vrot.slane %v1193, 4
      %v1196 = vor.u32 %v1192, %v1195
      %v1197 = vsel %vm1137, %v1189, %v1196
      %v1198 = vshrl.u32 %v1114, 16
      %v1200 = vrot.slane %v1198, 3
      %v1201 = vshll.u32 %v1114, 16
      %v1203 = vrot.slane %v1201, 4
      %v1204 = vor.u32 %v1200, %v1203
      %v1205 = vshrl.u32 %v1116, 16
      %v1207 = vrot.slane %v1205, 3
      %v1208 = vshll.u32 %v1116, 16
      %v1210 = vrot.slane %v1208, 4
      %v1211 = vor.u32 %v1207, %v1210
      %v1212 = vsel %vm1137, %v1204, %v1211
      %v1213 = vshrl.u32 %v1118, 16
      %v1215 = vrot.slane %v1213, 3
      %v1216 = vshll.u32 %v1118, 16
      %v1218 = vrot.slane %v1216, 4
      %v1219 = vor.u32 %v1215, %v1218
      %v1220 = vshrl.u32 %v1120, 16
      %v1222 = vrot.slane %v1220, 3
      %v1223 = vshll.u32 %v1120, 16
      %v1225 = vrot.slane %v1223, 4
      %v1226 = vor.u32 %v1222, %v1225
      %v1227 = vsel %vm1137, %v1219, %v1226
      %v1228 = vshrl.u32 %v1122, 16
      %v1230 = vrot.slane %v1228, 3
      %v1231 = vshll.u32 %v1122, 16
      %v1233 = vrot.slane %v1231, 4
      %v1234 = vor.u32 %v1230, %v1233
      %v1235 = vshrl.u32 %v1124, 16
      %v1237 = vrot.slane %v1235, 3
      %v1238 = vshll.u32 %v1124, 16
      %v1240 = vrot.slane %v1238, 4
      %v1241 = vor.u32 %v1237, %v1240
      %v1242 = vsel %vm1137, %v1234, %v1241
      %v1243 = vshrl.u32 %v1126, 16
      %v1245 = vrot.slane %v1243, 3
      %v1246 = vshll.u32 %v1126, 16
      %v1248 = vrot.slane %v1246, 4
      %v1249 = vor.u32 %v1245, %v1248
      %v1250 = vshrl.u32 %v1128, 16
      %v1252 = vrot.slane %v1250, 3
      %v1253 = vshll.u32 %v1128, 16
      %v1255 = vrot.slane %v1253, 4
      %v1256 = vor.u32 %v1252, %v1255
      %v1257 = vsel %vm1137, %v1249, %v1256
      %v1258 = vshrl.u32 %v1130, 16
      %v1260 = vrot.slane %v1258, 3
      %v1261 = vshll.u32 %v1130, 16
      %v1263 = vrot.slane %v1261, 4
      %v1264 = vor.u32 %v1260, %v1263
      %v1265 = vshrl.u32 %v1132, 16
      %v1267 = vrot.slane %v1265, 3
      %v1268 = vshll.u32 %v1132, 16
      %v1270 = vrot.slane %v1268, 4
      %v1271 = vor.u32 %v1267, %v1270
      %v1272 = vsel %vm1137, %v1264, %v1271
      %v1273 = vshrl.u32 %v1134, 16
      %v1275 = vrot.slane %v1273, 3
      %v1276 = vshll.u32 %v1134, 16
      %v1278 = vrot.slane %v1276, 4
      %v1279 = vor.u32 %v1275, %v1278
      %v1280 = vshrl.u32 %v1136, 16
      %v1282 = vrot.slane %v1280, 3
      %v1283 = vshll.u32 %v1136, 16
      %v1285 = vrot.slane %v1283, 4
      %v1286 = vor.u32 %v1282, %v1285
      %v1287 = vsel %vm1137, %v1279, %v1286
      %v1288 = vld [vmem:[%s1] sm:$0xf]
      %v1289 = vld [vmem:[%s1 + $0x4] sm:$0x3]
      %v1293 = vunpack.c.l.b16 %v746
      %v1294 = vunpack.c.l.b16 %v747
      %v1295 = vunpack.c.l.b16 %v748
      %v1296 = vpack.c.b16 %v1294, %v1293
      %v1297 = vpack.c.b16 %v1295, %v1295
      %v1298 = vpack.c.b16 %v1295, %v1294
      %v1300 = vshrl.u32 %v1298, 16
      %v1302 = vrot.slane %v1300, 4
      %v1303 = vshll.u32 %v1298, 16
      %v1305 = vrot.slane %v1303, 5
      %v1306 = vor.u32 %v1302, %v1305
      %1307 = vrot.lane.b32.xlu0 %v1306, 4
      %v1308 = vpop.permute.xlu0 %1307
      %v1310 = vunpack.c.l.b16 %v749
      %v1311 = vpack.c.b16 %v1310, %v1310
      %v1312 = vrot.slane %v1298, 5
      %v1313 = vrot.slane %v1311, 5
      %v1314 = vsel %vm974, %v1312, %v1313
      %1315 = vrot.lane.b32.xlu0 %v1312, 8
      %v1316 = vpop.permute.xlu0 %1315
      %1317 = vrot.lane.b32.xlu0 %v1314, 8
      %v1318 = vpop.permute.xlu0 %1317
      %v1321 = vsel %vm1045, %v1296, %v1308
      %v1323 = vsel %vm1045, %v1297, %v1308
      %v1325 = vsel %vm1096, %v1321, %v1316
      %v1327 = vsel %vm1096, %v1323, %v1318
      %v1328 = vshrl.u32 %v1325, 16
      %v1330 = vrot.slane %v1328, 3
      %v1331 = vshll.u32 %v1325, 16
      %v1333 = vrot.slane %v1331, 4
      %v1334 = vor.u32 %v1330, %v1333
      %v1335 = vshrl.u32 %v1327, 16
      %v1337 = vrot.slane %v1335, 3
      %v1338 = vshll.u32 %v1327, 16
      %v1340 = vrot.slane %v1338, 4
      %v1341 = vor.u32 %v1337, %v1340
      %v1342 = vsel %vm1137, %v1334, %v1341
      %s1343 = scalar_lea.vmem %s1, 8
      %v1344 = vld [vmem:[%s1343] sm:$0xf]
      %v1345 = vld [vmem:[%s1343 + $0x4] sm:$0x3]
      %v1348 = vunpack.c.l.b16 %v1344
      %v1349 = vunpack.c.l.b16 %v1345
      %v1350 = vpack.c.b16 %v1349, %v1348
      %vm1351 = vcmask 97280
      %v1353 = vsel %vm1351, %v1167, 0
      %v1356 = vsel %vm1351, %v1182, 0
      %v1359 = vsel %vm1351, %v1197, 0
      %v1362 = vsel %vm1351, %v1212, 0
      %v1365 = vsel %vm1351, %v1227, 0
      %v1368 = vsel %vm1351, %v1242, 0
      %v1371 = vsel %vm1351, %v1257, 0
      %v1374 = vsel %vm1351, %v1272, 0
      %v1377 = vsel %vm1351, %v1287, 0
      %v1380 = vsel %vm1351, %v1342, 0
      %vm1382 = vcmask 1045504
      %v1384 = vsel %vm1382, %v1350, 0
      %1386 = vmatprep.subr.bf16.mxu0 0
      %1387 = vmatpush1.bf16.msra.mxu0 0
      %1388 = vmatprep.subr.bf16.mxu0 0
      %1389 = vmatpush1.bf16.msra.mxu0 0
      %1390 = vmatprep.subr.bf16.mxu0 0
      %1391 = vmatpush1.bf16.msra.mxu0 0
      %1392 = vmatprep.subr.bf16.mxu0 0
      %1393 = vmatpush1.bf16.msra.mxu0 0
      %1394 = vmatprep.subr.bf16.mxu0 0
      %1395 = vmatpush1.bf16.msra.mxu0 0
      %1396 = vmatprep.subr.bf16.mxu0 0
      %1397 = vmatpush1.bf16.msra.mxu0 0
      %1398 = vmatprep.subr.bf16.mxu0 0
      %1399 = vmatpush1.bf16.msra.mxu0 0
      %1400 = vmatprep.subr.bf16.mxu0 0
      %1401 = vmatpush1.bf16.msra.mxu0 %v1384
      %1402 = vmatprep.subr.bf16.mxu0 0
      %1403 = vmatpush2.bf16.msra.mxu0 0
      %1404 = vmatprep.subr.bf16.mxu0 0
      %1405 = vmatpush2.bf16.msra.mxu0 0
      %1406 = vmatprep.subr.bf16.mxu0 0
      %1407 = vmatpush2.bf16.msra.mxu0 0
      %1408 = vmatprep.subr.bf16.mxu0 0
      %1409 = vmatpush2.bf16.msra.mxu0 0
      %1410 = vmatprep.subr.bf16.mxu0 0
      %1411 = vmatpush2.bf16.msra.mxu0 0
      %1412 = vmatprep.subr.bf16.mxu0 0
      %1413 = vmatpush2.bf16.msra.mxu0 0
      %1414 = vmatprep.subr.bf16.mxu0 0
      %1415 = vmatpush2.bf16.msra.mxu0 0
      %1416 = vmatprep.subr.bf16.mxu0 0
      %1417 = vmatpush2.bf16.msra.mxu0 0
      %1418 = vmatprep.mubr.bf16.mxu0 0
      %1419 = vmatmul.mubr.bf16.gmra.mxu0 %v1353
      %v1420 = vpop.f32.mrf.mxu0
      %v1421 = vadd.f32 0.0, %v1420
      %v1422 = vpop.f32.mrf.mxu0
      %v1423 = vpop.f32.mrf.mxu0
      %v1424 = vadd.f32 0.0, %v1423
      %v1425 = vpop.f32.mrf.mxu0
      %1426 = vmatprep.mubr.bf16.mxu0 0
      %1427 = vmatmul.mubr.bf16.gmra.mxu0 %v1356
      %v1428 = vpop.f32.mrf.mxu0
      %v1429 = vadd.f32 0.0, %v1428
      %v1430 = vpop.f32.mrf.mxu0
      %v1431 = vpop.f32.mrf.mxu0
      %v1432 = vadd.f32 0.0, %v1431
      %v1433 = vpop.f32.mrf.mxu0
      %1434 = vmatprep.mubr.bf16.mxu0 0
      %1435 = vmatmul.mubr.bf16.gmra.mxu0 %v1359
      %v1436 = vpop.f32.mrf.mxu0
      %v1437 = vadd.f32 0.0, %v1436
      %v1438 = vpop.f32.mrf.mxu0
      %v1439 = vpop.f32.mrf.mxu0
      %v1440 = vadd.f32 0.0, %v1439
      %v1441 = vpop.f32.mrf.mxu0
      %1442 = vmatprep.mubr.bf16.mxu0 0
      %1443 = vmatmul.mubr.bf16.gmra.mxu0 %v1362
      %v1444 = vpop.f32.mrf.mxu0
      %v1445 = vadd.f32 0.0, %v1444
      %v1446 = vpop.f32.mrf.mxu0
      %v1447 = vpop.f32.mrf.mxu0
      %v1448 = vadd.f32 0.0, %v1447
      %v1449 = vpop.f32.mrf.mxu0
      %1450 = vmatprep.mubr.bf16.mxu0 0
      %1451 = vmatmul.mubr.bf16.gmra.mxu0 %v1365
      %v1452 = vpop.f32.mrf.mxu0
      %v1453 = vadd.f32 0.0, %v1452
      %v1454 = vpop.f32.mrf.mxu0
      %v1455 = vpop.f32.mrf.mxu0
      %v1456 = vadd.f32 0.0, %v1455
      %v1457 = vpop.f32.mrf.mxu0
      %1458 = vmatprep.mubr.bf16.mxu0 0
      %1459 = vmatmul.mubr.bf16.gmra.mxu0 %v1368
      %v1460 = vpop.f32.mrf.mxu0
      %v1461 = vadd.f32 0.0, %v1460
      %v1462 = vpop.f32.mrf.mxu0
      %v1463 = vpop.f32.mrf.mxu0
      %v1464 = vadd.f32 0.0, %v1463
      %v1465 = vpop.f32.mrf.mxu0
      %1466 = vmatprep.mubr.bf16.mxu0 0
      %1467 = vmatmul.mubr.bf16.gmra.mxu0 %v1371
      %v1468 = vpop.f32.mrf.mxu0
      %v1469 = vadd.f32 0.0, %v1468
      %v1470 = vpop.f32.mrf.mxu0
      %v1471 = vpop.f32.mrf.mxu0
      %v1472 = vadd.f32 0.0, %v1471
      %v1473 = vpop.f32.mrf.mxu0
      %1474 = vmatprep.mubr.bf16.mxu0 0
      %1475 = vmatmul.mubr.bf16.gmra.mxu0 %v1374
      %v1476 = vpop.f32.mrf.mxu0
      %v1477 = vadd.f32 0.0, %v1476
      %v1478 = vpop.f32.mrf.mxu0
      %v1479 = vpop.f32.mrf.mxu0
      %v1480 = vadd.f32 0.0, %v1479
      %v1481 = vpop.f32.mrf.mxu0
      %1482 = vmatprep.mubr.bf16.mxu0 0
      %1483 = vmatmul.mubr.bf16.gmra.mxu0 %v1377
      %v1484 = vpop.f32.mrf.mxu0
      %v1485 = vadd.f32 0.0, %v1484
      %v1486 = vpop.f32.mrf.mxu0
      %v1487 = vpop.f32.mrf.mxu0
      %v1488 = vadd.f32 0.0, %v1487
      %v1489 = vpop.f32.mrf.mxu0
      %1490 = vmatprep.mubr.bf16.mxu0 0
      %1491 = vmatmul.mubr.bf16.gmra.mxu0 %v1380
      %v1492 = vpop.f32.mrf.mxu0
      %v1493 = vadd.f32 0.0, %v1492
      %v1494 = vpop.f32.mrf.mxu0
      %v1495 = vpop.f32.mrf.mxu0
      %v1496 = vadd.f32 0.0, %v1495
      %v1497 = vpop.f32.mrf.mxu0
      %1498 = vdwg.mxu0
      %v1501 = vunpack.c.l.b16 %v1288
      %v1502 = vunpack.c.l.b16 %v1289
      %v1503 = vpack.c.b16 %v1502, %v1501
      %v1505 = vsel %vm1351, %v1152, 0
      %v1508 = vsel %vm1382, %v1503, 0
      %1510 = vmatprep.subr.bf16.mxu0 0
      %1511 = vmatpush1.bf16.msra.mxu0 0
      %1512 = vmatprep.subr.bf16.mxu0 0
      %1513 = vmatpush1.bf16.msra.mxu0 0
      %1514 = vmatprep.subr.bf16.mxu0 0
      %1515 = vmatpush1.bf16.msra.mxu0 0
      %1516 = vmatprep.subr.bf16.mxu0 0
      %1517 = vmatpush1.bf16.msra.mxu0 0
      %1518 = vmatprep.subr.bf16.mxu0 0
      %1519 = vmatpush1.bf16.msra.mxu0 0
      %1520 = vmatprep.subr.bf16.mxu0 0
      %1521 = vmatpush1.bf16.msra.mxu0 0
      %1522 = vmatprep.subr.bf16.mxu0 0
      %1523 = vmatpush1.bf16.msra.mxu0 0
      %1524 = vmatprep.subr.bf16.mxu0 0
      %1525 = vmatpush1.bf16.msra.mxu0 %v1508
      %1526 = vmatprep.subr.bf16.mxu0 0
      %1527 = vmatpush2.bf16.msra.mxu0 0
      %1528 = vmatprep.subr.bf16.mxu0 0
      %1529 = vmatpush2.bf16.msra.mxu0 0
      %1530 = vmatprep.subr.bf16.mxu0 0
      %1531 = vmatpush2.bf16.msra.mxu0 0
      %1532 = vmatprep.subr.bf16.mxu0 0
      %1533 = vmatpush2.bf16.msra.mxu0 0
      %1534 = vmatprep.subr.bf16.mxu0 0
      %1535 = vmatpush2.bf16.msra.mxu0 0
      %1536 = vmatprep.subr.bf16.mxu0 0
      %1537 = vmatpush2.bf16.msra.mxu0 0
      %1538 = vmatprep.subr.bf16.mxu0 0
      %1539 = vmatpush2.bf16.msra.mxu0 0
      %1540 = vmatprep.subr.bf16.mxu0 0
      %1541 = vmatpush2.bf16.msra.mxu0 0
      %1542 = vmatprep.mubr.bf16.mxu0 0
      %1543 = vmatmul.mubr.bf16.gmra.mxu0 %v1505
      %v1544 = vpop.f32.mrf.mxu0
      %v1545 = vadd.f32 %v1421, %v1544
      %v1546 = vpop.f32.mrf.mxu0
      %v1547 = vpop.f32.mrf.mxu0
      %v1548 = vadd.f32 %v1424, %v1547
      %v1549 = vpop.f32.mrf.mxu0
      %1550 = vmatprep.mubr.bf16.mxu0 0
      %1551 = vmatmul.mubr.bf16.gmra.mxu0 %v1353
      %v1552 = vpop.f32.mrf.mxu0
      %v1553 = vadd.f32 %v1429, %v1552
      %v1554 = vpop.f32.mrf.mxu0
      %v1555 = vpop.f32.mrf.mxu0
      %v1556 = vadd.f32 %v1432, %v1555
      %v1557 = vpop.f32.mrf.mxu0
      %1558 = vmatprep.mubr.bf16.mxu0 0
      %1559 = vmatmul.mubr.bf16.gmra.mxu0 %v1356
      %v1560 = vpop.f32.mrf.mxu0
      %v1561 = vadd.f32 %v1437, %v1560
      %v1562 = vpop.f32.mrf.mxu0
      %v1563 = vpop.f32.mrf.mxu0
      %v1564 = vadd.f32 %v1440, %v1563
      %v1565 = vpop.f32.mrf.mxu0
      %1566 = vmatprep.mubr.bf16.mxu0 0
      %1567 = vmatmul.mubr.bf16.gmra.mxu0 %v1359
      %v1568 = vpop.f32.mrf.mxu0
      %v1569 = vadd.f32 %v1445, %v1568
      %v1570 = vpop.f32.mrf.mxu0
      %v1571 = vpop.f32.mrf.mxu0
      %v1572 = vadd.f32 %v1448, %v1571
      %v1573 = vpop.f32.mrf.mxu0
      %1574 = vmatprep.mubr.bf16.mxu0 0
      %1575 = vmatmul.mubr.bf16.gmra.mxu0 %v1362
      %v1576 = vpop.f32.mrf.mxu0
      %v1577 = vadd.f32 %v1453, %v1576
      %v1578 = vpop.f32.mrf.mxu0
      %v1579 = vpop.f32.mrf.mxu0
      %v1580 = vadd.f32 %v1456, %v1579
      %v1581 = vpop.f32.mrf.mxu0
      %1582 = vmatprep.mubr.bf16.mxu0 0
      %1583 = vmatmul.mubr.bf16.gmra.mxu0 %v1365
      %v1584 = vpop.f32.mrf.mxu0
      %v1585 = vadd.f32 %v1461, %v1584
      %v1586 = vpop.f32.mrf.mxu0
      %v1587 = vpop.f32.mrf.mxu0
      %v1588 = vadd.f32 %v1464, %v1587
      %v1589 = vpop.f32.mrf.mxu0
      %1590 = vmatprep.mubr.bf16.mxu0 0
      %1591 = vmatmul.mubr.bf16.gmra.mxu0 %v1368
      %v1592 = vpop.f32.mrf.mxu0
      %v1593 = vadd.f32 %v1469, %v1592
      %v1594 = vpop.f32.mrf.mxu0
      %v1595 = vpop.f32.mrf.mxu0
      %v1596 = vadd.f32 %v1472, %v1595
      %v1597 = vpop.f32.mrf.mxu0
      %1598 = vmatprep.mubr.bf16.mxu0 0
      %1599 = vmatmul.mubr.bf16.gmra.mxu0 %v1371
      %v1600 = vpop.f32.mrf.mxu0
      %v1601 = vadd.f32 %v1477, %v1600
      %v1602 = vpop.f32.mrf.mxu0
      %v1603 = vpop.f32.mrf.mxu0
      %v1604 = vadd.f32 %v1480, %v1603
      %v1605 = vpop.f32.mrf.mxu0
      %1606 = vmatprep.mubr.bf16.mxu0 0
      %1607 = vmatmul.mubr.bf16.gmra.mxu0 %v1374
      %v1608 = vpop.f32.mrf.mxu0
      %v1609 = vadd.f32 %v1485, %v1608
      %v1610 = vpop.f32.mrf.mxu0
      %v1611 = vpop.f32.mrf.mxu0
      %v1612 = vadd.f32 %v1488, %v1611
      %v1613 = vpop.f32.mrf.mxu0
      %1614 = vmatprep.mubr.bf16.mxu0 0
      %1615 = vmatmul.mubr.bf16.gmra.mxu0 %v1377
      %v1616 = vpop.f32.mrf.mxu0
      %v1617 = vadd.f32 %v1493, %v1616
      %v1618 = vpop.f32.mrf.mxu0
      %v1619 = vpop.f32.mrf.mxu0
      %v1620 = vadd.f32 %v1496, %v1619
      %v1621 = vpop.f32.mrf.mxu0
      %1622 = vdwg.mxu0
      %v1626 = vunpack.c.l.b16 %v750
      %v1627 = vunpack.c.l.b16 %v751
      %v1628 = vunpack.c.l.b16 %v752
      %v1629 = vpack.c.b16 %v1627, %v1626
      %v1630 = vpack.c.b16 %v1628, %v1628
      %v1631 = vpack.c.b16 %v1628, %v1627
      %v1633 = vshrl.u32 %v1631, 16
      %v1635 = vrot.slane %v1633, 4
      %v1636 = vshll.u32 %v1631, 16
      %v1638 = vrot.slane %v1636, 5
      %v1639 = vor.u32 %v1635, %v1638
      %1640 = vrot.lane.b32.xlu0 %v1639, 4
      %v1641 = vpop.permute.xlu0 %1640
      %v1643 = vunpack.c.l.b16 %v753
      %v1644 = vpack.c.b16 %v1643, %v1643
      %v1645 = vrot.slane %v1631, 5
      %v1646 = vrot.slane %v1644, 5
      %v1647 = vsel %vm974, %v1645, %v1646
      %1648 = vrot.lane.b32.xlu0 %v1645, 8
      %v1649 = vpop.permute.xlu0 %1648
      %1650 = vrot.lane.b32.xlu0 %v1647, 8
      %v1651 = vpop.permute.xlu0 %1650
      %v1654 = vsel %vm1045, %v1629, %v1641
      %v1656 = vsel %vm1045, %v1630, %v1641
      %v1658 = vsel %vm1096, %v1654, %v1649
      %v1660 = vsel %vm1096, %v1656, %v1651
      %v1661 = vshrl.u32 %v1658, 16
      %v1663 = vrot.slane %v1661, 3
      %v1664 = vshll.u32 %v1658, 16
      %v1666 = vrot.slane %v1664, 4
      %v1667 = vor.u32 %v1663, %v1666
      %v1668 = vshrl.u32 %v1660, 16
      %v1670 = vrot.slane %v1668, 3
      %v1671 = vshll.u32 %v1660, 16
      %v1673 = vrot.slane %v1671, 4
      %v1674 = vor.u32 %v1670, %v1673
      %v1675 = vsel %vm1137, %v1667, %v1674
      %s1676 = scalar_lea.vmem %s1, 16
      %v1677 = vld [vmem:[%s1676] sm:$0xf]
      %v1678 = vld [vmem:[%s1676 + $0x4] sm:$0x3]
      %v1681 = vunpack.c.l.b16 %v1677
      %v1682 = vunpack.c.l.b16 %v1678
      %v1683 = vpack.c.b16 %v1682, %v1681
      %v1685 = vsel %vm1351, %v1675, 0
      %v1688 = vsel %vm1382, %v1683, 0
      %1690 = vmatprep.subr.bf16.mxu0 0
      %1691 = vmatpush1.bf16.msra.mxu0 0
      %1692 = vmatprep.subr.bf16.mxu0 0
      %1693 = vmatpush1.bf16.msra.mxu0 0
      %1694 = vmatprep.subr.bf16.mxu0 0
      %1695 = vmatpush1.bf16.msra.mxu0 0
      %1696 = vmatprep.subr.bf16.mxu0 0
      %1697 = vmatpush1.bf16.msra.mxu0 0
      %1698 = vmatprep.subr.bf16.mxu0 0
      %1699 = vmatpush1.bf16.msra.mxu0 0
      %1700 = vmatprep.subr.bf16.mxu0 0
      %1701 = vmatpush1.bf16.msra.mxu0 0
      %1702 = vmatprep.subr.bf16.mxu0 0
      %1703 = vmatpush1.bf16.msra.mxu0 0
      %1704 = vmatprep.subr.bf16.mxu0 0
      %1705 = vmatpush1.bf16.msra.mxu0 %v1688
      %1706 = vmatprep.subr.bf16.mxu0 0
      %1707 = vmatpush2.bf16.msra.mxu0 0
      %1708 = vmatprep.subr.bf16.mxu0 0
      %1709 = vmatpush2.bf16.msra.mxu0 0
      %1710 = vmatprep.subr.bf16.mxu0 0
      %1711 = vmatpush2.bf16.msra.mxu0 0
      %1712 = vmatprep.subr.bf16.mxu0 0
      %1713 = vmatpush2.bf16.msra.mxu0 0
      %1714 = vmatprep.subr.bf16.mxu0 0
      %1715 = vmatpush2.bf16.msra.mxu0 0
      %1716 = vmatprep.subr.bf16.mxu0 0
      %1717 = vmatpush2.bf16.msra.mxu0 0
      %1718 = vmatprep.subr.bf16.mxu0 0
      %1719 = vmatpush2.bf16.msra.mxu0 0
      %1720 = vmatprep.subr.bf16.mxu0 0
      %1721 = vmatpush2.bf16.msra.mxu0 0
      %1722 = vmatprep.mubr.bf16.mxu0 0
      %1723 = vmatmul.mubr.bf16.gmra.mxu0 %v1356
      %v1724 = vpop.f32.mrf.mxu0
      %v1725 = vadd.f32 0.0, %v1724
      %v1726 = vpop.f32.mrf.mxu0
      %v1727 = vpop.f32.mrf.mxu0
      %v1728 = vadd.f32 0.0, %v1727
      %v1729 = vpop.f32.mrf.mxu0
      %1730 = vmatprep.mubr.bf16.mxu0 0
      %1731 = vmatmul.mubr.bf16.gmra.mxu0 %v1359
      %v1732 = vpop.f32.mrf.mxu0
      %v1733 = vadd.f32 0.0, %v1732
      %v1734 = vpop.f32.mrf.mxu0
      %v1735 = vpop.f32.mrf.mxu0
      %v1736 = vadd.f32 0.0, %v1735
      %v1737 = vpop.f32.mrf.mxu0
      %1738 = vmatprep.mubr.bf16.mxu0 0
      %1739 = vmatmul.mubr.bf16.gmra.mxu0 %v1362
      %v1740 = vpop.f32.mrf.mxu0
      %v1741 = vadd.f32 0.0, %v1740
      %v1742 = vpop.f32.mrf.mxu0
      %v1743 = vpop.f32.mrf.mxu0
      %v1744 = vadd.f32 0.0, %v1743
      %v1745 = vpop.f32.mrf.mxu0
      %1746 = vmatprep.mubr.bf16.mxu0 0
      %1747 = vmatmul.mubr.bf16.gmra.mxu0 %v1365
      %v1748 = vpop.f32.mrf.mxu0
      %v1749 = vadd.f32 0.0, %v1748
      %v1750 = vpop.f32.mrf.mxu0
      %v1751 = vpop.f32.mrf.mxu0
      %v1752 = vadd.f32 0.0, %v1751
      %v1753 = vpop.f32.mrf.mxu0
      %1754 = vmatprep.mubr.bf16.mxu0 0
      %1755 = vmatmul.mubr.bf16.gmra.mxu0 %v1368
      %v1756 = vpop.f32.mrf.mxu0
      %v1757 = vadd.f32 0.0, %v1756
      %v1758 = vpop.f32.mrf.mxu0
      %v1759 = vpop.f32.mrf.mxu0
      %v1760 = vadd.f32 0.0, %v1759
      %v1761 = vpop.f32.mrf.mxu0
      %1762 = vmatprep.mubr.bf16.mxu0 0
      %1763 = vmatmul.mubr.bf16.gmra.mxu0 %v1371
      %v1764 = vpop.f32.mrf.mxu0
      %v1765 = vadd.f32 0.0, %v1764
      %v1766 = vpop.f32.mrf.mxu0
      %v1767 = vpop.f32.mrf.mxu0
      %v1768 = vadd.f32 0.0, %v1767
      %v1769 = vpop.f32.mrf.mxu0
      %1770 = vmatprep.mubr.bf16.mxu0 0
      %1771 = vmatmul.mubr.bf16.gmra.mxu0 %v1374
      %v1772 = vpop.f32.mrf.mxu0
      %v1773 = vadd.f32 0.0, %v1772
      %v1774 = vpop.f32.mrf.mxu0
      %v1775 = vpop.f32.mrf.mxu0
      %v1776 = vadd.f32 0.0, %v1775
      %v1777 = vpop.f32.mrf.mxu0
      %1778 = vmatprep.mubr.bf16.mxu0 0
      %1779 = vmatmul.mubr.bf16.gmra.mxu0 %v1377
      %v1780 = vpop.f32.mrf.mxu0
      %v1781 = vadd.f32 0.0, %v1780
      %v1782 = vpop.f32.mrf.mxu0
      %v1783 = vpop.f32.mrf.mxu0
      %v1784 = vadd.f32 0.0, %v1783
      %v1785 = vpop.f32.mrf.mxu0
      %1786 = vmatprep.mubr.bf16.mxu0 0
      %1787 = vmatmul.mubr.bf16.gmra.mxu0 %v1380
      %v1788 = vpop.f32.mrf.mxu0
      %v1789 = vadd.f32 0.0, %v1788
      %v1790 = vpop.f32.mrf.mxu0
      %v1791 = vpop.f32.mrf.mxu0
      %v1792 = vadd.f32 0.0, %v1791
      %v1793 = vpop.f32.mrf.mxu0
      %1794 = vmatprep.mubr.bf16.mxu0 0
      %1795 = vmatmul.mubr.bf16.gmra.mxu0 %v1685
      %v1796 = vpop.f32.mrf.mxu0
      %v1797 = vadd.f32 0.0, %v1796
      %v1798 = vpop.f32.mrf.mxu0
      %v1799 = vpop.f32.mrf.mxu0
      %v1800 = vadd.f32 0.0, %v1799
      %v1801 = vpop.f32.mrf.mxu0
      %1802 = vdwg.mxu0
      %v1803 = vadd.f32 %v1545, %v1725
      %v1804 = vadd.f32 %v1548, %v1728
      %v1805 = vadd.f32 %v1553, %v1733
      %v1806 = vadd.f32 %v1556, %v1736
      %v1807 = vadd.f32 %v1561, %v1741
      %v1808 = vadd.f32 %v1564, %v1744
      %v1809 = vadd.f32 %v1569, %v1749
      %v1810 = vadd.f32 %v1572, %v1752
      %v1811 = vadd.f32 %v1577, %v1757
      %v1812 = vadd.f32 %v1580, %v1760
      %v1813 = vadd.f32 %v1585, %v1765
      %v1814 = vadd.f32 %v1588, %v1768
      %v1815 = vadd.f32 %v1593, %v1773
      %v1816 = vadd.f32 %v1596, %v1776
      %v1817 = vadd.f32 %v1601, %v1781
      %v1818 = vadd.f32 %v1604, %v1784
      %v1819 = vadd.f32 %v1609, %v1789
      %v1820 = vadd.f32 %v1612, %v1792
      %v1821 = vadd.f32 %v1617, %v1797
      %v1822 = vadd.f32 %v1620, %v1800
      %v1823 = vld [vmem:[%s2] sm:$0x1]
      %v1825 = vlaneseq
      %v1826 = vshrl.u32 %v1825, 7
      %v1827 = vsub.s32 0, %v1826
      %v1828 = vrot.slane %v1823, %v1827
      %v1830 = vadd.f32 %v1803, %v1828
      %v1831 = vadd.f32 %v1804, %v1828
      %v1832 = vadd.f32 %v1805, %v1828
      %v1833 = vadd.f32 %v1806, %v1828
      %v1834 = vadd.f32 %v1807, %v1828
      %v1835 = vadd.f32 %v1808, %v1828
      %v1836 = vadd.f32 %v1809, %v1828
      %v1837 = vadd.f32 %v1810, %v1828
      %v1838 = vadd.f32 %v1811, %v1828
      %v1839 = vadd.f32 %v1812, %v1828
      %v1840 = vadd.f32 %v1813, %v1828
      %v1841 = vadd.f32 %v1814, %v1828
      %v1842 = vadd.f32 %v1815, %v1828
      %v1843 = vadd.f32 %v1816, %v1828
      %v1844 = vadd.f32 %v1817, %v1828
      %v1845 = vadd.f32 %v1818, %v1828
      %v1846 = vadd.f32 %v1819, %v1828
      %v1847 = vadd.f32 %v1820, %v1828
      %v1848 = vadd.f32 %v1821, %v1828
      %v1849 = vadd.f32 %v1822, %v1828
      %vm1850 = vcmp.gt.f32.partialorder %v1830, 0.0
      %vm1851 = vcmp.gt.f32.partialorder %v1831, 0.0
      %vm1852 = vcmp.gt.f32.partialorder %v1832, 0.0
      %vm1853 = vcmp.gt.f32.partialorder %v1833, 0.0
      %vm1854 = vcmp.gt.f32.partialorder %v1834, 0.0
      %vm1855 = vcmp.gt.f32.partialorder %v1835, 0.0
      %vm1856 = vcmp.gt.f32.partialorder %v1836, 0.0
      %vm1857 = vcmp.gt.f32.partialorder %v1837, 0.0
      %vm1858 = vcmp.gt.f32.partialorder %v1838, 0.0
      %vm1859 = vcmp.gt.f32.partialorder %v1839, 0.0
      %vm1860 = vcmp.gt.f32.partialorder %v1840, 0.0
      %vm1861 = vcmp.gt.f32.partialorder %v1841, 0.0
      %vm1862 = vcmp.gt.f32.partialorder %v1842, 0.0
      %vm1863 = vcmp.gt.f32.partialorder %v1843, 0.0
      %vm1864 = vcmp.gt.f32.partialorder %v1844, 0.0
      %vm1865 = vcmp.gt.f32.partialorder %v1845, 0.0
      %vm1866 = vcmp.gt.f32.partialorder %v1846, 0.0
      %vm1867 = vcmp.gt.f32.partialorder %v1847, 0.0
      %vm1868 = vcmp.gt.f32.partialorder %v1848, 0.0
      %vm1869 = vcmp.gt.f32.partialorder %v1849, 0.0
      %v1870 = vld [vmem:[%s3] sm:$0x1]
      %v1872 = vlaneseq
      %v1873 = vshrl.u32 %v1872, 7
      %v1874 = vsub.s32 0, %v1873
      %v1875 = vrot.slane %v1870, %v1874
      %v1877 = vmul.f32 %v1875, %v1830
      %v1878 = vmul.f32 %v1875, %v1831
      %v1879 = vmul.f32 %v1875, %v1832
      %v1880 = vmul.f32 %v1875, %v1833
      %v1881 = vmul.f32 %v1875, %v1834
      %v1882 = vmul.f32 %v1875, %v1835
      %v1883 = vmul.f32 %v1875, %v1836
      %v1884 = vmul.f32 %v1875, %v1837
      %v1885 = vmul.f32 %v1875, %v1838
      %v1886 = vmul.f32 %v1875, %v1839
      %v1887 = vmul.f32 %v1875, %v1840
      %v1888 = vmul.f32 %v1875, %v1841
      %v1889 = vmul.f32 %v1875, %v1842
      %v1890 = vmul.f32 %v1875, %v1843
      %v1891 = vmul.f32 %v1875, %v1844
      %v1892 = vmul.f32 %v1875, %v1845
      %v1893 = vmul.f32 %v1875, %v1846
      %v1894 = vmul.f32 %v1875, %v1847
      %v1895 = vmul.f32 %v1875, %v1848
      %v1896 = vmul.f32 %v1875, %v1849
      %v1897 = vsel %vm1850, %v1830, %v1877
      %v1898 = vsel %vm1851, %v1831, %v1878
      %v1899 = vsel %vm1852, %v1832, %v1879
      %v1900 = vsel %vm1853, %v1833, %v1880
      %v1901 = vsel %vm1854, %v1834, %v1881
      %v1902 = vsel %vm1855, %v1835, %v1882
      %v1903 = vsel %vm1856, %v1836, %v1883
      %v1904 = vsel %vm1857, %v1837, %v1884
      %v1905 = vsel %vm1858, %v1838, %v1885
      %v1906 = vsel %vm1859, %v1839, %v1886
      %v1907 = vsel %vm1860, %v1840, %v1887
      %v1908 = vsel %vm1861, %v1841, %v1888
      %v1909 = vsel %vm1862, %v1842, %v1889
      %v1910 = vsel %vm1863, %v1843, %v1890
      %v1911 = vsel %vm1864, %v1844, %v1891
      %v1912 = vsel %vm1865, %v1845, %v1892
      %v1913 = vsel %vm1866, %v1846, %v1893
      %v1914 = vsel %vm1867, %v1847, %v1894
      %v1915 = vsel %vm1868, %v1848, %v1895
      %v1916 = vsel %vm1869, %v1849, %v1896
      %v1917 = vpack.c.bf16 %v1898, %v1897
      %v1918 = vpack.c.bf16 %v1900, %v1899
      %v1919 = vpack.c.bf16 %v1902, %v1901
      %v1920 = vpack.c.bf16 %v1904, %v1903
      %v1921 = vpack.c.bf16 %v1906, %v1905
      %v1922 = vpack.c.bf16 %v1908, %v1907
      %v1923 = vpack.c.bf16 %v1910, %v1909
      %v1924 = vpack.c.bf16 %v1912, %v1911
      %v1925 = vpack.c.bf16 %v1914, %v1913
      %v1926 = vpack.c.bf16 %v1916, %v1915
      %v1937 = vunpack.c.l.b16 %v1917
      %v1938 = vunpack.c.h.b16 %v1917
      %v1939 = vunpack.c.l.b16 %v1918
      %v1940 = vunpack.c.h.b16 %v1918
      %v1941 = vunpack.c.l.b16 %v1919
      %v1942 = vunpack.c.h.b16 %v1919
      %v1943 = vunpack.c.l.b16 %v1920
      %v1944 = vunpack.c.h.b16 %v1920
      %v1945 = vunpack.c.l.b16 %v1921
      %v1946 = vunpack.c.h.b16 %v1921
      %v1947 = vunpack.c.l.b16 %v1922
      %v1948 = vunpack.c.h.b16 %v1922
      %v1949 = vunpack.c.l.b16 %v1923
      %v1950 = vunpack.c.h.b16 %v1923
      %v1951 = vunpack.c.l.b16 %v1924
      %v1952 = vunpack.c.h.b16 %v1924
      %v1953 = vunpack.c.l.b16 %v1925
      %v1954 = vunpack.c.h.b16 %v1925
      %v1955 = vunpack.c.l.b16 %v1926
      %v1956 = vunpack.c.h.b16 %v1926
      %v1957 = vpack.c.b16 %v1937, %v1937
      %v1958 = vpack.c.b16 %v1938, %v1938
      %v1959 = vpack.c.b16 %v1939, %v1939
      %v1960 = vpack.c.b16 %v1940, %v1940
      %v1961 = vpack.c.b16 %v1941, %v1941
      %v1962 = vpack.c.b16 %v1942, %v1942
      %v1963 = vpack.c.b16 %v1943, %v1943
      %v1964 = vpack.c.b16 %v1944, %v1944
      %v1965 = vpack.c.b16 %v1945, %v1945
      %v1966 = vpack.c.b16 %v1946, %v1946
      %v1967 = vpack.c.b16 %v1947, %v1947
      %v1968 = vpack.c.b16 %v1948, %v1948
      %v1969 = vpack.c.b16 %v1949, %v1949
      %v1970 = vpack.c.b16 %v1950, %v1950
      %v1971 = vpack.c.b16 %v1951, %v1951
      %v1972 = vpack.c.b16 %v1952, %v1952
      %v1973 = vpack.c.b16 %v1953, %v1953
      %v1974 = vpack.c.b16 %v1954, %v1954
      %v1975 = vpack.c.b16 %v1955, %v1955
      %v1976 = vpack.c.b16 %v1956, %v1956
      %vm1997 = vcmask 27648
      %1998 = vst.msk [vmem:[#allocation3 + $0x4] sm:$0xf] %vm1997, %v1957
      %1999 = vst.msk [vmem:[#allocation3 + $0x8] sm:$0xf] %vm1997, %v1958
      %2000 = vst.msk [vmem:[#allocation3 + $0x14] sm:$0xf] %vm1997, %v1959
      %2001 = vst.msk [vmem:[#allocation3 + $0x18] sm:$0xf] %vm1997, %v1960
      %2002 = vst.msk [vmem:[#allocation3 + $0x24] sm:$0xf] %vm1997, %v1961
      %2003 = vst.msk [vmem:[#allocation3 + $0x28] sm:$0xf] %vm1997, %v1962
      %2004 = vst.msk [vmem:[#allocation3 + $0x34] sm:$0xf] %vm1997, %v1963
      %2005 = vst.msk [vmem:[#allocation3 + $0x38] sm:$0xf] %vm1997, %v1964
      %2006 = vst.msk [vmem:[#allocation3 + $0x44] sm:$0xf] %vm1997, %v1965
      %2007 = vst.msk [vmem:[#allocation3 + $0x48] sm:$0xf] %vm1997, %v1966
      %2008 = vst.msk [vmem:[#allocation3 + $0x54] sm:$0xf] %vm1997, %v1967
      %2009 = vst.msk [vmem:[#allocation3 + $0x58] sm:$0xf] %vm1997, %v1968
      %2010 = vst.msk [vmem:[#allocation3 + $0x64] sm:$0xf] %vm1997, %v1969
      %2011 = vst.msk [vmem:[#allocation3 + $0x68] sm:$0xf] %vm1997, %v1970
      %2012 = vst.msk [vmem:[#allocation3 + $0x74] sm:$0xf] %vm1997, %v1971
      %2013 = vst.msk [vmem:[#allocation3 + $0x78] sm:$0xf] %vm1997, %v1972
      %2014 = vst.msk [vmem:[#allocation3 + $0x84] sm:$0xf] %vm1997, %v1973
      %2015 = vst.msk [vmem:[#allocation3 + $0x88] sm:$0xf] %vm1997, %v1974
      %2016 = vst.msk [vmem:[#allocation3 + $0x94] sm:$0xf] %vm1997, %v1975
      %2017 = vst.msk [vmem:[#allocation3 + $0x98] sm:$0xf] %vm1997, %v1976
      // Predicated region
      $region53: #{sphere_res_block.1} parent=47 // pred_check
        %p2018 = pneg %p301
      $region54: #{sphere_res_block.1} parent=47 // pred_check_branch
        %2020 = sbr.rel (%p2018) target = $region56
      $region55: #{sphere_res_block.1} parent=47 // pred_region
        %2021 = vst.msk [vmem:[#allocation3] sm:$0xf] %vm1997, 0
        %2022 = vst.msk [vmem:[#allocation3 + $0x4] sm:$0xf] %vm1997, 0
        %2023 = vst.msk [vmem:[#allocation3 + $0x8] sm:$0xf] %vm1997, 0
        %vm2024 = vcmask 24576
        %2025 = vst.msk [vmem:[#allocation3 + $0xc] sm:$0x1] %vm2024, 0
      $region56: #{sphere_res_block.1} parent=47 // pred_fallthru
        _
      %p2026 = scmp.eq.s32.totalorder %s23, 1
      // Predicated region
      $region57: #{sphere_res_block.1} parent=47 // pred_check
        %p2027 = pneg %p2026
      $region58: #{sphere_res_block.1} parent=47 // pred_check_branch
        %2029 = sbr.rel (%p2027) target = $region60
      $region59: #{sphere_res_block.1} parent=47 // pred_region
        %s2030 = scalar_lea.vmem [#allocation3], 144
        %2031 = vst.msk [vmem:[%s2030] sm:$0xf] %vm1997, 0
        %2032 = vst.msk [vmem:[%s2030 + $0x4] sm:$0xf] %vm1997, 0
        %2033 = vst.msk [vmem:[%s2030 + $0x8] sm:$0xf] %vm1997, 0
        %vm2034 = vcmask 24576
        %2035 = vst.msk [vmem:[%s2030 + $0xc] sm:$0x1] %vm2034, 0
      $region60: #{sphere_res_block.1} parent=47 // pred_fallthru
        _
      %v2036 = vld [vmem:[#allocation3] sm:$0xf]
      %v2037 = vld [vmem:[#allocation3 + $0x4] sm:$0xf]
      %v2038 = vld [vmem:[#allocation3 + $0x8] sm:$0xf]
      %v2039 = vld [vmem:[#allocation3 + $0xc] sm:$0x1]
      %v2040 = vld [vmem:[#allocation3 + $0x10] sm:$0xf]
      %v2041 = vld [vmem:[#allocation3 + $0x14] sm:$0xf]
      %v2042 = vld [vmem:[#allocation3 + $0x18] sm:$0xf]
      %v2043 = vld [vmem:[#allocation3 + $0x1c] sm:$0x1]
      %v2044 = vld [vmem:[#allocation3 + $0x20] sm:$0xf]
      %v2045 = vld [vmem:[#allocation3 + $0x24] sm:$0xf]
      %v2046 = vld [vmem:[#allocation3 + $0x28] sm:$0xf]
      %v2047 = vld [vmem:[#allocation3 + $0x2c] sm:$0x1]
      %v2048 = vld [vmem:[#allocation3 + $0x30] sm:$0xf]
      %v2049 = vld [vmem:[#allocation3 + $0x34] sm:$0xf]
      %v2050 = vld [vmem:[#allocation3 + $0x38] sm:$0xf]
      %v2051 = vld [vmem:[#allocation3 + $0x3c] sm:$0x1]
      %v2052 = vld [vmem:[#allocation3 + $0x40] sm:$0xf]
      %v2053 = vld [vmem:[#allocation3 + $0x44] sm:$0xf]
      %v2054 = vld [vmem:[#allocation3 + $0x48] sm:$0xf]
      %v2055 = vld [vmem:[#allocation3 + $0x4c] sm:$0x1]
      %v2056 = vld [vmem:[#allocation3 + $0x50] sm:$0xf]
      %v2057 = vld [vmem:[#allocation3 + $0x54] sm:$0xf]
      %v2058 = vld [vmem:[#allocation3 + $0x58] sm:$0xf]
      %v2059 = vld [vmem:[#allocation3 + $0x5c] sm:$0x1]
      %v2060 = vld [vmem:[#allocation3 + $0x60] sm:$0xf]
      %v2061 = vld [vmem:[#allocation3 + $0x64] sm:$0xf]
      %v2062 = vld [vmem:[#allocation3 + $0x68] sm:$0xf]
      %v2063 = vld [vmem:[#allocation3 + $0x6c] sm:$0x1]
      %v2064 = vld [vmem:[#allocation3 + $0x70] sm:$0xf]
      %v2065 = vld [vmem:[#allocation3 + $0x74] sm:$0xf]
      %v2066 = vld [vmem:[#allocation3 + $0x78] sm:$0xf]
      %v2067 = vld [vmem:[#allocation3 + $0x7c] sm:$0x1]
      %v2068 = vld [vmem:[#allocation3 + $0x80] sm:$0xf]
      %v2069 = vld [vmem:[#allocation3 + $0x84] sm:$0xf]
      %v2070 = vld [vmem:[#allocation3 + $0x88] sm:$0xf]
      %v2071 = vld [vmem:[#allocation3 + $0x8c] sm:$0x1]
      %v2072 = vld [vmem:[#allocation3 + $0x90] sm:$0xf]
      %v2073 = vld [vmem:[#allocation3 + $0x94] sm:$0xf]
      %v2074 = vld [vmem:[#allocation3 + $0x98] sm:$0xf]
      %v2075 = vld [vmem:[#allocation3 + $0x9c] sm:$0x1]
      %v2100 = vunpack.c.l.b16 %v2036
      %v2101 = vunpack.c.l.b16 %v2037
      %v2102 = vunpack.c.l.b16 %v2038
      %v2103 = vunpack.c.l.b16 %v2040
      %v2104 = vunpack.c.l.b16 %v2041
      %v2105 = vunpack.c.l.b16 %v2042
      %v2106 = vunpack.c.l.b16 %v2044
      %v2107 = vunpack.c.l.b16 %v2045
      %v2108 = vunpack.c.l.b16 %v2046
      %v2109 = vunpack.c.l.b16 %v2048
      %v2110 = vunpack.c.l.b16 %v2049
      %v2111 = vunpack.c.l.b16 %v2050
      %v2112 = vunpack.c.l.b16 %v2052
      %v2113 = vunpack.c.l.b16 %v2053
      %v2114 = vunpack.c.l.b16 %v2054
      %v2115 = vunpack.c.l.b16 %v2056
      %v2116 = vunpack.c.l.b16 %v2057
      %v2117 = vunpack.c.l.b16 %v2058
      %v2118 = vunpack.c.l.b16 %v2060
      %v2119 = vunpack.c.l.b16 %v2061
      %v2120 = vunpack.c.l.b16 %v2062
      %v2121 = vunpack.c.l.b16 %v2064
      %v2122 = vunpack.c.l.b16 %v2065
      %v2123 = vunpack.c.l.b16 %v2066
      %v2124 = vpack.c.b16 %v2101, %v2100
      %v2125 = vpack.c.b16 %v2102, %v2102
      %v2126 = vpack.c.b16 %v2104, %v2103
      %v2127 = vpack.c.b16 %v2105, %v2105
      %v2128 = vpack.c.b16 %v2107, %v2106
      %v2129 = vpack.c.b16 %v2108, %v2108
      %v2130 = vpack.c.b16 %v2110, %v2109
      %v2131 = vpack.c.b16 %v2111, %v2111
      %v2132 = vpack.c.b16 %v2113, %v2112
      %v2133 = vpack.c.b16 %v2114, %v2114
      %v2134 = vpack.c.b16 %v2116, %v2115
      %v2135 = vpack.c.b16 %v2117, %v2117
      %v2136 = vpack.c.b16 %v2119, %v2118
      %v2137 = vpack.c.b16 %v2120, %v2120
      %v2138 = vpack.c.b16 %v2122, %v2121
      %v2139 = vpack.c.b16 %v2123, %v2123
      %v2140 = vpack.c.b16 %v2102, %v2101
      %v2141 = vpack.c.b16 %v2105, %v2104
      %v2142 = vpack.c.b16 %v2108, %v2107
      %v2143 = vpack.c.b16 %v2111, %v2110
      %v2144 = vpack.c.b16 %v2114, %v2113
      %v2145 = vpack.c.b16 %v2117, %v2116
      %v2146 = vpack.c.b16 %v2120, %v2119
      %v2147 = vpack.c.b16 %v2123, %v2122
      %v2149 = vshrl.u32 %v2140, 16
      %v2151 = vrot.slane %v2149, 4
      %v2152 = vshll.u32 %v2140, 16
      %v2154 = vrot.slane %v2152, 5
      %v2155 = vor.u32 %v2151, %v2154
      %v2157 = vshrl.u32 %v2141, 16
      %v2159 = vrot.slane %v2157, 4
      %v2160 = vshll.u32 %v2141, 16
      %v2162 = vrot.slane %v2160, 5
      %v2163 = vor.u32 %v2159, %v2162
      %v2165 = vshrl.u32 %v2142, 16
      %v2167 = vrot.slane %v2165, 4
      %v2168 = vshll.u32 %v2142, 16
      %v2170 = vrot.slane %v2168, 5
      %v2171 = vor.u32 %v2167, %v2170
      %v2173 = vshrl.u32 %v2143, 16
      %v2175 = vrot.slane %v2173, 4
      %v2176 = vshll.u32 %v2143, 16
      %v2178 = vrot.slane %v2176, 5
      %v2179 = vor.u32 %v2175, %v2178
      %v2181 = vshrl.u32 %v2144, 16
      %v2183 = vrot.slane %v2181, 4
      %v2184 = vshll.u32 %v2144, 16
      %v2186 = vrot.slane %v2184, 5
      %v2187 = vor.u32 %v2183, %v2186
      %v2189 = vshrl.u32 %v2145, 16
      %v2191 = vrot.slane %v2189, 4
      %v2192 = vshll.u32 %v2145, 16
      %v2194 = vrot.slane %v2192, 5
      %v2195 = vor.u32 %v2191, %v2194
      %v2197 = vshrl.u32 %v2146, 16
      %v2199 = vrot.slane %v2197, 4
      %v2200 = vshll.u32 %v2146, 16
      %v2202 = vrot.slane %v2200, 5
      %v2203 = vor.u32 %v2199, %v2202
      %v2205 = vshrl.u32 %v2147, 16
      %v2207 = vrot.slane %v2205, 4
      %v2208 = vshll.u32 %v2147, 16
      %v2210 = vrot.slane %v2208, 5
      %v2211 = vor.u32 %v2207, %v2210
      %2212 = vrot.lane.b32.xlu0 %v2155, 4
      %v2213 = vpop.permute.xlu0 %2212
      %2214 = vrot.lane.b32.xlu0 %v2163, 4
      %v2215 = vpop.permute.xlu0 %2214
      %2216 = vrot.lane.b32.xlu0 %v2171, 4
      %v2217 = vpop.permute.xlu0 %2216
      %2218 = vrot.lane.b32.xlu0 %v2179, 4
      %v2219 = vpop.permute.xlu0 %2218
      %2220 = vrot.lane.b32.xlu0 %v2187, 4
      %v2221 = vpop.permute.xlu0 %2220
      %2222 = vrot.lane.b32.xlu0 %v2195, 4
      %v2223 = vpop.permute.xlu0 %2222
      %2224 = vrot.lane.b32.xlu0 %v2203, 4
      %v2225 = vpop.permute.xlu0 %2224
      %2226 = vrot.lane.b32.xlu0 %v2211, 4
      %v2227 = vpop.permute.xlu0 %2226
      %v2236 = vunpack.c.l.b16 %v2039
      %v2237 = vunpack.c.l.b16 %v2043
      %v2238 = vunpack.c.l.b16 %v2047
      %v2239 = vunpack.c.l.b16 %v2051
      %v2240 = vunpack.c.l.b16 %v2055
      %v2241 = vunpack.c.l.b16 %v2059
      %v2242 = vunpack.c.l.b16 %v2063
      %v2243 = vunpack.c.l.b16 %v2067
      %v2244 = vpack.c.b16 %v2236, %v2236
      %v2245 = vpack.c.b16 %v2237, %v2237
      %v2246 = vpack.c.b16 %v2238, %v2238
      %v2247 = vpack.c.b16 %v2239, %v2239
      %v2248 = vpack.c.b16 %v2240, %v2240
      %v2249 = vpack.c.b16 %v2241, %v2241
      %v2250 = vpack.c.b16 %v2242, %v2242
      %v2251 = vpack.c.b16 %v2243, %v2243
      %v2252 = vrot.slane %v2140, 5
      %v2253 = vrot.slane %v2244, 5
      %v2254 = vsel %vm974, %v2252, %v2253
      %v2255 = vrot.slane %v2141, 5
      %v2256 = vrot.slane %v2245, 5
      %v2257 = vsel %vm974, %v2255, %v2256
      %v2258 = vrot.slane %v2142, 5
      %v2259 = vrot.slane %v2246, 5
      %v2260 = vsel %vm974, %v2258, %v2259
      %v2261 = vrot.slane %v2143, 5
      %v2262 = vrot.slane %v2247, 5
      %v2263 = vsel %vm974, %v2261, %v2262
      %v2264 = vrot.slane %v2144, 5
      %v2265 = vrot.slane %v2248, 5
      %v2266 = vsel %vm974, %v2264, %v2265
      %v2267 = vrot.slane %v2145, 5
      %v2268 = vrot.slane %v2249, 5
      %v2269 = vsel %vm974, %v2267, %v2268
      %v2270 = vrot.slane %v2146, 5
      %v2271 = vrot.slane %v2250, 5
      %v2272 = vsel %vm974, %v2270, %v2271
      %v2273 = vrot.slane %v2147, 5
      %v2274 = vrot.slane %v2251, 5
      %v2275 = vsel %vm974, %v2273, %v2274
      %2276 = vrot.lane.b32.xlu0 %v2252, 8
      %v2277 = vpop.permute.xlu0 %2276
      %2278 = vrot.lane.b32.xlu0 %v2254, 8
      %v2279 = vpop.permute.xlu0 %2278
      %2280 = vrot.lane.b32.xlu0 %v2255, 8
      %v2281 = vpop.permute.xlu0 %2280
      %2282 = vrot.lane.b32.xlu0 %v2257, 8
      %v2283 = vpop.permute.xlu0 %2282
      %2284 = vrot.lane.b32.xlu0 %v2258, 8
      %v2285 = vpop.permute.xlu0 %2284
      %2286 = vrot.lane.b32.xlu0 %v2260, 8
      %v2287 = vpop.permute.xlu0 %2286
      %2288 = vrot.lane.b32.xlu0 %v2261, 8
      %v2289 = vpop.permute.xlu0 %2288
      %2290 = vrot.lane.b32.xlu0 %v2263, 8
      %v2291 = vpop.permute.xlu0 %2290
      %2292 = vrot.lane.b32.xlu0 %v2264, 8
      %v2293 = vpop.permute.xlu0 %2292
      %2294 = vrot.lane.b32.xlu0 %v2266, 8
      %v2295 = vpop.permute.xlu0 %2294
      %2296 = vrot.lane.b32.xlu0 %v2267, 8
      %v2297 = vpop.permute.xlu0 %2296
      %2298 = vrot.lane.b32.xlu0 %v2269, 8
      %v2299 = vpop.permute.xlu0 %2298
      %2300 = vrot.lane.b32.xlu0 %v2270, 8
      %v2301 = vpop.permute.xlu0 %2300
      %2302 = vrot.lane.b32.xlu0 %v2272, 8
      %v2303 = vpop.permute.xlu0 %2302
      %2304 = vrot.lane.b32.xlu0 %v2273, 8
      %v2305 = vpop.permute.xlu0 %2304
      %2306 = vrot.lane.b32.xlu0 %v2275, 8
      %v2307 = vpop.permute.xlu0 %2306
      %v2310 = vsel %vm1045, %v2124, %v2213
      %v2312 = vsel %vm1045, %v2125, %v2213
      %v2315 = vsel %vm1045, %v2126, %v2215
      %v2317 = vsel %vm1045, %v2127, %v2215
      %v2320 = vsel %vm1045, %v2128, %v2217
      %v2322 = vsel %vm1045, %v2129, %v2217
      %v2325 = vsel %vm1045, %v2130, %v2219
      %v2327 = vsel %vm1045, %v2131, %v2219
      %v2330 = vsel %vm1045, %v2132, %v2221
      %v2332 = vsel %vm1045, %v2133, %v2221
      %v2335 = vsel %vm1045, %v2134, %v2223
      %v2337 = vsel %vm1045, %v2135, %v2223
      %v2340 = vsel %vm1045, %v2136, %v2225
      %v2342 = vsel %vm1045, %v2137, %v2225
      %v2345 = vsel %vm1045, %v2138, %v2227
      %v2347 = vsel %vm1045, %v2139, %v2227
      %v2349 = vsel %vm1096, %v2310, %v2277
      %v2351 = vsel %vm1096, %v2312, %v2279
      %v2353 = vsel %vm1096, %v2315, %v2281
      %v2355 = vsel %vm1096, %v2317, %v2283
      %v2357 = vsel %vm1096, %v2320, %v2285
      %v2359 = vsel %vm1096, %v2322, %v2287
      %v2361 = vsel %vm1096, %v2325, %v2289
      %v2363 = vsel %vm1096, %v2327, %v2291
      %v2365 = vsel %vm1096, %v2330, %v2293
      %v2367 = vsel %vm1096, %v2332, %v2295
      %v2369 = vsel %vm1096, %v2335, %v2297
      %v2371 = vsel %vm1096, %v2337, %v2299
      %v2373 = vsel %vm1096, %v2340, %v2301
      %v2375 = vsel %vm1096, %v2342, %v2303
      %v2377 = vsel %vm1096, %v2345, %v2305
      %v2379 = vsel %vm1096, %v2347, %v2307
      %v2380 = vshrl.u32 %v2349, 16
      %v2382 = vrot.slane %v2380, 3
      %v2383 = vshll.u32 %v2349, 16
      %v2385 = vrot.slane %v2383, 4
      %v2386 = vor.u32 %v2382, %v2385
      %v2387 = vshrl.u32 %v2351, 16
      %v2389 = vrot.slane %v2387, 3
      %v2390 = vshll.u32 %v2351, 16
      %v2392 = vrot.slane %v2390, 4
      %v2393 = vor.u32 %v2389, %v2392
      %v2394 = vsel %vm1137, %v2386, %v2393
      %v2395 = vshrl.u32 %v2353, 16
      %v2397 = vrot.slane %v2395, 3
      %v2398 = vshll.u32 %v2353, 16
      %v2400 = vrot.slane %v2398, 4
      %v2401 = vor.u32 %v2397, %v2400
      %v2402 = vshrl.u32 %v2355, 16
      %v2404 = vrot.slane %v2402, 3
      %v2405 = vshll.u32 %v2355, 16
      %v2407 = vrot.slane %v2405, 4
      %v2408 = vor.u32 %v2404, %v2407
      %v2409 = vsel %vm1137, %v2401, %v2408
      %v2410 = vshrl.u32 %v2357, 16
      %v2412 = vrot.slane %v2410, 3
      %v2413 = vshll.u32 %v2357, 16
      %v2415 = vrot.slane %v2413, 4
      %v2416 = vor.u32 %v2412, %v2415
      %v2417 = vshrl.u32 %v2359, 16
      %v2419 = vrot.slane %v2417, 3
      %v2420 = vshll.u32 %v2359, 16
      %v2422 = vrot.slane %v2420, 4
      %v2423 = vor.u32 %v2419, %v2422
      %v2424 = vsel %vm1137, %v2416, %v2423
      %v2425 = vshrl.u32 %v2361, 16
      %v2427 = vrot.slane %v2425, 3
      %v2428 = vshll.u32 %v2361, 16
      %v2430 = vrot.slane %v2428, 4
      %v2431 = vor.u32 %v2427, %v2430
      %v2432 = vshrl.u32 %v2363, 16
      %v2434 = vrot.slane %v2432, 3
      %v2435 = vshll.u32 %v2363, 16
      %v2437 = vrot.slane %v2435, 4
      %v2438 = vor.u32 %v2434, %v2437
      %v2439 = vsel %vm1137, %v2431, %v2438
      %v2440 = vshrl.u32 %v2365, 16
      %v2442 = vrot.slane %v2440, 3
      %v2443 = vshll.u32 %v2365, 16
      %v2445 = vrot.slane %v2443, 4
      %v2446 = vor.u32 %v2442, %v2445
      %v2447 = vshrl.u32 %v2367, 16
      %v2449 = vrot.slane %v2447, 3
      %v2450 = vshll.u32 %v2367, 16
      %v2452 = vrot.slane %v2450, 4
      %v2453 = vor.u32 %v2449, %v2452
      %v2454 = vsel %vm1137, %v2446, %v2453
      %v2455 = vshrl.u32 %v2369, 16
      %v2457 = vrot.slane %v2455, 3
      %v2458 = vshll.u32 %v2369, 16
      %v2460 = vrot.slane %v2458, 4
      %v2461 = vor.u32 %v2457, %v2460
      %v2462 = vshrl.u32 %v2371, 16
      %v2464 = vrot.slane %v2462, 3
      %v2465 = vshll.u32 %v2371, 16
      %v2467 = vrot.slane %v2465, 4
      %v2468 = vor.u32 %v2464, %v2467
      %v2469 = vsel %vm1137, %v2461, %v2468
      %v2470 = vshrl.u32 %v2373, 16
      %v2472 = vrot.slane %v2470, 3
      %v2473 = vshll.u32 %v2373, 16
      %v2475 = vrot.slane %v2473, 4
      %v2476 = vor.u32 %v2472, %v2475
      %v2477 = vshrl.u32 %v2375, 16
      %v2479 = vrot.slane %v2477, 3
      %v2480 = vshll.u32 %v2375, 16
      %v2482 = vrot.slane %v2480, 4
      %v2483 = vor.u32 %v2479, %v2482
      %v2484 = vsel %vm1137, %v2476, %v2483
      %v2485 = vshrl.u32 %v2377, 16
      %v2487 = vrot.slane %v2485, 3
      %v2488 = vshll.u32 %v2377, 16
      %v2490 = vrot.slane %v2488, 4
      %v2491 = vor.u32 %v2487, %v2490
      %v2492 = vshrl.u32 %v2379, 16
      %v2494 = vrot.slane %v2492, 3
      %v2495 = vshll.u32 %v2379, 16
      %v2497 = vrot.slane %v2495, 4
      %v2498 = vor.u32 %v2494, %v2497
      %v2499 = vsel %vm1137, %v2491, %v2498
      %v2500 = vld [vmem:[%s4] sm:$0xf]
      %v2501 = vld [vmem:[%s4 + $0x4] sm:$0x3]
      %v2505 = vunpack.c.l.b16 %v2068
      %v2506 = vunpack.c.l.b16 %v2069
      %v2507 = vunpack.c.l.b16 %v2070
      %v2508 = vpack.c.b16 %v2506, %v2505
      %v2509 = vpack.c.b16 %v2507, %v2507
      %v2510 = vpack.c.b16 %v2507, %v2506
      %v2512 = vshrl.u32 %v2510, 16
      %v2514 = vrot.slane %v2512, 4
      %v2515 = vshll.u32 %v2510, 16
      %v2517 = vrot.slane %v2515, 5
      %v2518 = vor.u32 %v2514, %v2517
      %2519 = vrot.lane.b32.xlu0 %v2518, 4
      %v2520 = vpop.permute.xlu0 %2519
      %v2522 = vunpack.c.l.b16 %v2071
      %v2523 = vpack.c.b16 %v2522, %v2522
      %v2524 = vrot.slane %v2510, 5
      %v2525 = vrot.slane %v2523, 5
      %v2526 = vsel %vm974, %v2524, %v2525
      %2527 = vrot.lane.b32.xlu0 %v2524, 8
      %v2528 = vpop.permute.xlu0 %2527
      %2529 = vrot.lane.b32.xlu0 %v2526, 8
      %v2530 = vpop.permute.xlu0 %2529
      %v2533 = vsel %vm1045, %v2508, %v2520
      %v2535 = vsel %vm1045, %v2509, %v2520
      %v2537 = vsel %vm1096, %v2533, %v2528
      %v2539 = vsel %vm1096, %v2535, %v2530
      %v2540 = vshrl.u32 %v2537, 16
      %v2542 = vrot.slane %v2540, 3
      %v2543 = vshll.u32 %v2537, 16
      %v2545 = vrot.slane %v2543, 4
      %v2546 = vor.u32 %v2542, %v2545
      %v2547 = vshrl.u32 %v2539, 16
      %v2549 = vrot.slane %v2547, 3
      %v2550 = vshll.u32 %v2539, 16
      %v2552 = vrot.slane %v2550, 4
      %v2553 = vor.u32 %v2549, %v2552
      %v2554 = vsel %vm1137, %v2546, %v2553
      %s2555 = scalar_lea.vmem %s4, 8
      %v2556 = vld [vmem:[%s2555] sm:$0xf]
      %v2557 = vld [vmem:[%s2555 + $0x4] sm:$0x3]
      %v2560 = vunpack.c.l.b16 %v2556
      %v2561 = vunpack.c.l.b16 %v2557
      %v2562 = vpack.c.b16 %v2561, %v2560
      %v2564 = vsel %vm1351, %v2409, 0
      %v2567 = vsel %vm1351, %v2424, 0
      %v2570 = vsel %vm1351, %v2439, 0
      %v2573 = vsel %vm1351, %v2454, 0
      %v2576 = vsel %vm1351, %v2469, 0
      %v2579 = vsel %vm1351, %v2484, 0
      %v2582 = vsel %vm1351, %v2499, 0
      %v2585 = vsel %vm1351, %v2554, 0
      %v2588 = vsel %vm1382, %v2562, 0
      %2590 = vmatprep.subr.bf16.mxu0 0
      %2591 = vmatpush1.bf16.msra.mxu0 0
      %2592 = vmatprep.subr.bf16.mxu0 0
      %2593 = vmatpush1.bf16.msra.mxu0 0
      %2594 = vmatprep.subr.bf16.mxu0 0
      %2595 = vmatpush1.bf16.msra.mxu0 0
      %2596 = vmatprep.subr.bf16.mxu0 0
      %2597 = vmatpush1.bf16.msra.mxu0 0
      %2598 = vmatprep.subr.bf16.mxu0 0
      %2599 = vmatpush1.bf16.msra.mxu0 0
      %2600 = vmatprep.subr.bf16.mxu0 0
      %2601 = vmatpush1.bf16.msra.mxu0 0
      %2602 = vmatprep.subr.bf16.mxu0 0
      %2603 = vmatpush1.bf16.msra.mxu0 0
      %2604 = vmatprep.subr.bf16.mxu0 0
      %2605 = vmatpush1.bf16.msra.mxu0 %v2588
      %2606 = vmatprep.subr.bf16.mxu0 0
      %2607 = vmatpush2.bf16.msra.mxu0 0
      %2608 = vmatprep.subr.bf16.mxu0 0
      %2609 = vmatpush2.bf16.msra.mxu0 0
      %2610 = vmatprep.subr.bf16.mxu0 0
      %2611 = vmatpush2.bf16.msra.mxu0 0
      %2612 = vmatprep.subr.bf16.mxu0 0
      %2613 = vmatpush2.bf16.msra.mxu0 0
      %2614 = vmatprep.subr.bf16.mxu0 0
      %2615 = vmatpush2.bf16.msra.mxu0 0
      %2616 = vmatprep.subr.bf16.mxu0 0
      %2617 = vmatpush2.bf16.msra.mxu0 0
      %2618 = vmatprep.subr.bf16.mxu0 0
      %2619 = vmatpush2.bf16.msra.mxu0 0
      %2620 = vmatprep.subr.bf16.mxu0 0
      %2621 = vmatpush2.bf16.msra.mxu0 0
      %2622 = vmatprep.mubr.bf16.mxu0 0
      %2623 = vmatmul.mubr.bf16.gmra.mxu0 %v2564
      %v2624 = vpop.f32.mrf.mxu0
      %v2625 = vadd.f32 0.0, %v2624
      %v2626 = vpop.f32.mrf.mxu0
      %v2627 = vpop.f32.mrf.mxu0
      %v2628 = vadd.f32 0.0, %v2627
      %v2629 = vpop.f32.mrf.mxu0
      %2630 = vmatprep.mubr.bf16.mxu0 0
      %2631 = vmatmul.mubr.bf16.gmra.mxu0 %v2567
      %v2632 = vpop.f32.mrf.mxu0
      %v2633 = vadd.f32 0.0, %v2632
      %v2634 = vpop.f32.mrf.mxu0
      %v2635 = vpop.f32.mrf.mxu0
      %v2636 = vadd.f32 0.0, %v2635
      %v2637 = vpop.f32.mrf.mxu0
      %2638 = vmatprep.mubr.bf16.mxu0 0
      %2639 = vmatmul.mubr.bf16.gmra.mxu0 %v2570
      %v2640 = vpop.f32.mrf.mxu0
      %v2641 = vadd.f32 0.0, %v2640
      %v2642 = vpop.f32.mrf.mxu0
      %v2643 = vpop.f32.mrf.mxu0
      %v2644 = vadd.f32 0.0, %v2643
      %v2645 = vpop.f32.mrf.mxu0
      %2646 = vmatprep.mubr.bf16.mxu0 0
      %2647 = vmatmul.mubr.bf16.gmra.mxu0 %v2573
      %v2648 = vpop.f32.mrf.mxu0
      %v2649 = vadd.f32 0.0, %v2648
      %v2650 = vpop.f32.mrf.mxu0
      %v2651 = vpop.f32.mrf.mxu0
      %v2652 = vadd.f32 0.0, %v2651
      %v2653 = vpop.f32.mrf.mxu0
      %2654 = vmatprep.mubr.bf16.mxu0 0
      %2655 = vmatmul.mubr.bf16.gmra.mxu0 %v2576
      %v2656 = vpop.f32.mrf.mxu0
      %v2657 = vadd.f32 0.0, %v2656
      %v2658 = vpop.f32.mrf.mxu0
      %v2659 = vpop.f32.mrf.mxu0
      %v2660 = vadd.f32 0.0, %v2659
      %v2661 = vpop.f32.mrf.mxu0
      %2662 = vmatprep.mubr.bf16.mxu0 0
      %2663 = vmatmul.mubr.bf16.gmra.mxu0 %v2579
      %v2664 = vpop.f32.mrf.mxu0
      %v2665 = vadd.f32 0.0, %v2664
      %v2666 = vpop.f32.mrf.mxu0
      %v2667 = vpop.f32.mrf.mxu0
      %v2668 = vadd.f32 0.0, %v2667
      %v2669 = vpop.f32.mrf.mxu0
      %2670 = vmatprep.mubr.bf16.mxu0 0
      %2671 = vmatmul.mubr.bf16.gmra.mxu0 %v2582
      %v2672 = vpop.f32.mrf.mxu0
      %v2673 = vadd.f32 0.0, %v2672
      %v2674 = vpop.f32.mrf.mxu0
      %v2675 = vpop.f32.mrf.mxu0
      %v2676 = vadd.f32 0.0, %v2675
      %v2677 = vpop.f32.mrf.mxu0
      %2678 = vmatprep.mubr.bf16.mxu0 0
      %2679 = vmatmul.mubr.bf16.gmra.mxu0 %v2585
      %v2680 = vpop.f32.mrf.mxu0
      %v2681 = vadd.f32 0.0, %v2680
      %v2682 = vpop.f32.mrf.mxu0
      %v2683 = vpop.f32.mrf.mxu0
      %v2684 = vadd.f32 0.0, %v2683
      %v2685 = vpop.f32.mrf.mxu0
      %2686 = vdwg.mxu0
      %v2689 = vunpack.c.l.b16 %v2500
      %v2690 = vunpack.c.l.b16 %v2501
      %v2691 = vpack.c.b16 %v2690, %v2689
      %v2693 = vsel %vm1351, %v2394, 0
      %v2696 = vsel %vm1382, %v2691, 0
      %2698 = vmatprep.subr.bf16.mxu0 0
      %2699 = vmatpush1.bf16.msra.mxu0 0
      %2700 = vmatprep.subr.bf16.mxu0 0
      %2701 = vmatpush1.bf16.msra.mxu0 0
      %2702 = vmatprep.subr.bf16.mxu0 0
      %2703 = vmatpush1.bf16.msra.mxu0 0
      %2704 = vmatprep.subr.bf16.mxu0 0
      %2705 = vmatpush1.bf16.msra.mxu0 0
      %2706 = vmatprep.subr.bf16.mxu0 0
      %2707 = vmatpush1.bf16.msra.mxu0 0
      %2708 = vmatprep.subr.bf16.mxu0 0
      %2709 = vmatpush1.bf16.msra.mxu0 0
      %2710 = vmatprep.subr.bf16.mxu0 0
      %2711 = vmatpush1.bf16.msra.mxu0 0
      %2712 = vmatprep.subr.bf16.mxu0 0
      %2713 = vmatpush1.bf16.msra.mxu0 %v2696
      %2714 = vmatprep.subr.bf16.mxu0 0
      %2715 = vmatpush2.bf16.msra.mxu0 0
      %2716 = vmatprep.subr.bf16.mxu0 0
      %2717 = vmatpush2.bf16.msra.mxu0 0
      %2718 = vmatprep.subr.bf16.mxu0 0
      %2719 = vmatpush2.bf16.msra.mxu0 0
      %2720 = vmatprep.subr.bf16.mxu0 0
      %2721 = vmatpush2.bf16.msra.mxu0 0
      %2722 = vmatprep.subr.bf16.mxu0 0
      %2723 = vmatpush2.bf16.msra.mxu0 0
      %2724 = vmatprep.subr.bf16.mxu0 0
      %2725 = vmatpush2.bf16.msra.mxu0 0
      %2726 = vmatprep.subr.bf16.mxu0 0
      %2727 = vmatpush2.bf16.msra.mxu0 0
      %2728 = vmatprep.subr.bf16.mxu0 0
      %2729 = vmatpush2.bf16.msra.mxu0 0
      %2730 = vmatprep.mubr.bf16.mxu0 0
      %2731 = vmatmul.mubr.bf16.gmra.mxu0 %v2693
      %v2732 = vpop.f32.mrf.mxu0
      %v2733 = vadd.f32 %v2625, %v2732
      %v2734 = vpop.f32.mrf.mxu0
      %v2735 = vpop.f32.mrf.mxu0
      %v2736 = vadd.f32 %v2628, %v2735
      %v2737 = vpop.f32.mrf.mxu0
      %2738 = vmatprep.mubr.bf16.mxu0 0
      %2739 = vmatmul.mubr.bf16.gmra.mxu0 %v2564
      %v2740 = vpop.f32.mrf.mxu0
      %v2741 = vadd.f32 %v2633, %v2740
      %v2742 = vpop.f32.mrf.mxu0
      %v2743 = vpop.f32.mrf.mxu0
      %v2744 = vadd.f32 %v2636, %v2743
      %v2745 = vpop.f32.mrf.mxu0
      %2746 = vmatprep.mubr.bf16.mxu0 0
      %2747 = vmatmul.mubr.bf16.gmra.mxu0 %v2567
      %v2748 = vpop.f32.mrf.mxu0
      %v2749 = vadd.f32 %v2641, %v2748
      %v2750 = vpop.f32.mrf.mxu0
      %v2751 = vpop.f32.mrf.mxu0
      %v2752 = vadd.f32 %v2644, %v2751
      %v2753 = vpop.f32.mrf.mxu0
      %2754 = vmatprep.mubr.bf16.mxu0 0
      %2755 = vmatmul.mubr.bf16.gmra.mxu0 %v2570
      %v2756 = vpop.f32.mrf.mxu0
      %v2757 = vadd.f32 %v2649, %v2756
      %v2758 = vpop.f32.mrf.mxu0
      %v2759 = vpop.f32.mrf.mxu0
      %v2760 = vadd.f32 %v2652, %v2759
      %v2761 = vpop.f32.mrf.mxu0
      %2762 = vmatprep.mubr.bf16.mxu0 0
      %2763 = vmatmul.mubr.bf16.gmra.mxu0 %v2573
      %v2764 = vpop.f32.mrf.mxu0
      %v2765 = vadd.f32 %v2657, %v2764
      %v2766 = vpop.f32.mrf.mxu0
      %v2767 = vpop.f32.mrf.mxu0
      %v2768 = vadd.f32 %v2660, %v2767
      %v2769 = vpop.f32.mrf.mxu0
      %2770 = vmatprep.mubr.bf16.mxu0 0
      %2771 = vmatmul.mubr.bf16.gmra.mxu0 %v2576
      %v2772 = vpop.f32.mrf.mxu0
      %v2773 = vadd.f32 %v2665, %v2772
      %v2774 = vpop.f32.mrf.mxu0
      %v2775 = vpop.f32.mrf.mxu0
      %v2776 = vadd.f32 %v2668, %v2775
      %v2777 = vpop.f32.mrf.mxu0
      %2778 = vmatprep.mubr.bf16.mxu0 0
      %2779 = vmatmul.mubr.bf16.gmra.mxu0 %v2579
      %v2780 = vpop.f32.mrf.mxu0
      %v2781 = vadd.f32 %v2673, %v2780
      %v2782 = vpop.f32.mrf.mxu0
      %v2783 = vpop.f32.mrf.mxu0
      %v2784 = vadd.f32 %v2676, %v2783
      %v2785 = vpop.f32.mrf.mxu0
      %2786 = vmatprep.mubr.bf16.mxu0 0
      %2787 = vmatmul.mubr.bf16.gmra.mxu0 %v2582
      %v2788 = vpop.f32.mrf.mxu0
      %v2789 = vadd.f32 %v2681, %v2788
      %v2790 = vpop.f32.mrf.mxu0
      %v2791 = vpop.f32.mrf.mxu0
      %v2792 = vadd.f32 %v2684, %v2791
      %v2793 = vpop.f32.mrf.mxu0
      %2794 = vdwg.mxu0
      %v2798 = vunpack.c.l.b16 %v2072
      %v2799 = vunpack.c.l.b16 %v2073
      %v2800 = vunpack.c.l.b16 %v2074
      %v2801 = vpack.c.b16 %v2799, %v2798
      %v2802 = vpack.c.b16 %v2800, %v2800
      %v2803 = vpack.c.b16 %v2800, %v2799
      %v2805 = vshrl.u32 %v2803, 16
      %v2807 = vrot.slane %v2805, 4
      %v2808 = vshll.u32 %v2803, 16
      %v2810 = vrot.slane %v2808, 5
      %v2811 = vor.u32 %v2807, %v2810
      %2812 = vrot.lane.b32.xlu0 %v2811, 4
      %v2813 = vpop.permute.xlu0 %2812
      %v2815 = vunpack.c.l.b16 %v2075
      %v2816 = vpack.c.b16 %v2815, %v2815
      %v2817 = vrot.slane %v2803, 5
      %v2818 = vrot.slane %v2816, 5
      %v2819 = vsel %vm974, %v2817, %v2818
      %2820 = vrot.lane.b32.xlu0 %v2817, 8
      %v2821 = vpop.permute.xlu0 %2820
      %2822 = vrot.lane.b32.xlu0 %v2819, 8
      %v2823 = vpop.permute.xlu0 %2822
      %v2826 = vsel %vm1045, %v2801, %v2813
      %v2828 = vsel %vm1045, %v2802, %v2813
      %v2830 = vsel %vm1096, %v2826, %v2821
      %v2832 = vsel %vm1096, %v2828, %v2823
      %v2833 = vshrl.u32 %v2830, 16
      %v2835 = vrot.slane %v2833, 3
      %v2836 = vshll.u32 %v2830, 16
      %v2838 = vrot.slane %v2836, 4
      %v2839 = vor.u32 %v2835, %v2838
      %v2840 = vshrl.u32 %v2832, 16
      %v2842 = vrot.slane %v2840, 3
      %v2843 = vshll.u32 %v2832, 16
      %v2845 = vrot.slane %v2843, 4
      %v2846 = vor.u32 %v2842, %v2845
      %v2847 = vsel %vm1137, %v2839, %v2846
      %s2848 = scalar_lea.vmem %s4, 16
      %v2849 = vld [vmem:[%s2848] sm:$0xf]
      %v2850 = vld [vmem:[%s2848 + $0x4] sm:$0x3]
      %v2853 = vunpack.c.l.b16 %v2849
      %v2854 = vunpack.c.l.b16 %v2850
      %v2855 = vpack.c.b16 %v2854, %v2853
      %v2857 = vsel %vm1351, %v2847, 0
      %v2860 = vsel %vm1382, %v2855, 0
      %2862 = vmatprep.subr.bf16.mxu0 0
      %2863 = vmatpush1.bf16.msra.mxu0 0
      %2864 = vmatprep.subr.bf16.mxu0 0
      %2865 = vmatpush1.bf16.msra.mxu0 0
      %2866 = vmatprep.subr.bf16.mxu0 0
      %2867 = vmatpush1.bf16.msra.mxu0 0
      %2868 = vmatprep.subr.bf16.mxu0 0
      %2869 = vmatpush1.bf16.msra.mxu0 0
      %2870 = vmatprep.subr.bf16.mxu0 0
      %2871 = vmatpush1.bf16.msra.mxu0 0
      %2872 = vmatprep.subr.bf16.mxu0 0
      %2873 = vmatpush1.bf16.msra.mxu0 0
      %2874 = vmatprep.subr.bf16.mxu0 0
      %2875 = vmatpush1.bf16.msra.mxu0 0
      %2876 = vmatprep.subr.bf16.mxu0 0
      %2877 = vmatpush1.bf16.msra.mxu0 %v2860
      %2878 = vmatprep.subr.bf16.mxu0 0
      %2879 = vmatpush2.bf16.msra.mxu0 0
      %2880 = vmatprep.subr.bf16.mxu0 0
      %2881 = vmatpush2.bf16.msra.mxu0 0
      %2882 = vmatprep.subr.bf16.mxu0 0
      %2883 = vmatpush2.bf16.msra.mxu0 0
      %2884 = vmatprep.subr.bf16.mxu0 0
      %2885 = vmatpush2.bf16.msra.mxu0 0
      %2886 = vmatprep.subr.bf16.mxu0 0
      %2887 = vmatpush2.bf16.msra.mxu0 0
      %2888 = vmatprep.subr.bf16.mxu0 0
      %2889 = vmatpush2.bf16.msra.mxu0 0
      %2890 = vmatprep.subr.bf16.mxu0 0
      %2891 = vmatpush2.bf16.msra.mxu0 0
      %2892 = vmatprep.subr.bf16.mxu0 0
      %2893 = vmatpush2.bf16.msra.mxu0 0
      %2894 = vmatprep.mubr.bf16.mxu0 0
      %2895 = vmatmul.mubr.bf16.gmra.mxu0 %v2567
      %v2896 = vpop.f32.mrf.mxu0
      %v2897 = vadd.f32 0.0, %v2896
      %v2898 = vpop.f32.mrf.mxu0
      %v2899 = vpop.f32.mrf.mxu0
      %v2900 = vadd.f32 0.0, %v2899
      %v2901 = vpop.f32.mrf.mxu0
      %2902 = vmatprep.mubr.bf16.mxu0 0
      %2903 = vmatmul.mubr.bf16.gmra.mxu0 %v2570
      %v2904 = vpop.f32.mrf.mxu0
      %v2905 = vadd.f32 0.0, %v2904
      %v2906 = vpop.f32.mrf.mxu0
      %v2907 = vpop.f32.mrf.mxu0
      %v2908 = vadd.f32 0.0, %v2907
      %v2909 = vpop.f32.mrf.mxu0
      %2910 = vmatprep.mubr.bf16.mxu0 0
      %2911 = vmatmul.mubr.bf16.gmra.mxu0 %v2573
      %v2912 = vpop.f32.mrf.mxu0
      %v2913 = vadd.f32 0.0, %v2912
      %v2914 = vpop.f32.mrf.mxu0
      %v2915 = vpop.f32.mrf.mxu0
      %v2916 = vadd.f32 0.0, %v2915
      %v2917 = vpop.f32.mrf.mxu0
      %2918 = vmatprep.mubr.bf16.mxu0 0
      %2919 = vmatmul.mubr.bf16.gmra.mxu0 %v2576
      %v2920 = vpop.f32.mrf.mxu0
      %v2921 = vadd.f32 0.0, %v2920
      %v2922 = vpop.f32.mrf.mxu0
      %v2923 = vpop.f32.mrf.mxu0
      %v2924 = vadd.f32 0.0, %v2923
      %v2925 = vpop.f32.mrf.mxu0
      %2926 = vmatprep.mubr.bf16.mxu0 0
      %2927 = vmatmul.mubr.bf16.gmra.mxu0 %v2579
      %v2928 = vpop.f32.mrf.mxu0
      %v2929 = vadd.f32 0.0, %v2928
      %v2930 = vpop.f32.mrf.mxu0
      %v2931 = vpop.f32.mrf.mxu0
      %v2932 = vadd.f32 0.0, %v2931
      %v2933 = vpop.f32.mrf.mxu0
      %2934 = vmatprep.mubr.bf16.mxu0 0
      %2935 = vmatmul.mubr.bf16.gmra.mxu0 %v2582
      %v2936 = vpop.f32.mrf.mxu0
      %v2937 = vadd.f32 0.0, %v2936
      %v2938 = vpop.f32.mrf.mxu0
      %v2939 = vpop.f32.mrf.mxu0
      %v2940 = vadd.f32 0.0, %v2939
      %v2941 = vpop.f32.mrf.mxu0
      %2942 = vmatprep.mubr.bf16.mxu0 0
      %2943 = vmatmul.mubr.bf16.gmra.mxu0 %v2585
      %v2944 = vpop.f32.mrf.mxu0
      %v2945 = vadd.f32 0.0, %v2944
      %v2946 = vpop.f32.mrf.mxu0
      %v2947 = vpop.f32.mrf.mxu0
      %v2948 = vadd.f32 0.0, %v2947
      %v2949 = vpop.f32.mrf.mxu0
      %2950 = vmatprep.mubr.bf16.mxu0 0
      %2951 = vmatmul.mubr.bf16.gmra.mxu0 %v2857
      %v2952 = vpop.f32.mrf.mxu0
      %v2953 = vadd.f32 0.0, %v2952
      %v2954 = vpop.f32.mrf.mxu0
      %v2955 = vpop.f32.mrf.mxu0
      %v2956 = vadd.f32 0.0, %v2955
      %v2957 = vpop.f32.mrf.mxu0
      %2958 = vdwg.mxu0
      %v2959 = vadd.f32 %v2733, %v2897
      %v2960 = vadd.f32 %v2736, %v2900
      %v2961 = vadd.f32 %v2741, %v2905
      %v2962 = vadd.f32 %v2744, %v2908
      %v2963 = vadd.f32 %v2749, %v2913
      %v2964 = vadd.f32 %v2752, %v2916
      %v2965 = vadd.f32 %v2757, %v2921
      %v2966 = vadd.f32 %v2760, %v2924
      %v2967 = vadd.f32 %v2765, %v2929
      %v2968 = vadd.f32 %v2768, %v2932
      %v2969 = vadd.f32 %v2773, %v2937
      %v2970 = vadd.f32 %v2776, %v2940
      %v2971 = vadd.f32 %v2781, %v2945
      %v2972 = vadd.f32 %v2784, %v2948
      %v2973 = vadd.f32 %v2789, %v2953
      %v2974 = vadd.f32 %v2792, %v2956
      %v2975 = vld [vmem:[%s5] sm:$0x1]
      %v2977 = vlaneseq
      %v2978 = vshrl.u32 %v2977, 7
      %v2979 = vsub.s32 0, %v2978
      %v2980 = vrot.slane %v2975, %v2979
      %v2982 = vadd.f32 %v2959, %v2980
      %v2983 = vadd.f32 %v2960, %v2980
      %v2984 = vadd.f32 %v2961, %v2980
      %v2985 = vadd.f32 %v2962, %v2980
      %v2986 = vadd.f32 %v2963, %v2980
      %v2987 = vadd.f32 %v2964, %v2980
      %v2988 = vadd.f32 %v2965, %v2980
      %v2989 = vadd.f32 %v2966, %v2980
      %v2990 = vadd.f32 %v2967, %v2980
      %v2991 = vadd.f32 %v2968, %v2980
      %v2992 = vadd.f32 %v2969, %v2980
      %v2993 = vadd.f32 %v2970, %v2980
      %v2994 = vadd.f32 %v2971, %v2980
      %v2995 = vadd.f32 %v2972, %v2980
      %v2996 = vadd.f32 %v2973, %v2980
      %v2997 = vadd.f32 %v2974, %v2980
      %vm2998 = vcmp.gt.f32.partialorder %v2982, 0.0
      %vm2999 = vcmp.gt.f32.partialorder %v2983, 0.0
      %vm3000 = vcmp.gt.f32.partialorder %v2984, 0.0
      %vm3001 = vcmp.gt.f32.partialorder %v2985, 0.0
      %vm3002 = vcmp.gt.f32.partialorder %v2986, 0.0
      %vm3003 = vcmp.gt.f32.partialorder %v2987, 0.0
      %vm3004 = vcmp.gt.f32.partialorder %v2988, 0.0
      %vm3005 = vcmp.gt.f32.partialorder %v2989, 0.0
      %vm3006 = vcmp.gt.f32.partialorder %v2990, 0.0
      %vm3007 = vcmp.gt.f32.partialorder %v2991, 0.0
      %vm3008 = vcmp.gt.f32.partialorder %v2992, 0.0
      %vm3009 = vcmp.gt.f32.partialorder %v2993, 0.0
      %vm3010 = vcmp.gt.f32.partialorder %v2994, 0.0
      %vm3011 = vcmp.gt.f32.partialorder %v2995, 0.0
      %vm3012 = vcmp.gt.f32.partialorder %v2996, 0.0
      %vm3013 = vcmp.gt.f32.partialorder %v2997, 0.0
      %v3014 = vld [vmem:[%s6] sm:$0x1]
      %v3016 = vlaneseq
      %v3017 = vshrl.u32 %v3016, 7
      %v3018 = vsub.s32 0, %v3017
      %v3019 = vrot.slane %v3014, %v3018
      %v3021 = vmul.f32 %v3019, %v2982
      %v3022 = vmul.f32 %v3019, %v2983
      %v3023 = vmul.f32 %v3019, %v2984
      %v3024 = vmul.f32 %v3019, %v2985
      %v3025 = vmul.f32 %v3019, %v2986
      %v3026 = vmul.f32 %v3019, %v2987
      %v3027 = vmul.f32 %v3019, %v2988
      %v3028 = vmul.f32 %v3019, %v2989
      %v3029 = vmul.f32 %v3019, %v2990
      %v3030 = vmul.f32 %v3019, %v2991
      %v3031 = vmul.f32 %v3019, %v2992
      %v3032 = vmul.f32 %v3019, %v2993
      %v3033 = vmul.f32 %v3019, %v2994
      %v3034 = vmul.f32 %v3019, %v2995
      %v3035 = vmul.f32 %v3019, %v2996
      %v3036 = vmul.f32 %v3019, %v2997
      %v3037 = vsel %vm2998, %v2982, %v3021
      %v3038 = vsel %vm2999, %v2983, %v3022
      %v3039 = vsel %vm3000, %v2984, %v3023
      %v3040 = vsel %vm3001, %v2985, %v3024
      %v3041 = vsel %vm3002, %v2986, %v3025
      %v3042 = vsel %vm3003, %v2987, %v3026
      %v3043 = vsel %vm3004, %v2988, %v3027
      %v3044 = vsel %vm3005, %v2989, %v3028
      %v3045 = vsel %vm3006, %v2990, %v3029
      %v3046 = vsel %vm3007, %v2991, %v3030
      %v3047 = vsel %vm3008, %v2992, %v3031
      %v3048 = vsel %vm3009, %v2993, %v3032
      %v3049 = vsel %vm3010, %v2994, %v3033
      %v3050 = vsel %vm3011, %v2995, %v3034
      %v3051 = vsel %vm3012, %v2996, %v3035
      %v3052 = vsel %vm3013, %v2997, %v3036
      %s3053 = smul.u32 %s300, 16
      %s3054 = scalar_lea.vmem %s290, %s3053
      %v3055 = vld [vmem:[%s3054] sm:$0xff]
      %v3056 = vld [vmem:[%s3054 + $0x8] sm:$0xff]
      %v3057 = vld [vmem:[%s3054 + $0x10] sm:$0xff]
      %v3058 = vld [vmem:[%s3054 + $0x18] sm:$0xff]
      %v3059 = vld [vmem:[%s3054 + $0x20] sm:$0xff]
      %v3060 = vld [vmem:[%s3054 + $0x28] sm:$0xff]
      %v3061 = vld [vmem:[%s3054 + $0x30] sm:$0xff]
      %v3062 = vld [vmem:[%s3054 + $0x38] sm:$0xff]
      %v3063 = vld [vmem:[%s3054 + $0x40] sm:$0xff]
      %v3064 = vld [vmem:[%s3054 + $0x48] sm:$0xff]
      %v3065 = vld [vmem:[%s3054 + $0x50] sm:$0xff]
      %v3066 = vld [vmem:[%s3054 + $0x58] sm:$0xff]
      %v3067 = vld [vmem:[%s3054 + $0x60] sm:$0xff]
      %v3068 = vld [vmem:[%s3054 + $0x68] sm:$0xff]
      %v3069 = vld [vmem:[%s3054 + $0x70] sm:$0xff]
      %v3070 = vld [vmem:[%s3054 + $0x78] sm:$0xff]
      %v3071 = vadd.f32 %v3055, %v3037
      %v3072 = vadd.f32 %v3056, %v3038
      %v3073 = vadd.f32 %v3057, %v3039
      %v3074 = vadd.f32 %v3058, %v3040
      %v3075 = vadd.f32 %v3059, %v3041
      %v3076 = vadd.f32 %v3060, %v3042
      %v3077 = vadd.f32 %v3061, %v3043
      %v3078 = vadd.f32 %v3062, %v3044
      %v3079 = vadd.f32 %v3063, %v3045
      %v3080 = vadd.f32 %v3064, %v3046
      %v3081 = vadd.f32 %v3065, %v3047
      %v3082 = vadd.f32 %v3066, %v3048
      %v3083 = vadd.f32 %v3067, %v3049
      %v3084 = vadd.f32 %v3068, %v3050
      %v3085 = vadd.f32 %v3069, %v3051
      %v3086 = vadd.f32 %v3070, %v3052
      %v3087 = vcombine.low %v3071, %v3075
      %v3088 = vcombine.high %v3071, %v3075
      %v3090 = vunpack.c.l.s4 1983009808
      %v3091 = vunpack.c.0.s8 %v3090
      %v3092 = vlaneseq
      %v3093 = vshrl.u32 %v3092, 7
      %v3094 = vsub.s32 %v3091, %v3093
      %v3095 = vrot.slane %v3087, %v3094
      %v3097 = vunpack.c.l.s4 1983009808
      %v3098 = vunpack.c.0.s8 %v3097
      %v3099 = vlaneseq
      %v3100 = vshrl.u32 %v3099, 7
      %v3101 = vsub.s32 %v3098, %v3100
      %v3102 = vrot.slane %v3088, %v3101
      %v3103 = vcombine.low %v3073, %v3077
      %v3104 = vcombine.high %v3073, %v3077
      %v3106 = vunpack.c.l.s4 1983009808
      %v3107 = vunpack.c.0.s8 %v3106
      %v3108 = vlaneseq
      %v3109 = vshrl.u32 %v3108, 7
      %v3110 = vsub.s32 %v3107, %v3109
      %v3111 = vrot.slane %v3103, %v3110
      %v3113 = vunpack.c.l.s4 1983009808
      %v3114 = vunpack.c.0.s8 %v3113
      %v3115 = vlaneseq
      %v3116 = vshrl.u32 %v3115, 7
      %v3117 = vsub.s32 %v3114, %v3116
      %v3118 = vrot.slane %v3104, %v3117
      %v3119 = vcombine.low %v3079, %v3083
      %v3120 = vcombine.high %v3079, %v3083
      %v3122 = vunpack.c.l.s4 1983009808
      %v3123 = vunpack.c.0.s8 %v3122
      %v3124 = vlaneseq
      %v3125 = vshrl.u32 %v3124, 7
      %v3126 = vsub.s32 %v3123, %v3125
      %v3127 = vrot.slane %v3119, %v3126
      %v3129 = vunpack.c.l.s4 1983009808
      %v3130 = vunpack.c.0.s8 %v3129
      %v3131 = vlaneseq
      %v3132 = vshrl.u32 %v3131, 7
      %v3133 = vsub.s32 %v3130, %v3132
      %v3134 = vrot.slane %v3120, %v3133
      %v3135 = vcombine.low %v3081, %v3085
      %v3136 = vcombine.high %v3081, %v3085
      %v3138 = vunpack.c.l.s4 1983009808
      %v3139 = vunpack.c.0.s8 %v3138
      %v3140 = vlaneseq
      %v3141 = vshrl.u32 %v3140, 7
      %v3142 = vsub.s32 %v3139, %v3141
      %v3143 = vrot.slane %v3135, %v3142
      %v3145 = vunpack.c.l.s4 1983009808
      %v3146 = vunpack.c.0.s8 %v3145
      %v3147 = vlaneseq
      %v3148 = vshrl.u32 %v3147, 7
      %v3149 = vsub.s32 %v3146, %v3148
      %v3150 = vrot.slane %v3136, %v3149
      %v3151 = vcombine.low %v3095, %v3111
      %v3152 = vcombine.high %v3095, %v3111
      %v3154 = vunpack.c.l.s4 1934713408
      %v3155 = vunpack.c.0.s8 %v3154
      %v3156 = vlaneseq
      %v3157 = vshrl.u32 %v3156, 7
      %v3158 = vsub.s32 %v3155, %v3157
      %v3159 = vrot.slane %v3151, %v3158
      %v3161 = vunpack.c.l.s4 1934713408
      %v3162 = vunpack.c.0.s8 %v3161
      %v3163 = vlaneseq
      %v3164 = vshrl.u32 %v3163, 7
      %v3165 = vsub.s32 %v3162, %v3164
      %v3166 = vrot.slane %v3152, %v3165
      %v3167 = vcombine.low %v3102, %v3118
      %v3168 = vcombine.high %v3102, %v3118
      %v3170 = vunpack.c.l.s4 1934713408
      %v3171 = vunpack.c.0.s8 %v3170
      %v3172 = vlaneseq
      %v3173 = vshrl.u32 %v3172, 7
      %v3174 = vsub.s32 %v3171, %v3173
      %v3175 = vrot.slane %v3167, %v3174
      %v3177 = vunpack.c.l.s4 1934713408
      %v3178 = vunpack.c.0.s8 %v3177
      %v3179 = vlaneseq
      %v3180 = vshrl.u32 %v3179, 7
      %v3181 = vsub.s32 %v3178, %v3180
      %v3182 = vrot.slane %v3168, %v3181
      %v3183 = vcombine.low %v3127, %v3143
      %v3184 = vcombine.high %v3127, %v3143
      %v3186 = vunpack.c.l.s4 1934713408
      %v3187 = vunpack.c.0.s8 %v3186
      %v3188 = vlaneseq
      %v3189 = vshrl.u32 %v3188, 7
      %v3190 = vsub.s32 %v3187, %v3189
      %v3191 = vrot.slane %v3183, %v3190
      %v3193 = vunpack.c.l.s4 1934713408
      %v3194 = vunpack.c.0.s8 %v3193
      %v3195 = vlaneseq
      %v3196 = vshrl.u32 %v3195, 7
      %v3197 = vsub.s32 %v3194, %v3196
      %v3198 = vrot.slane %v3184, %v3197
      %v3199 = vcombine.low %v3134, %v3150
      %v3200 = vcombine.high %v3134, %v3150
      %v3202 = vunpack.c.l.s4 1934713408
      %v3203 = vunpack.c.0.s8 %v3202
      %v3204 = vlaneseq
      %v3205 = vshrl.u32 %v3204, 7
      %v3206 = vsub.s32 %v3203, %v3205
      %v3207 = vrot.slane %v3199, %v3206
      %v3209 = vunpack.c.l.s4 1934713408
      %v3210 = vunpack.c.0.s8 %v3209
      %v3211 = vlaneseq
      %v3212 = vshrl.u32 %v3211, 7
      %v3213 = vsub.s32 %v3210, %v3212
      %v3214 = vrot.slane %v3200, %v3213
      %v3215 = vcombine.low %v3159, %v3191
      %v3216 = vcombine.high %v3159, %v3191
      %v3217 = vcombine.low %v3166, %v3198
      %v3218 = vcombine.high %v3166, %v3198
      %v3219 = vcombine.low %v3175, %v3207
      %v3220 = vcombine.high %v3175, %v3207
      %v3221 = vcombine.low %v3182, %v3214
      %v3222 = vcombine.high %v3182, %v3214
      %v3223 = vcombine.low %v3072, %v3076
      %v3224 = vcombine.high %v3072, %v3076
      %v3226 = vunpack.c.l.s4 1983009808
      %v3227 = vunpack.c.0.s8 %v3226
      %v3228 = vlaneseq
      %v3229 = vshrl.u32 %v3228, 7
      %v3230 = vsub.s32 %v3227, %v3229
      %v3231 = vrot.slane %v3223, %v3230
      %v3233 = vunpack.c.l.s4 1983009808
      %v3234 = vunpack.c.0.s8 %v3233
      %v3235 = vlaneseq
      %v3236 = vshrl.u32 %v3235, 7
      %v3237 = vsub.s32 %v3234, %v3236
      %v3238 = vrot.slane %v3224, %v3237
      %v3239 = vcombine.low %v3074, %v3078
      %v3240 = vcombine.high %v3074, %v3078
      %v3242 = vunpack.c.l.s4 1983009808
      %v3243 = vunpack.c.0.s8 %v3242
      %v3244 = vlaneseq
      %v3245 = vshrl.u32 %v3244, 7
      %v3246 = vsub.s32 %v3243, %v3245
      %v3247 = vrot.slane %v3239, %v3246
      %v3249 = vunpack.c.l.s4 1983009808
      %v3250 = vunpack.c.0.s8 %v3249
      %v3251 = vlaneseq
      %v3252 = vshrl.u32 %v3251, 7
      %v3253 = vsub.s32 %v3250, %v3252
      %v3254 = vrot.slane %v3240, %v3253
      %v3255 = vcombine.low %v3080, %v3084
      %v3256 = vcombine.high %v3080, %v3084
      %v3258 = vunpack.c.l.s4 1983009808
      %v3259 = vunpack.c.0.s8 %v3258
      %v3260 = vlaneseq
      %v3261 = vshrl.u32 %v3260, 7
      %v3262 = vsub.s32 %v3259, %v3261
      %v3263 = vrot.slane %v3255, %v3262
      %v3265 = vunpack.c.l.s4 1983009808
      %v3266 = vunpack.c.0.s8 %v3265
      %v3267 = vlaneseq
      %v3268 = vshrl.u32 %v3267, 7
      %v3269 = vsub.s32 %v3266, %v3268
      %v3270 = vrot.slane %v3256, %v3269
      %v3271 = vcombine.low %v3082, %v3086
      %v3272 = vcombine.high %v3082, %v3086
      %v3274 = vunpack.c.l.s4 1983009808
      %v3275 = vunpack.c.0.s8 %v3274
      %v3276 = vlaneseq
      %v3277 = vshrl.u32 %v3276, 7
      %v3278 = vsub.s32 %v3275, %v3277
      %v3279 = vrot.slane %v3271, %v3278
      %v3281 = vunpack.c.l.s4 1983009808
      %v3282 = vunpack.c.0.s8 %v3281
      %v3283 = vlaneseq
      %v3284 = vshrl.u32 %v3283, 7
      %v3285 = vsub.s32 %v3282, %v3284
      %v3286 = vrot.slane %v3272, %v3285
      %v3287 = vcombine.low %v3231, %v3247
      %v3288 = vcombine.high %v3231, %v3247
      %v3290 = vunpack.c.l.s4 1934713408
      %v3291 = vunpack.c.0.s8 %v3290
      %v3292 = vlaneseq
      %v3293 = vshrl.u32 %v3292, 7
      %v3294 = vsub.s32 %v3291, %v3293
      %v3295 = vrot.slane %v3287, %v3294
      %v3297 = vunpack.c.l.s4 1934713408
      %v3298 = vunpack.c.0.s8 %v3297
      %v3299 = vlaneseq
      %v3300 = vshrl.u32 %v3299, 7
      %v3301 = vsub.s32 %v3298, %v3300
      %v3302 = vrot.slane %v3288, %v3301
      %v3303 = vcombine.low %v3238, %v3254
      %v3304 = vcombine.high %v3238, %v3254
      %v3306 = vunpack.c.l.s4 1934713408
      %v3307 = vunpack.c.0.s8 %v3306
      %v3308 = vlaneseq
      %v3309 = vshrl.u32 %v3308, 7
      %v3310 = vsub.s32 %v3307, %v3309
      %v3311 = vrot.slane %v3303, %v3310
      %v3313 = vunpack.c.l.s4 1934713408
      %v3314 = vunpack.c.0.s8 %v3313
      %v3315 = vlaneseq
      %v3316 = vshrl.u32 %v3315, 7
      %v3317 = vsub.s32 %v3314, %v3316
      %v3318 = vrot.slane %v3304, %v3317
      %v3319 = vcombine.low %v3263, %v3279
      %v3320 = vcombine.high %v3263, %v3279
      %v3322 = vunpack.c.l.s4 1934713408
      %v3323 = vunpack.c.0.s8 %v3322
      %v3324 = vlaneseq
      %v3325 = vshrl.u32 %v3324, 7
      %v3326 = vsub.s32 %v3323, %v3325
      %v3327 = vrot.slane %v3319, %v3326
      %v3329 = vunpack.c.l.s4 1934713408
      %v3330 = vunpack.c.0.s8 %v3329
      %v3331 = vlaneseq
      %v3332 = vshrl.u32 %v3331, 7
      %v3333 = vsub.s32 %v3330, %v3332
      %v3334 = vrot.slane %v3320, %v3333
      %v3335 = vcombine.low %v3270, %v3286
      %v3336 = vcombine.high %v3270, %v3286
      %v3338 = vunpack.c.l.s4 1934713408
      %v3339 = vunpack.c.0.s8 %v3338
      %v3340 = vlaneseq
      %v3341 = vshrl.u32 %v3340, 7
      %v3342 = vsub.s32 %v3339, %v3341
      %v3343 = vrot.slane %v3335, %v3342
      %v3345 = vunpack.c.l.s4 1934713408
      %v3346 = vunpack.c.0.s8 %v3345
      %v3347 = vlaneseq
      %v3348 = vshrl.u32 %v3347, 7
      %v3349 = vsub.s32 %v3346, %v3348
      %v3350 = vrot.slane %v3336, %v3349
      %v3351 = vcombine.low %v3295, %v3327
      %v3352 = vcombine.high %v3295, %v3327
      %v3353 = vcombine.low %v3302, %v3334
      %v3354 = vcombine.high %v3302, %v3334
      %v3355 = vcombine.low %v3311, %v3343
      %v3356 = vcombine.high %v3311, %v3343
      %v3357 = vcombine.low %v3318, %v3350
      %v3358 = vcombine.high %v3318, %v3350
      %3360 = vrot.lane.b32.xlu0 %v3216, 4
      %v3361 = vpop.permute.xlu0 %3360
      %3364 = vrot.lane.b32.xlu0 %v3217, 8
      %v3365 = vpop.permute.xlu0 %3364
      %3368 = vrot.lane.b32.xlu0 %v3218, 12
      %v3369 = vpop.permute.xlu0 %3368
      %3372 = vrot.lane.b32.xlu0 %v3219, 16
      %v3373 = vpop.permute.xlu0 %3372
      %3376 = vrot.lane.b32.xlu0 %v3220, 20
      %v3377 = vpop.permute.xlu0 %3376
      %3380 = vrot.lane.b32.xlu0 %v3221, 24
      %v3381 = vpop.permute.xlu0 %3380
      %3384 = vrot.lane.b32.xlu0 %v3222, 28
      %v3385 = vpop.permute.xlu0 %3384
      %3388 = vrot.lane.b32.xlu0 %v3351, 32
      %v3389 = vpop.permute.xlu0 %3388
      %3392 = vrot.lane.b32.xlu0 %v3352, 36
      %v3393 = vpop.permute.xlu0 %3392
      %3396 = vrot.lane.b32.xlu0 %v3353, 40
      %v3397 = vpop.permute.xlu0 %3396
      %3400 = vrot.lane.b32.xlu0 %v3354, 44
      %v3401 = vpop.permute.xlu0 %3400
      %3404 = vrot.lane.b32.xlu0 %v3355, 48
      %v3405 = vpop.permute.xlu0 %3404
      %3408 = vrot.lane.b32.xlu0 %v3356, 52
      %v3409 = vpop.permute.xlu0 %3408
      %3412 = vrot.lane.b32.xlu0 %v3357, 56
      %v3413 = vpop.permute.xlu0 %3412
      %3416 = vrot.lane.b32.xlu0 %v3358, 60
      %v3417 = vpop.permute.xlu0 %3416
      %v3419 = vsel %vm1045, %v3215, %v3361
      %v3420 = vsel %vm1096, %v3419, %v3365
      %v3421 = vsel %vm1351, %v3420, %v3369
      %vm3422 = vcmask 130048
      %v3423 = vsel %vm3422, %v3421, %v3373
      %vm3424 = vcmask 162816
      %v3425 = vsel %vm3424, %v3423, %v3377
      %vm3426 = vcmask 195584
      %v3427 = vsel %vm3426, %v3425, %v3381
      %vm3428 = vcmask 228352
      %v3429 = vsel %vm3428, %v3427, %v3385
      %vm3430 = vcmask 261120
      %v3431 = vsel %vm3430, %v3429, %v3389
      %vm3432 = vcmask 293888
      %v3433 = vsel %vm3432, %v3431, %v3393
      %vm3434 = vcmask 326656
      %v3435 = vsel %vm3434, %v3433, %v3397
      %vm3436 = vcmask 359424
      %v3437 = vsel %vm3436, %v3435, %v3401
      %vm3438 = vcmask 392192
      %v3439 = vsel %vm3438, %v3437, %v3405
      %vm3440 = vcmask 424960
      %v3441 = vsel %vm3440, %v3439, %v3409
      %vm3442 = vcmask 457728
      %v3443 = vsel %vm3442, %v3441, %v3413
      %vm3444 = vcmask 490496
      %v3445 = vsel %vm3444, %v3443, %v3417
      %vm3446 = vcmask 523264
      %3447 = vst.msk [vmem:[%s298] sm:$0xff] %vm3446, %v3445
      %p3448 = scmp.lt.s32.totalorder %s22, 1
      %s3449 = scalar_select %p3448, %s22, 1
      %p3450 = scmp.lt.s32.totalorder %s23, 1
      %s3451 = scalar_select %p3450, %s23, 1
      %s3452 = smul.addr %s3449, 2
      %s3453 = sadd.s32 %s3451, %s3452
      %s3454 = smul.addr %s3453, 8
      %s3455 = scalar_lea.vmem %s7, %s3454
      // Predicated region
      $region61: #{sphere_res_block.1} parent=47 // pred_check
        %p3456 = pneg %p202
      $region62: #{sphere_res_block.1} parent=47 // pred_check_branch
        %3458 = sbr.rel (%p3456) target = $region64
      $region63: #{sphere_res_block.1} parent=47 // pred_region
        _
      $region64: #{sphere_res_block.1} parent=47 // pred_fallthru
        _
    $region48: #{sphere_res_block.1} parent=5 // pred_fallthru
      _
    %p3459 = scmp.le.s32.totalorder 2, %s13
    // Predicated region
    $region65: #{sphere_res_block.1} parent=5 // pred_check
      %p3460 = pneg %p3459
    $region66: #{sphere_res_block.1} parent=5 // pred_check_branch
      %3462 = sbr.rel (%p3460) target = $region68
    $region67: #{sphere_res_block.1} parent=5 // pred_region
      %s3463 = ssub.s32 %s13, 2
      // Predicated region
      $region69: #{sphere_res_block.1} parent=67 // pred_check
        %p3464 = pneg %p208
      $region70: #{sphere_res_block.1} parent=67 // pred_check_branch
        %3466 = sbr.rel (%p3464) target = $region72
      $region71: #{sphere_res_block.1} parent=67 // pred_region
        %p3467 = scmp.lt.s32.totalorder %s24, 1
        %s3468 = scalar_select %p3467, %s24, 1
        %p3469 = scmp.lt.s32.totalorder %s25, 1
        %s3470 = scalar_select %p3469, %s25, 1
        %s3471 = smul.addr %s3468, 2
        %s3472 = sadd.s32 %s3470, %s3471
        %s3473 = smul.addr %s3472, 8
        %s3474 = scalar_lea.vmem %s7, %s3473
      $region72: #{sphere_res_block.1} parent=67 // pred_fallthru
        _
    $region68: #{sphere_res_block.1} parent=5 // pred_fallthru
      _
  $region6: #{sphere_res_block.1} parent=0 // loop_footer
    %s17 = sadd.s32 1, %s13
  $region7: #{sphere_res_block.1} parent=0 // loop_footer_branch
    %12 = sbr.rel target = $region3
  $region8: #{sphere_res_block.1} parent=0 // loop_exit
    _

</llo_original>
